<compile_context>
chip_gen: v6e
topology: v6e:2x2x1
jax: 0.10.0
libtpu: 0.0.40
codegen_flags: <defaults>
</compile_context>

<pallas_src>
import functools

import numpy as np
import jax
import jax.numpy as jnp
from jax import lax
from jax.experimental import pallas as pl
from jax.experimental.pallas import tpu as pltpu


def encoder_block_kernel(x_ref, w_ref, p_ref, tmp_ref, out_ref, idx_ref, *,
                         H, W, KH, KW, Cin, Cout, SH, SW, Ho, Wo):
    """Fused Conv2d(stride=1) + BN(eval) + PReLU + MaxPool2d(argmax), one batch elem.

    x_ref:   (1, Hp, Wp, Cin)      spatially pre-padded input tile
    w_ref:   (KH*KW*Cin, Cout)     conv weights, row = (kh*KW + kw)*Cin + ci
    p_ref:   (3, Cout)             rows: [scale, shift, alpha]
                                   scale = gamma/sqrt(var+eps)
                                   shift = beta + scale*(conv_bias - mean)
    tmp_ref: (1, H, W, Cout)  f32  BN+PReLU activation
    out_ref: (1, Ho, Wo, Cout) f32 pooled values
    idx_ref: (1, Ho, Wo, Cout) i32 PyTorch-style flat indices (h*W + w),
                                   first max in row-major window order.
    """
    # ---------------- Conv2d as im2col + one MXU matmul ----------------
    x = x_ref[0]                                            # (Hp, Wp, Cin)
    taps = []
    for kh in range(KH):
        for kw in range(KW):
            taps.append(x[kh:kh + H, kw:kw + W, :])         # (H, W, Cin), unit-stride
    patches = jnp.concatenate(taps, axis=-1)                # (H, W, KH*KW*Cin)
    # Layout-preserving fold (W is a multiple of 8 here), keeps lane dim intact.
    patches = patches.reshape(H * W, KH * KW * Cin)
    acc = jnp.dot(patches, w_ref[...],                      # MXU, f32 accumulation
                  preferred_element_type=jnp.float32)       # (H*W, Cout)

    # ---------------- BatchNorm(eval) + PReLU epilogue ----------------
    scale = p_ref[0:1, :].astype(jnp.float32)               # (1, Cout)
    shift = p_ref[1:2, :].astype(jnp.float32)
    alpha = p_ref[2:3, :].astype(jnp.float32)
    y = acc * scale + shift
    y = jnp.where(y > 0, y, alpha * y)                      # (H*W, Cout), f32
    y3 = y.reshape(H, W, Cout)
    tmp_ref[0] = y3.astype(tmp_ref.dtype)

    # ---------------- MaxPool2d((KH,KW), stride=(SH,SW)) + argmax ----------------
    # Stage 1: W-direction window max/argmax at full H resolution.
    # Only unit-stride shifted slices; work is shared across overlapping windows.
    Wf = W - KW + 1                                         # valid window starts along W
    ws = lax.broadcasted_iota(jnp.int32, (H, Wf, Cout), 1)  # window start column
    wmax = y3[:, 0:Wf, :]                                   # tap kw = 0
    wcol = ws                                               # winning absolute column
    for kw in range(1, KW):
        cand = y3[:, kw:kw + Wf, :]
        upd = cand > wmax                                   # strict > keeps first (smallest kw)
        wmax = jnp.where(upd, cand, wmax)
        wcol = jnp.where(upd, ws + kw, wcol)

    # One stride-SW column subsample, built from unit slices (no strided reads).
    wmax_s = jnp.concatenate([wmax[:, SW * ow:SW * ow + 1, :] for ow in range(Wo)], axis=1)
    wcol_s = jnp.concatenate([wcol[:, SW * ow:SW * ow + 1, :] for ow in range(Wo)], axis=1)

    # Stage 2: H-direction max over the KH pre-reduced rows of each output row.
    out_rows, idx_rows = [], []
    for oh in range(Ho):
        h0 = SH * oh
        m = wmax_s[h0]                                      # (Wo, Cout)
        f = h0 * W + wcol_s[h0]                             # flat index h*W + w
        for kh in range(1, KH):
            c = wmax_s[h0 + kh]
            cf = (h0 + kh) * W + wcol_s[h0 + kh]
            upd = c > m                                     # strict > keeps first (smallest kh)
            m = jnp.where(upd, c, m)
            f = jnp.where(upd, cf, f)
        out_rows.append(m)
        idx_rows.append(f)
    out_ref[0] = jnp.stack(out_rows, axis=0).astype(out_ref.dtype)
    idx_ref[0] = jnp.stack(idx_rows, axis=0)


def encoder_block_forward(x_nchw, params, *, kernel=(3, 7), stride_conv=1,
                          stride_pool=2, eps=1e-5, compute_dtype=jnp.float32):
    """Eval-mode EncoderBlock forward. Returns (out, indices, tmp) in NCHW."""
    assert stride_conv == 1
    N, Cin, H, W = x_nchw.shape
    KH, KW = kernel
    padH, padW = (KH - 1) // 2, (KW - 1) // 2
    w_oihw = params["conv_w"]                               # (Cout, Cin, KH, KW)
    Cout = w_oihw.shape[0]
    SH = SW = stride_pool
    Ho = (H - KH) // SH + 1
    Wo = (W - KW) // SW + 1
    K = KH * KW * Cin

    # Fold conv bias + BatchNorm(eval) into per-channel scale/shift; pack with the
    # PReLU slope into a single (3, Cout) operand (one small DMA instead of three).
    scale = params["bn_gamma"] / jnp.sqrt(params["bn_var"] + eps)
    shift = params["bn_beta"] + scale * (params["conv_b"] - params["bn_mean"])
    alpha = jnp.broadcast_to(params["prelu_alpha"].reshape(-1), (Cout,))
    packed = jnp.stack([scale, shift, alpha], axis=0).astype(jnp.float32)   # (3, Cout)

    # Boundary glue (outside the kernel): NCHW -> NHWC, zero pad, weight repack.
    # TODO(synk): in a fully NHWC pipeline these boundary transposes disappear.
    x_nhwc = jnp.transpose(x_nchw, (0, 2, 3, 1)).astype(compute_dtype)
    x_pad = jnp.pad(x_nhwc, ((0, 0), (padH, padH), (padW, padW), (0, 0)))
    Hp, Wp = H + 2 * padH, W + 2 * padW
    w_flat = jnp.transpose(w_oihw, (2, 3, 1, 0)).reshape(K, Cout).astype(compute_dtype)

    kernel_fn = functools.partial(
        encoder_block_kernel, H=H, W=W, KH=KH, KW=KW, Cin=Cin, Cout=Cout,
        SH=SH, SW=SW, Ho=Ho, Wo=Wo)

    call = pl.pallas_call(
        kernel_fn,
        out_shape=(jax.ShapeDtypeStruct((N, H, W, Cout), jnp.float32),     # tmp
                   jax.ShapeDtypeStruct((N, Ho, Wo, Cout), jnp.float32),   # out
                   jax.ShapeDtypeStruct((N, Ho, Wo, Cout), jnp.int32)),    # indices
        grid=(N,),
        in_specs=[
            pl.BlockSpec((1, Hp, Wp, Cin), lambda n: (n, 0, 0, 0)),
            pl.BlockSpec((K, Cout), lambda n: (0, 0)),
            pl.BlockSpec((3, Cout), lambda n: (0, 0)),
        ],
        out_specs=(
            pl.BlockSpec((1, H, W, Cout), lambda n: (n, 0, 0, 0)),
            pl.BlockSpec((1, Ho, Wo, Cout), lambda n: (n, 0, 0, 0)),
            pl.BlockSpec((1, Ho, Wo, Cout), lambda n: (n, 0, 0, 0)),
        ),
        compiler_params=pltpu.CompilerParams(dimension_semantics=("parallel",)),
    )
    tmp_nhwc, out_nhwc, idx_nhwc = call(x_pad, w_flat, packed)

    # Back to PyTorch NCHW.
    tmp = jnp.transpose(tmp_nhwc, (0, 3, 1, 2))
    out = jnp.transpose(out_nhwc, (0, 3, 1, 2))
    indices = jnp.transpose(idx_nhwc, (0, 3, 1, 2))   # int32 (PyTorch returns int64)
    return out, indices, tmp


if __name__ == "__main__":
    key = jax.random.PRNGKey(0)
    N, Cin, H, W = 2, 4, 16, 16
    Cout, KH, KW = 64, 3, 7
    padH, padW = (KH - 1) // 2, (KW - 1) // 2
    ks = jax.random.split(key, 7)

    x = jax.random.normal(ks[0], (N, Cin, H, W), jnp.float32)
    params = {
        "conv_w": 0.2 * jax.random.normal(ks[1], (Cout, Cin, KH, KW), jnp.float32),
        "conv_b": 0.1 * jax.random.normal(ks[2], (Cout,), jnp.float32),
        "bn_gamma": 1.0 + 0.1 * jax.random.normal(ks[3], (Cout,), jnp.float32),
        "bn_beta": 0.1 * jax.random.normal(ks[4], (Cout,), jnp.float32),
        "bn_mean": 0.1 * jax.random.normal(ks[5], (Cout,), jnp.float32),
        "bn_var": jnp.abs(1.0 + 0.1 * jax.random.normal(ks[6], (Cout,), jnp.float32)),
        "prelu_alpha": jnp.asarray([0.25], jnp.float32),   # nn.PReLU() default init
    }

    fwd = jax.jit(functools.partial(encoder_block_forward, kernel=(KH, KW),
                                    stride_conv=1, stride_pool=2))
    out, indices, tmp = fwd(x, params)
    jax.block_until_ready((out, indices, tmp))

    # ---- pure JAX / numpy reference check ----
    eps = 1e-5
    conv = lax.conv_general_dilated(
        x, params["conv_w"], window_strides=(1, 1),
        padding=((padH, padH), (padW, padW)),
        dimension_numbers=("NCHW", "OIHW", "NCHW"),
    ) + params["conv_b"][None, :, None, None]
    bn = ((conv - params["bn_mean"][None, :, None, None])
          / jnp.sqrt(params["bn_var"] + eps)[None, :, None, None]
          * params["bn_gamma"][None, :, None, None]
          + params["bn_beta"][None, :, None, None])
    a = float(params["prelu_alpha"][0])
    tmp_ref = jnp.where(bn > 0, bn, a * bn)
    np.testing.assert_allclose(np.asarray(tmp), np.asarray(tmp_ref),
                               rtol=1e-4, atol=1e-4)

    # Pooling reference computed from the kernel's own `tmp` (exact value/index match).
    tmp_np = np.asarray(tmp)
    Ho, Wo = out.shape[2], out.shape[3]
    out_ref = np.zeros((N, Cout, Ho, Wo), np.float32)
    idx_ref = np.zeros((N, Cout, Ho, Wo), np.int32)
    for n in range(N):
        for c in range(Cout):
            for oh in range(Ho):
                for ow in range(Wo):
                    win = tmp_np[n, c, 2 * oh:2 * oh + KH, 2 * ow:2 * ow + KW]
                    flat = int(np.argmax(win))
                    r, q = divmod(flat, KW)
                    out_ref[n, c, oh, ow] = win[r, q]
                    idx_ref[n, c, oh, ow] = (2 * oh + r) * W + (2 * ow + q)
    np.testing.assert_allclose(np.asarray(out), out_ref, rtol=1e-6, atol=1e-6)
    np.testing.assert_array_equal(np.asarray(indices), idx_ref)

    print("KERNEL_OK")
</pallas_src>

<mosaic_0001>
module attributes {stable_mosaic.version = 11 : i64} {
  func.func @encoder_block_kernel(%arg0: i32, %arg1: memref<1x18x22x4xf32, #tpu.memory_space<vmem>>, %arg2: memref<84x64xf32, #tpu.memory_space<vmem>>, %arg3: memref<3x64xf32, #tpu.memory_space<vmem>>, %arg4: memref<1x16x16x64xf32, #tpu.memory_space<vmem>>, %arg5: memref<1x7x5x64xf32, #tpu.memory_space<vmem>>, %arg6: memref<1x7x5x64xi32, #tpu.memory_space<vmem>>) attributes {dimension_semantics = [#tpu.dimension_semantics<parallel>], iteration_bounds = array<i64: 2>, scalar_prefetch = 0 : i64, scratch_operands = 0 : i64, tpu.core_type = #tpu.core_type<tc>, window_params = [{transform_indices = @transform_0, window_bounds = array<i64: 1, 18, 22, 4>}, {pipeline_mode = #tpu.pipeline_mode<synchronous>, transform_indices = @transform_1, window_bounds = array<i64: 84, 64>}, {pipeline_mode = #tpu.pipeline_mode<synchronous>, transform_indices = @transform_2, window_bounds = array<i64: 3, 64>}, {transform_indices = @transform_3, window_bounds = array<i64: 1, 16, 16, 64>}, {transform_indices = @transform_4, window_bounds = array<i64: 1, 7, 5, 64>}, {transform_indices = @transform_5, window_bounds = array<i64: 1, 7, 5, 64>}]} {
    %c0 = arith.constant 0 : index
    %c0_0 = arith.constant 0 : index
    %c0_1 = arith.constant 0 : index
    %c0_2 = arith.constant 0 : index
    %0 = vector.load %arg1[%c0, %c0_0, %c0_1, %c0_2] : memref<1x18x22x4xf32, #tpu.memory_space<vmem>>, vector<1x18x22x4xf32>
    %1 = vector.shape_cast %0 : vector<1x18x22x4xf32> to vector<18x22x4xf32>
    %2 = vector.extract_strided_slice %1 {offsets = [0, 0, 0], sizes = [16, 16, 4], strides = [1, 1, 1]} : vector<18x22x4xf32> to vector<16x16x4xf32>
    %3 = vector.extract_strided_slice %1 {offsets = [0, 1, 0], sizes = [16, 16, 4], strides = [1, 1, 1]} : vector<18x22x4xf32> to vector<16x16x4xf32>
    %4 = vector.extract_strided_slice %1 {offsets = [0, 2, 0], sizes = [16, 16, 4], strides = [1, 1, 1]} : vector<18x22x4xf32> to vector<16x16x4xf32>
    %5 = vector.extract_strided_slice %1 {offsets = [0, 3, 0], sizes = [16, 16, 4], strides = [1, 1, 1]} : vector<18x22x4xf32> to vector<16x16x4xf32>
    %6 = vector.extract_strided_slice %1 {offsets = [0, 4, 0], sizes = [16, 16, 4], strides = [1, 1, 1]} : vector<18x22x4xf32> to vector<16x16x4xf32>
    %7 = vector.extract_strided_slice %1 {offsets = [0, 5, 0], sizes = [16, 16, 4], strides = [1, 1, 1]} : vector<18x22x4xf32> to vector<16x16x4xf32>
    %8 = vector.extract_strided_slice %1 {offsets = [0, 6, 0], sizes = [16, 16, 4], strides = [1, 1, 1]} : vector<18x22x4xf32> to vector<16x16x4xf32>
    %9 = vector.extract_strided_slice %1 {offsets = [1, 0, 0], sizes = [16, 16, 4], strides = [1, 1, 1]} : vector<18x22x4xf32> to vector<16x16x4xf32>
    %10 = vector.extract_strided_slice %1 {offsets = [1, 1, 0], sizes = [16, 16, 4], strides = [1, 1, 1]} : vector<18x22x4xf32> to vector<16x16x4xf32>
    %11 = vector.extract_strided_slice %1 {offsets = [1, 2, 0], sizes = [16, 16, 4], strides = [1, 1, 1]} : vector<18x22x4xf32> to vector<16x16x4xf32>
    %12 = vector.extract_strided_slice %1 {offsets = [1, 3, 0], sizes = [16, 16, 4], strides = [1, 1, 1]} : vector<18x22x4xf32> to vector<16x16x4xf32>
    %13 = vector.extract_strided_slice %1 {offsets = [1, 4, 0], sizes = [16, 16, 4], strides = [1, 1, 1]} : vector<18x22x4xf32> to vector<16x16x4xf32>
    %14 = vector.extract_strided_slice %1 {offsets = [1, 5, 0], sizes = [16, 16, 4], strides = [1, 1, 1]} : vector<18x22x4xf32> to vector<16x16x4xf32>
    %15 = vector.extract_strided_slice %1 {offsets = [1, 6, 0], sizes = [16, 16, 4], strides = [1, 1, 1]} : vector<18x22x4xf32> to vector<16x16x4xf32>
    %16 = vector.extract_strided_slice %1 {offsets = [2, 0, 0], sizes = [16, 16, 4], strides = [1, 1, 1]} : vector<18x22x4xf32> to vector<16x16x4xf32>
    %17 = vector.extract_strided_slice %1 {offsets = [2, 1, 0], sizes = [16, 16, 4], strides = [1, 1, 1]} : vector<18x22x4xf32> to vector<16x16x4xf32>
    %18 = vector.extract_strided_slice %1 {offsets = [2, 2, 0], sizes = [16, 16, 4], strides = [1, 1, 1]} : vector<18x22x4xf32> to vector<16x16x4xf32>
    %19 = vector.extract_strided_slice %1 {offsets = [2, 3, 0], sizes = [16, 16, 4], strides = [1, 1, 1]} : vector<18x22x4xf32> to vector<16x16x4xf32>
    %20 = vector.extract_strided_slice %1 {offsets = [2, 4, 0], sizes = [16, 16, 4], strides = [1, 1, 1]} : vector<18x22x4xf32> to vector<16x16x4xf32>
    %21 = vector.extract_strided_slice %1 {offsets = [2, 5, 0], sizes = [16, 16, 4], strides = [1, 1, 1]} : vector<18x22x4xf32> to vector<16x16x4xf32>
    %22 = vector.extract_strided_slice %1 {offsets = [2, 6, 0], sizes = [16, 16, 4], strides = [1, 1, 1]} : vector<18x22x4xf32> to vector<16x16x4xf32>
    %23 = tpu.concatenate %2, %3, %4, %5, %6, %7, %8, %9, %10, %11, %12, %13, %14, %15, %16, %17 in 2 : vector<16x16x4xf32>, vector<16x16x4xf32>, vector<16x16x4xf32>, vector<16x16x4xf32>, vector<16x16x4xf32>, vector<16x16x4xf32>, vector<16x16x4xf32>, vector<16x16x4xf32>, vector<16x16x4xf32>, vector<16x16x4xf32>, vector<16x16x4xf32>, vector<16x16x4xf32>, vector<16x16x4xf32>, vector<16x16x4xf32>, vector<16x16x4xf32>, vector<16x16x4xf32> -> vector<16x16x64xf32>
    %24 = tpu.concatenate %18, %19, %20, %21, %22 in 2 : vector<16x16x4xf32>, vector<16x16x4xf32>, vector<16x16x4xf32>, vector<16x16x4xf32>, vector<16x16x4xf32> -> vector<16x16x20xf32>
    %25 = tpu.concatenate %23, %24 in 2 : vector<16x16x64xf32>, vector<16x16x20xf32> -> vector<16x16x84xf32>
    %26 = vector.shape_cast %25 : vector<16x16x84xf32> to vector<256x84xf32>
    %c0_3 = arith.constant 0 : index
    %c0_4 = arith.constant 0 : index
    %27 = vector.load %arg2[%c0_3, %c0_4] : memref<84x64xf32, #tpu.memory_space<vmem>>, vector<84x64xf32>
    %cst = arith.constant dense<0.000000e+00> : vector<256x64xf32>
    %28 = tpu.matmul %26, %27, %cst {dimension_numbers = #tpu.dot_dimension_numbers<[1], [0], [0], [1], [0, 0, 1, 1], [], []>} : vector<256x84xf32>, vector<84x64xf32>, vector<256x64xf32> -> vector<256x64xf32>
    %c0_5 = arith.constant 0 : index
    %c0_6 = arith.constant 0 : index
    %29 = vector.load %arg3[%c0_5, %c0_6] : memref<3x64xf32, #tpu.memory_space<vmem>>, vector<1x64xf32>
    %c1 = arith.constant 1 : index
    %c0_7 = arith.constant 0 : index
    %30 = vector.load %arg3[%c1, %c0_7] : memref<3x64xf32, #tpu.memory_space<vmem>>, vector<1x64xf32>
    %c2 = arith.constant 2 : index
    %c0_8 = arith.constant 0 : index
    %31 = vector.load %arg3[%c2, %c0_8] : memref<3x64xf32, #tpu.memory_space<vmem>>, vector<1x64xf32>
    %32 = vector.broadcast %29 : vector<1x64xf32> to vector<256x64xf32>
    %33 = arith.mulf %28, %32 : vector<256x64xf32>
    %34 = vector.broadcast %30 : vector<1x64xf32> to vector<256x64xf32>
    %35 = arith.addf %33, %34 : vector<256x64xf32>
    %cst_9 = arith.constant 0.000000e+00 : f32
    %36 = vector.broadcast %cst_9 : f32 to vector<256x64xf32>
    %37 = arith.cmpf ogt, %35, %36 : vector<256x64xf32>
    %38 = vector.broadcast %31 : vector<1x64xf32> to vector<256x64xf32>
    %39 = arith.mulf %38, %35 : vector<256x64xf32>
    %40 = arith.select %37, %35, %39 : vector<256x64xi1>, vector<256x64xf32>
    %41 = vector.shape_cast %40 : vector<256x64xf32> to vector<16x16x64xf32>
    %c0_10 = arith.constant 0 : index
    %c0_11 = arith.constant 0 : index
    %c0_12 = arith.constant 0 : index
    %c0_13 = arith.constant 0 : index
    %42 = vector.load %arg4[%c0_10, %c0_11, %c0_12, %c0_13] : memref<1x16x16x64xf32, #tpu.memory_space<vmem>>, vector<1x16x16x64xf32>
    %43 = vector.shape_cast %42 : vector<1x16x16x64xf32> to vector<16x16x64xf32>
    %44 = vector.shape_cast %41 : vector<16x16x64xf32> to vector<1x16x16x64xf32>
    tpu.vector_store %arg4[%c0_10, %c0_11, %c0_12, %c0_13], %44 {strides = array<i32>} : memref<1x16x16x64xf32, #tpu.memory_space<vmem>>, vector<1x16x16x64xf32>,
    %45 = tpu.iota {dimensions = array<i32: 1>} : vector<16x10x64xi32>
    %46 = vector.extract_strided_slice %41 {offsets = [0, 0, 0], sizes = [16, 10, 64], strides = [1, 1, 1]} : vector<16x16x64xf32> to vector<16x10x64xf32>
    %47 = vector.extract_strided_slice %41 {offsets = [0, 1, 0], sizes = [16, 10, 64], strides = [1, 1, 1]} : vector<16x16x64xf32> to vector<16x10x64xf32>
    %48 = arith.cmpf ogt, %47, %46 : vector<16x10x64xf32>
    %49 = arith.select %48, %47, %46 : vector<16x10x64xi1>, vector<16x10x64xf32>
    %c1_i32 = arith.constant 1 : i32
    %50 = vector.broadcast %c1_i32 : i32 to vector<16x10x64xi32>
    %51 = arith.addi %45, %50 : vector<16x10x64xi32>
    %52 = arith.select %48, %51, %45 : vector<16x10x64xi1>, vector<16x10x64xi32>
    %53 = vector.extract_strided_slice %41 {offsets = [0, 2, 0], sizes = [16, 10, 64], strides = [1, 1, 1]} : vector<16x16x64xf32> to vector<16x10x64xf32>
    %54 = arith.cmpf ogt, %53, %49 : vector<16x10x64xf32>
    %55 = arith.select %54, %53, %49 : vector<16x10x64xi1>, vector<16x10x64xf32>
    %c2_i32 = arith.constant 2 : i32
    %56 = vector.broadcast %c2_i32 : i32 to vector<16x10x64xi32>
    %57 = arith.addi %45, %56 : vector<16x10x64xi32>
    %58 = arith.select %54, %57, %52 : vector<16x10x64xi1>, vector<16x10x64xi32>
    %59 = vector.extract_strided_slice %41 {offsets = [0, 3, 0], sizes = [16, 10, 64], strides = [1, 1, 1]} : vector<16x16x64xf32> to vector<16x10x64xf32>
    %60 = arith.cmpf ogt, %59, %55 : vector<16x10x64xf32>
    %61 = arith.select %60, %59, %55 : vector<16x10x64xi1>, vector<16x10x64xf32>
    %c3_i32 = arith.constant 3 : i32
    %62 = vector.broadcast %c3_i32 : i32 to vector<16x10x64xi32>
    %63 = arith.addi %45, %62 : vector<16x10x64xi32>
    %64 = arith.select %60, %63, %58 : vector<16x10x64xi1>, vector<16x10x64xi32>
    %65 = vector.extract_strided_slice %41 {offsets = [0, 4, 0], sizes = [16, 10, 64], strides = [1, 1, 1]} : vector<16x16x64xf32> to vector<16x10x64xf32>
    %66 = arith.cmpf ogt, %65, %61 : vector<16x10x64xf32>
    %67 = arith.select %66, %65, %61 : vector<16x10x64xi1>, vector<16x10x64xf32>
    %c4_i32 = arith.constant 4 : i32
    %68 = vector.broadcast %c4_i32 : i32 to vector<16x10x64xi32>
    %69 = arith.addi %45, %68 : vector<16x10x64xi32>
    %70 = arith.select %66, %69, %64 : vector<16x10x64xi1>, vector<16x10x64xi32>
    %71 = vector.extract_strided_slice %41 {offsets = [0, 5, 0], sizes = [16, 10, 64], strides = [1, 1, 1]} : vector<16x16x64xf32> to vector<16x10x64xf32>
    %72 = arith.cmpf ogt, %71, %67 : vector<16x10x64xf32>
    %73 = arith.select %72, %71, %67 : vector<16x10x64xi1>, vector<16x10x64xf32>
    %c5_i32 = arith.constant 5 : i32
    %74 = vector.broadcast %c5_i32 : i32 to vector<16x10x64xi32>
    %75 = arith.addi %45, %74 : vector<16x10x64xi32>
    %76 = arith.select %72, %75, %70 : vector<16x10x64xi1>, vector<16x10x64xi32>
    %77 = vector.extract_strided_slice %41 {offsets = [0, 6, 0], sizes = [16, 10, 64], strides = [1, 1, 1]} : vector<16x16x64xf32> to vector<16x10x64xf32>
    %78 = arith.cmpf ogt, %77, %73 : vector<16x10x64xf32>
    %79 = arith.select %78, %77, %73 : vector<16x10x64xi1>, vector<16x10x64xf32>
    %c6_i32 = arith.constant 6 : i32
    %80 = vector.broadcast %c6_i32 : i32 to vector<16x10x64xi32>
    %81 = arith.addi %45, %80 : vector<16x10x64xi32>
    %82 = arith.select %78, %81, %76 : vector<16x10x64xi1>, vector<16x10x64xi32>
    %83 = vector.extract_strided_slice %79 {offsets = [0, 0, 0], sizes = [16, 1, 64], strides = [1, 1, 1]} : vector<16x10x64xf32> to vector<16x1x64xf32>
    %84 = vector.extract_strided_slice %79 {offsets = [0, 2, 0], sizes = [16, 1, 64], strides = [1, 1, 1]} : vector<16x10x64xf32> to vector<16x1x64xf32>
    %85 = vector.extract_strided_slice %79 {offsets = [0, 4, 0], sizes = [16, 1, 64], strides = [1, 1, 1]} : vector<16x10x64xf32> to vector<16x1x64xf32>
    %86 = vector.extract_strided_slice %79 {offsets = [0, 6, 0], sizes = [16, 1, 64], strides = [1, 1, 1]} : vector<16x10x64xf32> to vector<16x1x64xf32>
    %87 = vector.extract_strided_slice %79 {offsets = [0, 8, 0], sizes = [16, 1, 64], strides = [1, 1, 1]} : vector<16x10x64xf32> to vector<16x1x64xf32>
    %88 = tpu.concatenate %83, %84, %85, %86, %87 in 1 : vector<16x1x64xf32>, vector<16x1x64xf32>, vector<16x1x64xf32>, vector<16x1x64xf32>, vector<16x1x64xf32> -> vector<16x5x64xf32>
    %89 = vector.extract_strided_slice %82 {offsets = [0, 0, 0], sizes = [16, 1, 64], strides = [1, 1, 1]} : vector<16x10x64xi32> to vector<16x1x64xi32>
    %90 = vector.extract_strided_slice %82 {offsets = [0, 2, 0], sizes = [16, 1, 64], strides = [1, 1, 1]} : vector<16x10x64xi32> to vector<16x1x64xi32>
    %91 = vector.extract_strided_slice %82 {offsets = [0, 4, 0], sizes = [16, 1, 64], strides = [1, 1, 1]} : vector<16x10x64xi32> to vector<16x1x64xi32>
    %92 = vector.extract_strided_slice %82 {offsets = [0, 6, 0], sizes = [16, 1, 64], strides = [1, 1, 1]} : vector<16x10x64xi32> to vector<16x1x64xi32>
    %93 = vector.extract_strided_slice %82 {offsets = [0, 8, 0], sizes = [16, 1, 64], strides = [1, 1, 1]} : vector<16x10x64xi32> to vector<16x1x64xi32>
    %94 = tpu.concatenate %89, %90, %91, %92, %93 in 1 : vector<16x1x64xi32>, vector<16x1x64xi32>, vector<16x1x64xi32>, vector<16x1x64xi32>, vector<16x1x64xi32> -> vector<16x5x64xi32>
    %95 = vector.extract_strided_slice %88 {offsets = [0, 0, 0], sizes = [1, 5, 64], strides = [1, 1, 1]} : vector<16x5x64xf32> to vector<1x5x64xf32>
    %96 = vector.shape_cast %95 : vector<1x5x64xf32> to vector<5x64xf32>
    %97 = vector.extract_strided_slice %94 {offsets = [0, 0, 0], sizes = [1, 5, 64], strides = [1, 1, 1]} : vector<16x5x64xi32> to vector<1x5x64xi32>
    %98 = vector.shape_cast %97 : vector<1x5x64xi32> to vector<5x64xi32>
    %c0_i32 = arith.constant 0 : i32
    %99 = vector.broadcast %c0_i32 : i32 to vector<5x64xi32>
    %100 = arith.addi %99, %98 : vector<5x64xi32>
    %101 = vector.extract_strided_slice %88 {offsets = [1, 0, 0], sizes = [1, 5, 64], strides = [1, 1, 1]} : vector<16x5x64xf32> to vector<1x5x64xf32>
    %102 = vector.shape_cast %101 : vector<1x5x64xf32> to vector<5x64xf32>
    %103 = vector.extract_strided_slice %94 {offsets = [1, 0, 0], sizes = [1, 5, 64], strides = [1, 1, 1]} : vector<16x5x64xi32> to vector<1x5x64xi32>
    %104 = vector.shape_cast %103 : vector<1x5x64xi32> to vector<5x64xi32>
    %c16_i32 = arith.constant 16 : i32
    %105 = vector.broadcast %c16_i32 : i32 to vector<5x64xi32>
    %106 = arith.addi %105, %104 : vector<5x64xi32>
    %107 = arith.cmpf ogt, %102, %96 : vector<5x64xf32>
    %108 = arith.select %107, %102, %96 : vector<5x64xi1>, vector<5x64xf32>
    %109 = arith.select %107, %106, %100 : vector<5x64xi1>, vector<5x64xi32>
    %110 = vector.extract_strided_slice %88 {offsets = [2, 0, 0], sizes = [1, 5, 64], strides = [1, 1, 1]} : vector<16x5x64xf32> to vector<1x5x64xf32>
    %111 = vector.shape_cast %110 : vector<1x5x64xf32> to vector<5x64xf32>
    %112 = vector.extract_strided_slice %94 {offsets = [2, 0, 0], sizes = [1, 5, 64], strides = [1, 1, 1]} : vector<16x5x64xi32> to vector<1x5x64xi32>
    %113 = vector.shape_cast %112 : vector<1x5x64xi32> to vector<5x64xi32>
    %c32_i32 = arith.constant 32 : i32
    %114 = vector.broadcast %c32_i32 : i32 to vector<5x64xi32>
    %115 = arith.addi %114, %113 : vector<5x64xi32>
    %116 = arith.cmpf ogt, %111, %108 : vector<5x64xf32>
    %117 = arith.select %116, %111, %108 : vector<5x64xi1>, vector<5x64xf32>
    %118 = arith.select %116, %115, %109 : vector<5x64xi1>, vector<5x64xi32>
    %119 = vector.extract_strided_slice %88 {offsets = [2, 0, 0], sizes = [1, 5, 64], strides = [1, 1, 1]} : vector<16x5x64xf32> to vector<1x5x64xf32>
    %120 = vector.shape_cast %119 : vector<1x5x64xf32> to vector<5x64xf32>
    %121 = vector.extract_strided_slice %94 {offsets = [2, 0, 0], sizes = [1, 5, 64], strides = [1, 1, 1]} : vector<16x5x64xi32> to vector<1x5x64xi32>
    %122 = vector.shape_cast %121 : vector<1x5x64xi32> to vector<5x64xi32>
    %c32_i32_14 = arith.constant 32 : i32
    %123 = vector.broadcast %c32_i32_14 : i32 to vector<5x64xi32>
    %124 = arith.addi %123, %122 : vector<5x64xi32>
    %125 = vector.extract_strided_slice %88 {offsets = [3, 0, 0], sizes = [1, 5, 64], strides = [1, 1, 1]} : vector<16x5x64xf32> to vector<1x5x64xf32>
    %126 = vector.shape_cast %125 : vector<1x5x64xf32> to vector<5x64xf32>
    %127 = vector.extract_strided_slice %94 {offsets = [3, 0, 0], sizes = [1, 5, 64], strides = [1, 1, 1]} : vector<16x5x64xi32> to vector<1x5x64xi32>
    %128 = vector.shape_cast %127 : vector<1x5x64xi32> to vector<5x64xi32>
    %c48_i32 = arith.constant 48 : i32
    %129 = vector.broadcast %c48_i32 : i32 to vector<5x64xi32>
    %130 = arith.addi %129, %128 : vector<5x64xi32>
    %131 = arith.cmpf ogt, %126, %120 : vector<5x64xf32>
    %132 = arith.select %131, %126, %120 : vector<5x64xi1>, vector<5x64xf32>
    %133 = arith.select %131, %130, %124 : vector<5x64xi1>, vector<5x64xi32>
    %134 = vector.extract_strided_slice %88 {offsets = [4, 0, 0], sizes = [1, 5, 64], strides = [1, 1, 1]} : vector<16x5x64xf32> to vector<1x5x64xf32>
    %135 = vector.shape_cast %134 : vector<1x5x64xf32> to vector<5x64xf32>
    %136 = vector.extract_strided_slice %94 {offsets = [4, 0, 0], sizes = [1, 5, 64], strides = [1, 1, 1]} : vector<16x5x64xi32> to vector<1x5x64xi32>
    %137 = vector.shape_cast %136 : vector<1x5x64xi32> to vector<5x64xi32>
    %c64_i32 = arith.constant 64 : i32
    %138 = vector.broadcast %c64_i32 : i32 to vector<5x64xi32>
    %139 = arith.addi %138, %137 : vector<5x64xi32>
    %140 = arith.cmpf ogt, %135, %132 : vector<5x64xf32>
    %141 = arith.select %140, %135, %132 : vector<5x64xi1>, vector<5x64xf32>
    %142 = arith.select %140, %139, %133 : vector<5x64xi1>, vector<5x64xi32>
    %143 = vector.extract_strided_slice %88 {offsets = [4, 0, 0], sizes = [1, 5, 64], strides = [1, 1, 1]} : vector<16x5x64xf32> to vector<1x5x64xf32>
    %144 = vector.shape_cast %143 : vector<1x5x64xf32> to vector<5x64xf32>
    %145 = vector.extract_strided_slice %94 {offsets = [4, 0, 0], sizes = [1, 5, 64], strides = [1, 1, 1]} : vector<16x5x64xi32> to vector<1x5x64xi32>
    %146 = vector.shape_cast %145 : vector<1x5x64xi32> to vector<5x64xi32>
    %c64_i32_15 = arith.constant 64 : i32
    %147 = vector.broadcast %c64_i32_15 : i32 to vector<5x64xi32>
    %148 = arith.addi %147, %146 : vector<5x64xi32>
    %149 = vector.extract_strided_slice %88 {offsets = [5, 0, 0], sizes = [1, 5, 64], strides = [1, 1, 1]} : vector<16x5x64xf32> to vector<1x5x64xf32>
    %150 = vector.shape_cast %149 : vector<1x5x64xf32> to vector<5x64xf32>
    %151 = vector.extract_strided_slice %94 {offsets = [5, 0, 0], sizes = [1, 5, 64], strides = [1, 1, 1]} : vector<16x5x64xi32> to vector<1x5x64xi32>
    %152 = vector.shape_cast %151 : vector<1x5x64xi32> to vector<5x64xi32>
    %c80_i32 = arith.constant 80 : i32
    %153 = vector.broadcast %c80_i32 : i32 to vector<5x64xi32>
    %154 = arith.addi %153, %152 : vector<5x64xi32>
    %155 = arith.cmpf ogt, %150, %144 : vector<5x64xf32>
    %156 = arith.select %155, %150, %144 : vector<5x64xi1>, vector<5x64xf32>
    %157 = arith.select %155, %154, %148 : vector<5x64xi1>, vector<5x64xi32>
    %158 = vector.extract_strided_slice %88 {offsets = [6, 0, 0], sizes = [1, 5, 64], strides = [1, 1, 1]} : vector<16x5x64xf32> to vector<1x5x64xf32>
    %159 = vector.shape_cast %158 : vector<1x5x64xf32> to vector<5x64xf32>
    %160 = vector.extract_strided_slice %94 {offsets = [6, 0, 0], sizes = [1, 5, 64], strides = [1, 1, 1]} : vector<16x5x64xi32> to vector<1x5x64xi32>
    %161 = vector.shape_cast %160 : vector<1x5x64xi32> to vector<5x64xi32>
    %c96_i32 = arith.constant 96 : i32
    %162 = vector.broadcast %c96_i32 : i32 to vector<5x64xi32>
    %163 = arith.addi %162, %161 : vector<5x64xi32>
    %164 = arith.cmpf ogt, %159, %156 : vector<5x64xf32>
    %165 = arith.select %164, %159, %156 : vector<5x64xi1>, vector<5x64xf32>
    %166 = arith.select %164, %163, %157 : vector<5x64xi1>, vector<5x64xi32>
    %167 = vector.extract_strided_slice %88 {offsets = [6, 0, 0], sizes = [1, 5, 64], strides = [1, 1, 1]} : vector<16x5x64xf32> to vector<1x5x64xf32>
    %168 = vector.shape_cast %167 : vector<1x5x64xf32> to vector<5x64xf32>
    %169 = vector.extract_strided_slice %94 {offsets = [6, 0, 0], sizes = [1, 5, 64], strides = [1, 1, 1]} : vector<16x5x64xi32> to vector<1x5x64xi32>
    %170 = vector.shape_cast %169 : vector<1x5x64xi32> to vector<5x64xi32>
    %c96_i32_16 = arith.constant 96 : i32
    %171 = vector.broadcast %c96_i32_16 : i32 to vector<5x64xi32>
    %172 = arith.addi %171, %170 : vector<5x64xi32>
    %173 = vector.extract_strided_slice %88 {offsets = [7, 0, 0], sizes = [1, 5, 64], strides = [1, 1, 1]} : vector<16x5x64xf32> to vector<1x5x64xf32>
    %174 = vector.shape_cast %173 : vector<1x5x64xf32> to vector<5x64xf32>
    %175 = vector.extract_strided_slice %94 {offsets = [7, 0, 0], sizes = [1, 5, 64], strides = [1, 1, 1]} : vector<16x5x64xi32> to vector<1x5x64xi32>
    %176 = vector.shape_cast %175 : vector<1x5x64xi32> to vector<5x64xi32>
    %c112_i32 = arith.constant 112 : i32
    %177 = vector.broadcast %c112_i32 : i32 to vector<5x64xi32>
    %178 = arith.addi %177, %176 : vector<5x64xi32>
    %179 = arith.cmpf ogt, %174, %168 : vector<5x64xf32>
    %180 = arith.select %179, %174, %168 : vector<5x64xi1>, vector<5x64xf32>
    %181 = arith.select %179, %178, %172 : vector<5x64xi1>, vector<5x64xi32>
    %182 = vector.extract_strided_slice %88 {offsets = [8, 0, 0], sizes = [1, 5, 64], strides = [1, 1, 1]} : vector<16x5x64xf32> to vector<1x5x64xf32>
    %183 = vector.shape_cast %182 : vector<1x5x64xf32> to vector<5x64xf32>
    %184 = vector.extract_strided_slice %94 {offsets = [8, 0, 0], sizes = [1, 5, 64], strides = [1, 1, 1]} : vector<16x5x64xi32> to vector<1x5x64xi32>
    %185 = vector.shape_cast %184 : vector<1x5x64xi32> to vector<5x64xi32>
    %c128_i32 = arith.constant 128 : i32
    %186 = vector.broadcast %c128_i32 : i32 to vector<5x64xi32>
    %187 = arith.addi %186, %185 : vector<5x64xi32>
    %188 = arith.cmpf ogt, %183, %180 : vector<5x64xf32>
    %189 = arith.select %188, %183, %180 : vector<5x64xi1>, vector<5x64xf32>
    %190 = arith.select %188, %187, %181 : vector<5x64xi1>, vector<5x64xi32>
    %191 = vector.extract_strided_slice %88 {offsets = [8, 0, 0], sizes = [1, 5, 64], strides = [1, 1, 1]} : vector<16x5x64xf32> to vector<1x5x64xf32>
    %192 = vector.shape_cast %191 : vector<1x5x64xf32> to vector<5x64xf32>
    %193 = vector.extract_strided_slice %94 {offsets = [8, 0, 0], sizes = [1, 5, 64], strides = [1, 1, 1]} : vector<16x5x64xi32> to vector<1x5x64xi32>
    %194 = vector.shape_cast %193 : vector<1x5x64xi32> to vector<5x64xi32>
    %c128_i32_17 = arith.constant 128 : i32
    %195 = vector.broadcast %c128_i32_17 : i32 to vector<5x64xi32>
    %196 = arith.addi %195, %194 : vector<5x64xi32>
    %197 = vector.extract_strided_slice %88 {offsets = [9, 0, 0], sizes = [1, 5, 64], strides = [1, 1, 1]} : vector<16x5x64xf32> to vector<1x5x64xf32>
    %198 = vector.shape_cast %197 : vector<1x5x64xf32> to vector<5x64xf32>
    %199 = vector.extract_strided_slice %94 {offsets = [9, 0, 0], sizes = [1, 5, 64], strides = [1, 1, 1]} : vector<16x5x64xi32> to vector<1x5x64xi32>
    %200 = vector.shape_cast %199 : vector<1x5x64xi32> to vector<5x64xi32>
    %c144_i32 = arith.constant 144 : i32
    %201 = vector.broadcast %c144_i32 : i32 to vector<5x64xi32>
    %202 = arith.addi %201, %200 : vector<5x64xi32>
    %203 = arith.cmpf ogt, %198, %192 : vector<5x64xf32>
    %204 = arith.select %203, %198, %192 : vector<5x64xi1>, vector<5x64xf32>
    %205 = arith.select %203, %202, %196 : vector<5x64xi1>, vector<5x64xi32>
    %206 = vector.extract_strided_slice %88 {offsets = [10, 0, 0], sizes = [1, 5, 64], strides = [1, 1, 1]} : vector<16x5x64xf32> to vector<1x5x64xf32>
    %207 = vector.shape_cast %206 : vector<1x5x64xf32> to vector<5x64xf32>
    %208 = vector.extract_strided_slice %94 {offsets = [10, 0, 0], sizes = [1, 5, 64], strides = [1, 1, 1]} : vector<16x5x64xi32> to vector<1x5x64xi32>
    %209 = vector.shape_cast %208 : vector<1x5x64xi32> to vector<5x64xi32>
    %c160_i32 = arith.constant 160 : i32
    %210 = vector.broadcast %c160_i32 : i32 to vector<5x64xi32>
    %211 = arith.addi %210, %209 : vector<5x64xi32>
    %212 = arith.cmpf ogt, %207, %204 : vector<5x64xf32>
    %213 = arith.select %212, %207, %204 : vector<5x64xi1>, vector<5x64xf32>
    %214 = arith.select %212, %211, %205 : vector<5x64xi1>, vector<5x64xi32>
    %215 = vector.extract_strided_slice %88 {offsets = [10, 0, 0], sizes = [1, 5, 64], strides = [1, 1, 1]} : vector<16x5x64xf32> to vector<1x5x64xf32>
    %216 = vector.shape_cast %215 : vector<1x5x64xf32> to vector<5x64xf32>
    %217 = vector.extract_strided_slice %94 {offsets = [10, 0, 0], sizes = [1, 5, 64], strides = [1, 1, 1]} : vector<16x5x64xi32> to vector<1x5x64xi32>
    %218 = vector.shape_cast %217 : vector<1x5x64xi32> to vector<5x64xi32>
    %c160_i32_18 = arith.constant 160 : i32
    %219 = vector.broadcast %c160_i32_18 : i32 to vector<5x64xi32>
    %220 = arith.addi %219, %218 : vector<5x64xi32>
    %221 = vector.extract_strided_slice %88 {offsets = [11, 0, 0], sizes = [1, 5, 64], strides = [1, 1, 1]} : vector<16x5x64xf32> to vector<1x5x64xf32>
    %222 = vector.shape_cast %221 : vector<1x5x64xf32> to vector<5x64xf32>
    %223 = vector.extract_strided_slice %94 {offsets = [11, 0, 0], sizes = [1, 5, 64], strides = [1, 1, 1]} : vector<16x5x64xi32> to vector<1x5x64xi32>
    %224 = vector.shape_cast %223 : vector<1x5x64xi32> to vector<5x64xi32>
    %c176_i32 = arith.constant 176 : i32
    %225 = vector.broadcast %c176_i32 : i32 to vector<5x64xi32>
    %226 = arith.addi %225, %224 : vector<5x64xi32>
    %227 = arith.cmpf ogt, %222, %216 : vector<5x64xf32>
    %228 = arith.select %227, %222, %216 : vector<5x64xi1>, vector<5x64xf32>
    %229 = arith.select %227, %226, %220 : vector<5x64xi1>, vector<5x64xi32>
    %230 = vector.extract_strided_slice %88 {offsets = [12, 0, 0], sizes = [1, 5, 64], strides = [1, 1, 1]} : vector<16x5x64xf32> to vector<1x5x64xf32>
    %231 = vector.shape_cast %230 : vector<1x5x64xf32> to vector<5x64xf32>
    %232 = vector.extract_strided_slice %94 {offsets = [12, 0, 0], sizes = [1, 5, 64], strides = [1, 1, 1]} : vector<16x5x64xi32> to vector<1x5x64xi32>
    %233 = vector.shape_cast %232 : vector<1x5x64xi32> to vector<5x64xi32>
    %c192_i32 = arith.constant 192 : i32
    %234 = vector.broadcast %c192_i32 : i32 to vector<5x64xi32>
    %235 = arith.addi %234, %233 : vector<5x64xi32>
    %236 = arith.cmpf ogt, %231, %228 : vector<5x64xf32>
    %237 = arith.select %236, %231, %228 : vector<5x64xi1>, vector<5x64xf32>
    %238 = arith.select %236, %235, %229 : vector<5x64xi1>, vector<5x64xi32>
    %239 = vector.extract_strided_slice %88 {offsets = [12, 0, 0], sizes = [1, 5, 64], strides = [1, 1, 1]} : vector<16x5x64xf32> to vector<1x5x64xf32>
    %240 = vector.shape_cast %239 : vector<1x5x64xf32> to vector<5x64xf32>
    %241 = vector.extract_strided_slice %94 {offsets = [12, 0, 0], sizes = [1, 5, 64], strides = [1, 1, 1]} : vector<16x5x64xi32> to vector<1x5x64xi32>
    %242 = vector.shape_cast %241 : vector<1x5x64xi32> to vector<5x64xi32>
    %c192_i32_19 = arith.constant 192 : i32
    %243 = vector.broadcast %c192_i32_19 : i32 to vector<5x64xi32>
    %244 = arith.addi %243, %242 : vector<5x64xi32>
    %245 = vector.extract_strided_slice %88 {offsets = [13, 0, 0], sizes = [1, 5, 64], strides = [1, 1, 1]} : vector<16x5x64xf32> to vector<1x5x64xf32>
    %246 = vector.shape_cast %245 : vector<1x5x64xf32> to vector<5x64xf32>
    %247 = vector.extract_strided_slice %94 {offsets = [13, 0, 0], sizes = [1, 5, 64], strides = [1, 1, 1]} : vector<16x5x64xi32> to vector<1x5x64xi32>
    %248 = vector.shape_cast %247 : vector<1x5x64xi32> to vector<5x64xi32>
    %c208_i32 = arith.constant 208 : i32
    %249 = vector.broadcast %c208_i32 : i32 to vector<5x64xi32>
    %250 = arith.addi %249, %248 : vector<5x64xi32>
    %251 = arith.cmpf ogt, %246, %240 : vector<5x64xf32>
    %252 = arith.select %251, %246, %240 : vector<5x64xi1>, vector<5x64xf32>
    %253 = arith.select %251, %250, %244 : vector<5x64xi1>, vector<5x64xi32>
    %254 = vector.extract_strided_slice %88 {offsets = [14, 0, 0], sizes = [1, 5, 64], strides = [1, 1, 1]} : vector<16x5x64xf32> to vector<1x5x64xf32>
    %255 = vector.shape_cast %254 : vector<1x5x64xf32> to vector<5x64xf32>
    %256 = vector.extract_strided_slice %94 {offsets = [14, 0, 0], sizes = [1, 5, 64], strides = [1, 1, 1]} : vector<16x5x64xi32> to vector<1x5x64xi32>
    %257 = vector.shape_cast %256 : vector<1x5x64xi32> to vector<5x64xi32>
    %c224_i32 = arith.constant 224 : i32
    %258 = vector.broadcast %c224_i32 : i32 to vector<5x64xi32>
    %259 = arith.addi %258, %257 : vector<5x64xi32>
    %260 = arith.cmpf ogt, %255, %252 : vector<5x64xf32>
    %261 = arith.select %260, %255, %252 : vector<5x64xi1>, vector<5x64xf32>
    %262 = arith.select %260, %259, %253 : vector<5x64xi1>, vector<5x64xi32>
    %263 = vector.shape_cast %117 : vector<5x64xf32> to vector<1x5x64xf32>
    %264 = vector.shape_cast %141 : vector<5x64xf32> to vector<1x5x64xf32>
    %265 = vector.shape_cast %165 : vector<5x64xf32> to vector<1x5x64xf32>
    %266 = vector.shape_cast %189 : vector<5x64xf32> to vector<1x5x64xf32>
    %267 = vector.shape_cast %213 : vector<5x64xf32> to vector<1x5x64xf32>
    %268 = vector.shape_cast %237 : vector<5x64xf32> to vector<1x5x64xf32>
    %269 = vector.shape_cast %261 : vector<5x64xf32> to vector<1x5x64xf32>
    %270 = tpu.concatenate %263, %264, %265, %266, %267, %268, %269 in 0 : vector<1x5x64xf32>, vector<1x5x64xf32>, vector<1x5x64xf32>, vector<1x5x64xf32>, vector<1x5x64xf32>, vector<1x5x64xf32>, vector<1x5x64xf32> -> vector<7x5x64xf32>
    %c0_20 = arith.constant 0 : index
    %c0_21 = arith.constant 0 : index
    %c0_22 = arith.constant 0 : index
    %c0_23 = arith.constant 0 : index
    %271 = vector.load %arg5[%c0_20, %c0_21, %c0_22, %c0_23] : memref<1x7x5x64xf32, #tpu.memory_space<vmem>>, vector<1x7x5x64xf32>
    %272 = vector.shape_cast %271 : vector<1x7x5x64xf32> to vector<7x5x64xf32>
    %273 = vector.shape_cast %270 : vector<7x5x64xf32> to vector<1x7x5x64xf32>
    tpu.vector_store %arg5[%c0_20, %c0_21, %c0_22, %c0_23], %273 {strides = array<i32>} : memref<1x7x5x64xf32, #tpu.memory_space<vmem>>, vector<1x7x5x64xf32>,
    %274 = vector.shape_cast %118 : vector<5x64xi32> to vector<1x5x64xi32>
    %275 = vector.shape_cast %142 : vector<5x64xi32> to vector<1x5x64xi32>
    %276 = vector.shape_cast %166 : vector<5x64xi32> to vector<1x5x64xi32>
    %277 = vector.shape_cast %190 : vector<5x64xi32> to vector<1x5x64xi32>
    %278 = vector.shape_cast %214 : vector<5x64xi32> to vector<1x5x64xi32>
    %279 = vector.shape_cast %238 : vector<5x64xi32> to vector<1x5x64xi32>
    %280 = vector.shape_cast %262 : vector<5x64xi32> to vector<1x5x64xi32>
    %281 = tpu.concatenate %274, %275, %276, %277, %278, %279, %280 in 0 : vector<1x5x64xi32>, vector<1x5x64xi32>, vector<1x5x64xi32>, vector<1x5x64xi32>, vector<1x5x64xi32>, vector<1x5x64xi32>, vector<1x5x64xi32> -> vector<7x5x64xi32>
    %c0_24 = arith.constant 0 : index
    %c0_25 = arith.constant 0 : index
    %c0_26 = arith.constant 0 : index
    %c0_27 = arith.constant 0 : index
    %282 = vector.load %arg6[%c0_24, %c0_25, %c0_26, %c0_27] : memref<1x7x5x64xi32, #tpu.memory_space<vmem>>, vector<1x7x5x64xi32>
    %283 = vector.shape_cast %282 : vector<1x7x5x64xi32> to vector<7x5x64xi32>
    %284 = vector.shape_cast %281 : vector<7x5x64xi32> to vector<1x7x5x64xi32>
    tpu.vector_store %arg6[%c0_24, %c0_25, %c0_26, %c0_27], %284 {strides = array<i32>} : memref<1x7x5x64xi32, #tpu.memory_space<vmem>>, vector<1x7x5x64xi32>,
    return
  }
  func.func @transform_0(%arg0: i32) -> (i32, i32, i32, i32) {
    %c0_i32 = arith.constant 0 : i32
    %c0_i32_0 = arith.constant 0 : i32
    %c0_i32_1 = arith.constant 0 : i32
    %c0_i32_2 = arith.constant 0 : i32
    return %arg0, %c0_i32, %c0_i32_0, %c0_i32_1 : i32, i32, i32, i32
  }
  func.func @transform_1(%arg0: i32) -> (i32, i32) {
    %c0_i32 = arith.constant 0 : i32
    %c0_i32_0 = arith.constant 0 : i32
    %c0_i32_1 = arith.constant 0 : i32
    return %c0_i32, %c0_i32_0 : i32, i32
  }
  func.func @transform_2(%arg0: i32) -> (i32, i32) {
    %c0_i32 = arith.constant 0 : i32
    %c0_i32_0 = arith.constant 0 : i32
    %c0_i32_1 = arith.constant 0 : i32
    return %c0_i32, %c0_i32_0 : i32, i32
  }
  func.func @transform_3(%arg0: i32) -> (i32, i32, i32, i32) {
    %c0_i32 = arith.constant 0 : i32
    %c0_i32_0 = arith.constant 0 : i32
    %c0_i32_1 = arith.constant 0 : i32
    %c0_i32_2 = arith.constant 0 : i32
    return %arg0, %c0_i32, %c0_i32_0, %c0_i32_1 : i32, i32, i32, i32
  }
  func.func @transform_4(%arg0: i32) -> (i32, i32, i32, i32) {
    %c0_i32 = arith.constant 0 : i32
    %c0_i32_0 = arith.constant 0 : i32
    %c0_i32_1 = arith.constant 0 : i32
    %c0_i32_2 = arith.constant 0 : i32
    return %arg0, %c0_i32, %c0_i32_0, %c0_i32_1 : i32, i32, i32, i32
  }
  func.func @transform_5(%arg0: i32) -> (i32, i32, i32, i32) {
    %c0_i32 = arith.constant 0 : i32
    %c0_i32_0 = arith.constant 0 : i32
    %c0_i32_1 = arith.constant 0 : i32
    %c0_i32_2 = arith.constant 0 : i32
    return %arg0, %c0_i32, %c0_i32_0, %c0_i32_1 : i32, i32, i32, i32
  }
}

</mosaic_0001>

<llo_original>
// kernel: encoder_block_forward.1
$region0: #{encoder_block_forward.1}
  #allocation0 [shape = 'u32[]', space=smem, size = 0x4, offset = 0x4, fixed_abs, tag = 'smem constant byte address 0x4 - core index']
  #allocation1 [shape = 'u32[144,128]{1,0:T(1,128)}', space=vmem, size = 0x12000, scoped, tag = 'internal scratch']
  %s0 = inlined_call_operand.vmem [shape: f32[2,18,22,4], index: 0, kind: input, shape index: {}]
  %s1 = inlined_call_operand.vmem [shape: f32[84,64], index: 1, kind: input, shape index: {}]
  %s2 = inlined_call_operand.vmem [shape: f32[3,64], index: 2, kind: input, shape index: {}]
  %s3 = inlined_call_operand.hbm [shape: f32[2,16,16,64], index: 3, kind: output, shape index: {0}]
  %s4 = inlined_call_operand.vmem [shape: f32[2,7,5,64], index: 4, kind: output, shape index: {1}]
  %s5 = inlined_call_operand.vmem [shape: s32[2,7,5,64], index: 5, kind: output, shape index: {2}]
  %6 = xla_tuple %s3, %s4, %s5
  %s7 = sld [smem:[#allocation0]]
  $region61: #{encoder_block_forward.1} parent=0
    _
  %s9 = ssub.s32 1, %s7
  %s10 = scalar_select 0, %s9, %s7
  $region1: #{encoder_block_forward.1} parent=0
    #allocation2 [shape = 'u8[262144]{0}', space=vmem, size = 0x40000, scoped, tag = 'output window, operand 0']
    #allocation3 [shape = 's32[2]{0}', space=sflag, size = 0x8, scoped, tag = 'scoped memory for encoder_block_forward.1']
    %11 = vsyncpa [#allocation3], 0
    %s12 = scalar_lea.sflag [#allocation3], 1
    %13 = vsyncpa %s12, 0
    loop: start=0, step=1, limit=4
    $region2: #{encoder_block_forward.1} parent=1 // loop_pre_header
      _
    $region3: #{encoder_block_forward.1} parent=1 // loop_header
      %s15 = sphi 0, %s19
      %p16 = scmp.ge.s32.totalorder %s15, 4
      %s25 = sphi 0, %s27
      %s28 = sphi 0, %s25
      %s29 = sphi 0, %s28
      %s45 = sphi 0, %s29
      %s49 = sphi 0, %s49
      %s51 = sphi 0, %s49
      %s52 = sphi 0, %s51
      %s66 = sphi 0, %s52
      %s70 = sphi 0, %s70
      %s72 = sphi 0, %s70
      %s73 = sphi 0, %s72
      %s87 = sphi 0, %s73
      %s93 = sphi 0, %s95
      %s96 = sphi 0, %s93
      %s97 = sphi 0, %s96
      %s113 = sphi 0, %s97
      %s119 = sphi 0, %s121
      %s122 = sphi 0, %s119
      %s123 = sphi 0, %s122
      %s139 = sphi 0, %s123
      %s145 = sphi 0, %s147
      %s148 = sphi 0, %s145
      %s149 = sphi 0, %s148
      %s165 = sphi 0, %s149
    $region4: #{encoder_block_forward.1} parent=1 // loop_header_branch
      %18 = sbr.rel (%p16) target = $region8
    $region5: #{encoder_block_forward.1} parent=1 // loop_body
      %s20 = ssub.s32 %s15, 1
      %s21 = ssub.s32 %s15, 2
      %s22 = sadd.s32 %s15, 1
      %s23 = ssub.s32 %s15, %s22
      %p24 = scmp.eq.s32.totalorder %s23, 0
      %s26 = sadd.s32 %s25, 1
      %s27 = scalar_select %p24, %s25, %s26
      %p30 = pneg %p24
      %p31 = scmp.eq.s32.totalorder %s15, 1
      %p32 = por %p30, %p31
      %p33 = scmp.ne.s32.totalorder %s25, %s28
      %p34 = scmp.eq.s32.totalorder %s15, 0
      %p35 = por %p33, %p34
      %p36 = scmp.ne.s32.totalorder %s25, %s28
      %p37 = scmp.eq.s32.totalorder %s20, 1
      %p38 = por %p36, %p37
      %p39 = scmp.ne.s32.totalorder %s28, %s29
      %p40 = scmp.eq.s32.totalorder %s20, 0
      %p41 = por %p39, %p40
      %p42 = scmp.ne.s32.totalorder %s28, %s29
      %p43 = scmp.eq.s32.totalorder %s21, 1
      %p44 = por %p42, %p43
      %p46 = scmp.ne.s32.totalorder %s29, %s45
      %p47 = scmp.eq.s32.totalorder %s21, 0
      %p48 = por %p46, %p47
      %s50 = sadd.s32 %s49, 1
      %p53 = scmp.eq.s32.totalorder %s15, 1
      %p54 = scmp.ne.s32.totalorder %s49, %s51
      %p55 = scmp.eq.s32.totalorder %s15, 0
      %p56 = por %p54, %p55
      %p57 = scmp.ne.s32.totalorder %s49, %s51
      %p58 = scmp.eq.s32.totalorder %s20, 1
      %p59 = por %p57, %p58
      %p60 = scmp.ne.s32.totalorder %s51, %s52
      %p61 = scmp.eq.s32.totalorder %s20, 0
      %p62 = por %p60, %p61
      %p63 = scmp.ne.s32.totalorder %s51, %s52
      %p64 = scmp.eq.s32.totalorder %s21, 1
      %p65 = por %p63, %p64
      %p67 = scmp.ne.s32.totalorder %s52, %s66
      %p68 = scmp.eq.s32.totalorder %s21, 0
      %p69 = por %p67, %p68
      %s71 = sadd.s32 %s70, 1
      %p74 = scmp.eq.s32.totalorder %s15, 1
      %p75 = scmp.ne.s32.totalorder %s70, %s72
      %p76 = scmp.eq.s32.totalorder %s15, 0
      %p77 = por %p75, %p76
      %p78 = scmp.ne.s32.totalorder %s70, %s72
      %p79 = scmp.eq.s32.totalorder %s20, 1
      %p80 = por %p78, %p79
      %p81 = scmp.ne.s32.totalorder %s72, %s73
      %p82 = scmp.eq.s32.totalorder %s20, 0
      %p83 = por %p81, %p82
      %p84 = scmp.ne.s32.totalorder %s72, %s73
      %p85 = scmp.eq.s32.totalorder %s21, 1
      %p86 = por %p84, %p85
      %p88 = scmp.ne.s32.totalorder %s73, %s87
      %p89 = scmp.eq.s32.totalorder %s21, 0
      %p90 = por %p88, %p89
      %s91 = ssub.s32 %s15, %s22
      %p92 = scmp.eq.s32.totalorder %s91, 0
      %s94 = sadd.s32 %s93, 1
      %s95 = scalar_select %p92, %s93, %s94
      %p98 = pneg %p92
      %p99 = scmp.eq.s32.totalorder %s15, 1
      %p100 = por %p98, %p99
      %p101 = scmp.ne.s32.totalorder %s93, %s96
      %p102 = scmp.eq.s32.totalorder %s15, 0
      %p103 = por %p101, %p102
      %p104 = scmp.ne.s32.totalorder %s93, %s96
      %p105 = scmp.eq.s32.totalorder %s20, 1
      %p106 = por %p104, %p105
      %p107 = scmp.ne.s32.totalorder %s96, %s97
      %p108 = scmp.eq.s32.totalorder %s20, 0
      %p109 = por %p107, %p108
      %p110 = scmp.ne.s32.totalorder %s96, %s97
      %p111 = scmp.eq.s32.totalorder %s21, 1
      %p112 = por %p110, %p111
      %p114 = scmp.ne.s32.totalorder %s97, %s113
      %p115 = scmp.eq.s32.totalorder %s21, 0
      %p116 = por %p114, %p115
      %s117 = ssub.s32 %s15, %s22
      %p118 = scmp.eq.s32.totalorder %s117, 0
      %s120 = sadd.s32 %s119, 1
      %s121 = scalar_select %p118, %s119, %s120
      %p124 = pneg %p118
      %p125 = scmp.eq.s32.totalorder %s15, 1
      %p126 = por %p124, %p125
      %p127 = scmp.ne.s32.totalorder %s119, %s122
      %p128 = scmp.eq.s32.totalorder %s15, 0
      %p129 = por %p127, %p128
      %p130 = scmp.ne.s32.totalorder %s119, %s122
      %p131 = scmp.eq.s32.totalorder %s20, 1
      %p132 = por %p130, %p131
      %p133 = scmp.ne.s32.totalorder %s122, %s123
      %p134 = scmp.eq.s32.totalorder %s20, 0
      %p135 = por %p133, %p134
      %p136 = scmp.ne.s32.totalorder %s122, %s123
      %p137 = scmp.eq.s32.totalorder %s21, 1
      %p138 = por %p136, %p137
      %p140 = scmp.ne.s32.totalorder %s123, %s139
      %p141 = scmp.eq.s32.totalorder %s21, 0
      %p142 = por %p140, %p141
      %s143 = ssub.s32 %s15, %s22
      %p144 = scmp.eq.s32.totalorder %s143, 0
      %s146 = sadd.s32 %s145, 1
      %s147 = scalar_select %p144, %s145, %s146
      %p150 = pneg %p144
      %p151 = scmp.eq.s32.totalorder %s15, 1
      %p152 = por %p150, %p151
      %p153 = scmp.ne.s32.totalorder %s145, %s148
      %p154 = scmp.eq.s32.totalorder %s15, 0
      %p155 = por %p153, %p154
      %p156 = scmp.ne.s32.totalorder %s145, %s148
      %p157 = scmp.eq.s32.totalorder %s20, 1
      %p158 = por %p156, %p157
      %p159 = scmp.ne.s32.totalorder %s148, %s149
      %p160 = scmp.eq.s32.totalorder %s20, 0
      %p161 = por %p159, %p160
      %p162 = scmp.ne.s32.totalorder %s148, %s149
      %p163 = scmp.eq.s32.totalorder %s21, 1
      %p164 = por %p162, %p163
      %p166 = scmp.ne.s32.totalorder %s149, %s165
      %p167 = scmp.eq.s32.totalorder %s21, 0
      %p168 = por %p166, %p167
      %p169 = scmp.le.s32.totalorder 1, %s15
      %p170 = scmp.lt.s32.totalorder %s15, 3
      %p171 = pnand %p169, %p170
      %p172 = pneg %p171
      // Predicated region
      $region9: #{encoder_block_forward.1} parent=5 // pred_check
        _
      $region10: #{encoder_block_forward.1} parent=5 // pred_check_branch
        %174 = sbr.rel (%p171) target = $region12
      $region11: #{encoder_block_forward.1} parent=5 // pred_region
        %s175 = ssub.s32 %s15, 1
        // Predicated region
        $region13: #{encoder_block_forward.1} parent=11 // pred_check
          %p176 = pneg %p62
        $region14: #{encoder_block_forward.1} parent=11 // pred_check_branch
          %178 = sbr.rel (%p176) target = $region16
        $region15: #{encoder_block_forward.1} parent=11 // pred_region
          _
        $region16: #{encoder_block_forward.1} parent=11 // pred_fallthru
          _
        // Predicated region
        $region17: #{encoder_block_forward.1} parent=11 // pred_check
          %p179 = pneg %p83
        $region18: #{encoder_block_forward.1} parent=11 // pred_check_branch
          %181 = sbr.rel (%p179) target = $region20
        $region19: #{encoder_block_forward.1} parent=11 // pred_region
          _
        $region20: #{encoder_block_forward.1} parent=11 // pred_fallthru
          _
      $region12: #{encoder_block_forward.1} parent=5 // pred_fallthru
        _
      %p182 = scmp.lt.s32.totalorder %s15, 2
      // Predicated region
      $region21: #{encoder_block_forward.1} parent=5 // pred_check
        %p183 = pneg %p182
      $region22: #{encoder_block_forward.1} parent=5 // pred_check_branch
        %185 = sbr.rel (%p183) target = $region24
      $region23: #{encoder_block_forward.1} parent=5 // pred_region
        // Predicated region
        $region25: #{encoder_block_forward.1} parent=23 // pred_check
          %p186 = pneg %p35
        $region26: #{encoder_block_forward.1} parent=23 // pred_check_branch
          %188 = sbr.rel (%p186) target = $region28
        $region27: #{encoder_block_forward.1} parent=23 // pred_region
          %p189 = scmp.lt.s32.totalorder %s15, 1
          %s190 = scalar_select %p189, %s15, 1
          %s191 = smul.addr %s190, 54
          %s192 = smul.addr %s191, 8
          %s193 = scalar_lea.vmem %s0, %s192
        $region28: #{encoder_block_forward.1} parent=23 // pred_fallthru
          _
      $region24: #{encoder_block_forward.1} parent=5 // pred_fallthru
        _
      %p194 = scmp.le.s32.totalorder 1, %s15
      %p195 = scmp.lt.s32.totalorder %s15, 3
      %p196 = pnand %p194, %p195
      %p197 = pneg %p196
      // Predicated region
      $region29: #{encoder_block_forward.1} parent=5 // pred_check
        _
      $region30: #{encoder_block_forward.1} parent=5 // pred_check_branch
        %199 = sbr.rel (%p196) target = $region32
      $region31: #{encoder_block_forward.1} parent=5 // pred_region
        %s200 = ssub.s32 %s15, 1
        %p201 = scmp.lt.s32.totalorder %s20, 1
        %s202 = scalar_select %p201, %s20, 1
        %s203 = smul.addr %s202, 54
        %s204 = smul.addr %s203, 8
        %s205 = scalar_lea.vmem %s0, %s204
        %p206 = pneg %p41
        %p207 = pneg %p38
        %p208 = pneg %p62
        %p209 = pneg %p59
        %p210 = pneg %p83
        %p211 = pneg %p80
        %p212 = pneg %p109
        %p213 = pneg %p106
        %s214 = sand.u32 %s96, 1
        %s215 = scalar_lea.sflag [#allocation3], %s214
        %s216 = sand.u32 %s96, 1
        %s217 = smul.addr %s216, 256
        %s218 = scalar_lea.vmem [#allocation2], %s217
        %p219 = pneg %p135
        %p220 = pneg %p132
        %p221 = scmp.lt.s32.totalorder %s20, 1
        %s222 = scalar_select %p221, %s20, 1
        %s223 = smul.addr %s222, 7
        %s224 = smul.addr %s223, 8
        %s225 = scalar_lea.vmem %s4, %s224
        %p226 = pneg %p161
        %p227 = pneg %p158
        %p228 = scmp.lt.s32.totalorder %s20, 1
        %s229 = scalar_select %p228, %s20, 1
        %s230 = smul.addr %s229, 7
        %s231 = smul.addr %s230, 8
        %s232 = scalar_lea.vmem %s5, %s231
        %p233 = scmp.lt.s32.totalorder %s20, 1
        %s234 = scalar_select %p233, %s20, 1
        %s235 = smul.addr %s234, 54
        %s236 = smul.addr %s235, 8
        %s237 = scalar_lea.vmem %s0, %s236
        %p238 = scmp.lt.s32.totalorder %s20, 1
        %s239 = scalar_select %p238, %s20, 1
        %s240 = smul.addr %s239, 7
        %s241 = smul.addr %s240, 8
        %s242 = scalar_lea.vmem %s4, %s241
        %p243 = scmp.lt.s32.totalorder %s20, 1
        %s244 = scalar_select %p243, %s20, 1
        %s245 = smul.addr %s244, 7
        %s246 = smul.addr %s245, 8
        %s247 = scalar_lea.vmem %s5, %s246
        %v248 = vld [vmem:[%s237] sm:$0xff]
        %v249 = vld [vmem:[%s237 + $0x8] sm:$0xff]
        %v250 = vld [vmem:[%s237 + $0x10] sm:$0x3f]
        %v251 = vld [vmem:[%s237 + $0x18] sm:$0xff]
        %v252 = vld [vmem:[%s237 + $0x20] sm:$0xff]
        %v253 = vld [vmem:[%s237 + $0x28] sm:$0x3f]
        %v254 = vld [vmem:[%s237 + $0x30] sm:$0xff]
        %v255 = vld [vmem:[%s237 + $0x38] sm:$0xff]
        %v256 = vld [vmem:[%s237 + $0x40] sm:$0x3f]
        %v257 = vld [vmem:[%s237 + $0x48] sm:$0xff]
        %v258 = vld [vmem:[%s237 + $0x50] sm:$0xff]
        %v259 = vld [vmem:[%s237 + $0x58] sm:$0x3f]
        %v260 = vld [vmem:[%s237 + $0x60] sm:$0xff]
        %v261 = vld [vmem:[%s237 + $0x68] sm:$0xff]
        %v262 = vld [vmem:[%s237 + $0x70] sm:$0x3f]
        %v263 = vld [vmem:[%s237 + $0x78] sm:$0xff]
        %v264 = vld [vmem:[%s237 + $0x80] sm:$0xff]
        %v265 = vld [vmem:[%s237 + $0x88] sm:$0x3f]
        %v266 = vld [vmem:[%s237 + $0x90] sm:$0xff]
        %v267 = vld [vmem:[%s237 + $0x98] sm:$0xff]
        %v268 = vld [vmem:[%s237 + $0xa0] sm:$0x3f]
        %v269 = vld [vmem:[%s237 + $0xa8] sm:$0xff]
        %v270 = vld [vmem:[%s237 + $0xb0] sm:$0xff]
        %v271 = vld [vmem:[%s237 + $0xb8] sm:$0x3f]
        %v272 = vld [vmem:[%s237 + $0xc0] sm:$0xff]
        %v273 = vld [vmem:[%s237 + $0xc8] sm:$0xff]
        %v274 = vld [vmem:[%s237 + $0xd0] sm:$0x3f]
        %v275 = vld [vmem:[%s237 + $0xd8] sm:$0xff]
        %v276 = vld [vmem:[%s237 + $0xe0] sm:$0xff]
        %v277 = vld [vmem:[%s237 + $0xe8] sm:$0x3f]
        %v278 = vld [vmem:[%s237 + $0xf0] sm:$0xff]
        %v279 = vld [vmem:[%s237 + $0xf8] sm:$0xff]
        %v280 = vld [vmem:[%s237 + $0x100] sm:$0x3f]
        %v281 = vld [vmem:[%s237 + $0x108] sm:$0xff]
        %v282 = vld [vmem:[%s237 + $0x110] sm:$0xff]
        %v283 = vld [vmem:[%s237 + $0x118] sm:$0x3f]
        %v284 = vld [vmem:[%s237 + $0x120] sm:$0xff]
        %v285 = vld [vmem:[%s237 + $0x128] sm:$0xff]
        %v286 = vld [vmem:[%s237 + $0x130] sm:$0x3f]
        %v287 = vld [vmem:[%s237 + $0x138] sm:$0xff]
        %v288 = vld [vmem:[%s237 + $0x140] sm:$0xff]
        %v289 = vld [vmem:[%s237 + $0x148] sm:$0x3f]
        %v290 = vld [vmem:[%s237 + $0x150] sm:$0xff]
        %v291 = vld [vmem:[%s237 + $0x158] sm:$0xff]
        %v292 = vld [vmem:[%s237 + $0x160] sm:$0x3f]
        %v293 = vld [vmem:[%s237 + $0x168] sm:$0xff]
        %v294 = vld [vmem:[%s237 + $0x170] sm:$0xff]
        %v295 = vld [vmem:[%s237 + $0x178] sm:$0x3f]
        %v296 = vld [vmem:[%s237 + $0x180] sm:$0xff]
        %v297 = vld [vmem:[%s237 + $0x188] sm:$0xff]
        %v298 = vld [vmem:[%s237 + $0x190] sm:$0x3f]
        %v299 = vld [vmem:[%s237 + $0x198] sm:$0xff]
        %v300 = vld [vmem:[%s237 + $0x1a0] sm:$0xff]
        %v301 = vld [vmem:[%s237 + $0x1a8] sm:$0x3f]
        %vm350 = vcmask 1046528
        %v351 = vrot.slane %v248, 1
        %v352 = vrot.slane %v249, 1
        %v353 = vsel %vm350, %v351, %v352
        %v354 = vrot.slane %v250, 1
        %v355 = vsel %vm350, %v352, %v354
        %v356 = vrot.slane %v251, 1
        %v357 = vrot.slane %v252, 1
        %v358 = vsel %vm350, %v356, %v357
        %v359 = vrot.slane %v253, 1
        %v360 = vsel %vm350, %v357, %v359
        %v361 = vrot.slane %v254, 1
        %v362 = vrot.slane %v255, 1
        %v363 = vsel %vm350, %v361, %v362
        %v364 = vrot.slane %v256, 1
        %v365 = vsel %vm350, %v362, %v364
        %v366 = vrot.slane %v257, 1
        %v367 = vrot.slane %v258, 1
        %v368 = vsel %vm350, %v366, %v367
        %v369 = vrot.slane %v259, 1
        %v370 = vsel %vm350, %v367, %v369
        %v371 = vrot.slane %v260, 1
        %v372 = vrot.slane %v261, 1
        %v373 = vsel %vm350, %v371, %v372
        %v374 = vrot.slane %v262, 1
        %v375 = vsel %vm350, %v372, %v374
        %v376 = vrot.slane %v263, 1
        %v377 = vrot.slane %v264, 1
        %v378 = vsel %vm350, %v376, %v377
        %v379 = vrot.slane %v265, 1
        %v380 = vsel %vm350, %v377, %v379
        %v381 = vrot.slane %v266, 1
        %v382 = vrot.slane %v267, 1
        %v383 = vsel %vm350, %v381, %v382
        %v384 = vrot.slane %v268, 1
        %v385 = vsel %vm350, %v382, %v384
        %v386 = vrot.slane %v269, 1
        %v387 = vrot.slane %v270, 1
        %v388 = vsel %vm350, %v386, %v387
        %v389 = vrot.slane %v271, 1
        %v390 = vsel %vm350, %v387, %v389
        %v391 = vrot.slane %v272, 1
        %v392 = vrot.slane %v273, 1
        %v393 = vsel %vm350, %v391, %v392
        %v394 = vrot.slane %v274, 1
        %v395 = vsel %vm350, %v392, %v394
        %v396 = vrot.slane %v275, 1
        %v397 = vrot.slane %v276, 1
        %v398 = vsel %vm350, %v396, %v397
        %v399 = vrot.slane %v277, 1
        %v400 = vsel %vm350, %v397, %v399
        %v401 = vrot.slane %v278, 1
        %v402 = vrot.slane %v279, 1
        %v403 = vsel %vm350, %v401, %v402
        %v404 = vrot.slane %v280, 1
        %v405 = vsel %vm350, %v402, %v404
        %v406 = vrot.slane %v281, 1
        %v407 = vrot.slane %v282, 1
        %v408 = vsel %vm350, %v406, %v407
        %v409 = vrot.slane %v283, 1
        %v410 = vsel %vm350, %v407, %v409
        %v411 = vrot.slane %v284, 1
        %v412 = vrot.slane %v285, 1
        %v413 = vsel %vm350, %v411, %v412
        %v414 = vrot.slane %v286, 1
        %v415 = vsel %vm350, %v412, %v414
        %v416 = vrot.slane %v287, 1
        %v417 = vrot.slane %v288, 1
        %v418 = vsel %vm350, %v416, %v417
        %v419 = vrot.slane %v289, 1
        %v420 = vsel %vm350, %v417, %v419
        %v421 = vrot.slane %v290, 1
        %v422 = vrot.slane %v291, 1
        %v423 = vsel %vm350, %v421, %v422
        %v424 = vrot.slane %v292, 1
        %v425 = vsel %vm350, %v422, %v424
        %v426 = vrot.slane %v293, 1
        %v427 = vrot.slane %v294, 1
        %v428 = vsel %vm350, %v426, %v427
        %v429 = vrot.slane %v295, 1
        %v430 = vsel %vm350, %v427, %v429
        %431 = vrot.lane.b32.xlu0 %v353, 4
        %v432 = vpop.permute.xlu0 %431
        %433 = vrot.lane.b32.xlu0 %v355, 4
        %v434 = vpop.permute.xlu0 %433
        %435 = vrot.lane.b32.xlu0 %v358, 4
        %v436 = vpop.permute.xlu0 %435
        %437 = vrot.lane.b32.xlu0 %v360, 4
        %v438 = vpop.permute.xlu0 %437
        %439 = vrot.lane.b32.xlu0 %v363, 4
        %v440 = vpop.permute.xlu0 %439
        %441 = vrot.lane.b32.xlu0 %v365, 4
        %v442 = vpop.permute.xlu0 %441
        %443 = vrot.lane.b32.xlu0 %v368, 4
        %v444 = vpop.permute.xlu0 %443
        %445 = vrot.lane.b32.xlu0 %v370, 4
        %v446 = vpop.permute.xlu0 %445
        %447 = vrot.lane.b32.xlu0 %v373, 4
        %v448 = vpop.permute.xlu0 %447
        %449 = vrot.lane.b32.xlu0 %v375, 4
        %v450 = vpop.permute.xlu0 %449
        %451 = vrot.lane.b32.xlu0 %v378, 4
        %v452 = vpop.permute.xlu0 %451
        %453 = vrot.lane.b32.xlu0 %v380, 4
        %v454 = vpop.permute.xlu0 %453
        %455 = vrot.lane.b32.xlu0 %v383, 4
        %v456 = vpop.permute.xlu0 %455
        %457 = vrot.lane.b32.xlu0 %v385, 4
        %v458 = vpop.permute.xlu0 %457
        %459 = vrot.lane.b32.xlu0 %v388, 4
        %v460 = vpop.permute.xlu0 %459
        %461 = vrot.lane.b32.xlu0 %v390, 4
        %v462 = vpop.permute.xlu0 %461
        %463 = vrot.lane.b32.xlu0 %v393, 4
        %v464 = vpop.permute.xlu0 %463
        %465 = vrot.lane.b32.xlu0 %v395, 4
        %v466 = vpop.permute.xlu0 %465
        %467 = vrot.lane.b32.xlu0 %v398, 4
        %v468 = vpop.permute.xlu0 %467
        %469 = vrot.lane.b32.xlu0 %v400, 4
        %v470 = vpop.permute.xlu0 %469
        %471 = vrot.lane.b32.xlu0 %v403, 4
        %v472 = vpop.permute.xlu0 %471
        %473 = vrot.lane.b32.xlu0 %v405, 4
        %v474 = vpop.permute.xlu0 %473
        %475 = vrot.lane.b32.xlu0 %v408, 4
        %v476 = vpop.permute.xlu0 %475
        %477 = vrot.lane.b32.xlu0 %v410, 4
        %v478 = vpop.permute.xlu0 %477
        %479 = vrot.lane.b32.xlu0 %v413, 4
        %v480 = vpop.permute.xlu0 %479
        %481 = vrot.lane.b32.xlu0 %v415, 4
        %v482 = vpop.permute.xlu0 %481
        %483 = vrot.lane.b32.xlu0 %v418, 4
        %v484 = vpop.permute.xlu0 %483
        %485 = vrot.lane.b32.xlu0 %v420, 4
        %v486 = vpop.permute.xlu0 %485
        %487 = vrot.lane.b32.xlu0 %v423, 4
        %v488 = vpop.permute.xlu0 %487
        %489 = vrot.lane.b32.xlu0 %v425, 4
        %v490 = vpop.permute.xlu0 %489
        %491 = vrot.lane.b32.xlu0 %v428, 4
        %v492 = vpop.permute.xlu0 %491
        %493 = vrot.lane.b32.xlu0 %v430, 4
        %v494 = vpop.permute.xlu0 %493
        %vm527 = vcmask 1045504
        %v528 = vrot.slane %v248, 2
        %v529 = vrot.slane %v249, 2
        %v530 = vsel %vm527, %v528, %v529
        %v531 = vrot.slane %v250, 2
        %v532 = vsel %vm527, %v529, %v531
        %v533 = vrot.slane %v251, 2
        %v534 = vrot.slane %v252, 2
        %v535 = vsel %vm527, %v533, %v534
        %v536 = vrot.slane %v253, 2
        %v537 = vsel %vm527, %v534, %v536
        %v538 = vrot.slane %v254, 2
        %v539 = vrot.slane %v255, 2
        %v540 = vsel %vm527, %v538, %v539
        %v541 = vrot.slane %v256, 2
        %v542 = vsel %vm527, %v539, %v541
        %v543 = vrot.slane %v257, 2
        %v544 = vrot.slane %v258, 2
        %v545 = vsel %vm527, %v543, %v544
        %v546 = vrot.slane %v259, 2
        %v547 = vsel %vm527, %v544, %v546
        %v548 = vrot.slane %v260, 2
        %v549 = vrot.slane %v261, 2
        %v550 = vsel %vm527, %v548, %v549
        %v551 = vrot.slane %v262, 2
        %v552 = vsel %vm527, %v549, %v551
        %v553 = vrot.slane %v263, 2
        %v554 = vrot.slane %v264, 2
        %v555 = vsel %vm527, %v553, %v554
        %v556 = vrot.slane %v265, 2
        %v557 = vsel %vm527, %v554, %v556
        %v558 = vrot.slane %v266, 2
        %v559 = vrot.slane %v267, 2
        %v560 = vsel %vm527, %v558, %v559
        %v561 = vrot.slane %v268, 2
        %v562 = vsel %vm527, %v559, %v561
        %v563 = vrot.slane %v269, 2
        %v564 = vrot.slane %v270, 2
        %v565 = vsel %vm527, %v563, %v564
        %v566 = vrot.slane %v271, 2
        %v567 = vsel %vm527, %v564, %v566
        %v568 = vrot.slane %v272, 2
        %v569 = vrot.slane %v273, 2
        %v570 = vsel %vm527, %v568, %v569
        %v571 = vrot.slane %v274, 2
        %v572 = vsel %vm527, %v569, %v571
        %v573 = vrot.slane %v275, 2
        %v574 = vrot.slane %v276, 2
        %v575 = vsel %vm527, %v573, %v574
        %v576 = vrot.slane %v277, 2
        %v577 = vsel %vm527, %v574, %v576
        %v578 = vrot.slane %v278, 2
        %v579 = vrot.slane %v279, 2
        %v580 = vsel %vm527, %v578, %v579
        %v581 = vrot.slane %v280, 2
        %v582 = vsel %vm527, %v579, %v581
        %v583 = vrot.slane %v281, 2
        %v584 = vrot.slane %v282, 2
        %v585 = vsel %vm527, %v583, %v584
        %v586 = vrot.slane %v283, 2
        %v587 = vsel %vm527, %v584, %v586
        %v588 = vrot.slane %v284, 2
        %v589 = vrot.slane %v285, 2
        %v590 = vsel %vm527, %v588, %v589
        %v591 = vrot.slane %v286, 2
        %v592 = vsel %vm527, %v589, %v591
        %v593 = vrot.slane %v287, 2
        %v594 = vrot.slane %v288, 2
        %v595 = vsel %vm527, %v593, %v594
        %v596 = vrot.slane %v289, 2
        %v597 = vsel %vm527, %v594, %v596
        %v598 = vrot.slane %v290, 2
        %v599 = vrot.slane %v291, 2
        %v600 = vsel %vm527, %v598, %v599
        %v601 = vrot.slane %v292, 2
        %v602 = vsel %vm527, %v599, %v601
        %v603 = vrot.slane %v293, 2
        %v604 = vrot.slane %v294, 2
        %v605 = vsel %vm527, %v603, %v604
        %v606 = vrot.slane %v295, 2
        %v607 = vsel %vm527, %v604, %v606
        %608 = vrot.lane.b32.xlu0 %v530, 8
        %v609 = vpop.permute.xlu0 %608
        %610 = vrot.lane.b32.xlu0 %v532, 8
        %v611 = vpop.permute.xlu0 %610
        %612 = vrot.lane.b32.xlu0 %v535, 8
        %v613 = vpop.permute.xlu0 %612
        %614 = vrot.lane.b32.xlu0 %v537, 8
        %v615 = vpop.permute.xlu0 %614
        %616 = vrot.lane.b32.xlu0 %v540, 8
        %v617 = vpop.permute.xlu0 %616
        %618 = vrot.lane.b32.xlu0 %v542, 8
        %v619 = vpop.permute.xlu0 %618
        %620 = vrot.lane.b32.xlu0 %v545, 8
        %v621 = vpop.permute.xlu0 %620
        %622 = vrot.lane.b32.xlu0 %v547, 8
        %v623 = vpop.permute.xlu0 %622
        %624 = vrot.lane.b32.xlu0 %v550, 8
        %v625 = vpop.permute.xlu0 %624
        %626 = vrot.lane.b32.xlu0 %v552, 8
        %v627 = vpop.permute.xlu0 %626
        %628 = vrot.lane.b32.xlu0 %v555, 8
        %v629 = vpop.permute.xlu0 %628
        %630 = vrot.lane.b32.xlu0 %v557, 8
        %v631 = vpop.permute.xlu0 %630
        %632 = vrot.lane.b32.xlu0 %v560, 8
        %v633 = vpop.permute.xlu0 %632
        %634 = vrot.lane.b32.xlu0 %v562, 8
        %v635 = vpop.permute.xlu0 %634
        %636 = vrot.lane.b32.xlu0 %v565, 8
        %v637 = vpop.permute.xlu0 %636
        %638 = vrot.lane.b32.xlu0 %v567, 8
        %v639 = vpop.permute.xlu0 %638
        %640 = vrot.lane.b32.xlu0 %v570, 8
        %v641 = vpop.permute.xlu0 %640
        %642 = vrot.lane.b32.xlu0 %v572, 8
        %v643 = vpop.permute.xlu0 %642
        %644 = vrot.lane.b32.xlu0 %v575, 8
        %v645 = vpop.permute.xlu0 %644
        %646 = vrot.lane.b32.xlu0 %v577, 8
        %v647 = vpop.permute.xlu0 %646
        %648 = vrot.lane.b32.xlu0 %v580, 8
        %v649 = vpop.permute.xlu0 %648
        %650 = vrot.lane.b32.xlu0 %v582, 8
        %v651 = vpop.permute.xlu0 %650
        %652 = vrot.lane.b32.xlu0 %v585, 8
        %v653 = vpop.permute.xlu0 %652
        %654 = vrot.lane.b32.xlu0 %v587, 8
        %v655 = vpop.permute.xlu0 %654
        %656 = vrot.lane.b32.xlu0 %v590, 8
        %v657 = vpop.permute.xlu0 %656
        %658 = vrot.lane.b32.xlu0 %v592, 8
        %v659 = vpop.permute.xlu0 %658
        %660 = vrot.lane.b32.xlu0 %v595, 8
        %v661 = vpop.permute.xlu0 %660
        %662 = vrot.lane.b32.xlu0 %v597, 8
        %v663 = vpop.permute.xlu0 %662
        %664 = vrot.lane.b32.xlu0 %v600, 8
        %v665 = vpop.permute.xlu0 %664
        %666 = vrot.lane.b32.xlu0 %v602, 8
        %v667 = vpop.permute.xlu0 %666
        %668 = vrot.lane.b32.xlu0 %v605, 8
        %v669 = vpop.permute.xlu0 %668
        %670 = vrot.lane.b32.xlu0 %v607, 8
        %v671 = vpop.permute.xlu0 %670
        %vm704 = vcmask 1044480
        %v705 = vrot.slane %v248, 3
        %v706 = vrot.slane %v249, 3
        %v707 = vsel %vm704, %v705, %v706
        %v708 = vrot.slane %v250, 3
        %v709 = vsel %vm704, %v706, %v708
        %v710 = vrot.slane %v251, 3
        %v711 = vrot.slane %v252, 3
        %v712 = vsel %vm704, %v710, %v711
        %v713 = vrot.slane %v253, 3
        %v714 = vsel %vm704, %v711, %v713
        %v715 = vrot.slane %v254, 3
        %v716 = vrot.slane %v255, 3
        %v717 = vsel %vm704, %v715, %v716
        %v718 = vrot.slane %v256, 3
        %v719 = vsel %vm704, %v716, %v718
        %v720 = vrot.slane %v257, 3
        %v721 = vrot.slane %v258, 3
        %v722 = vsel %vm704, %v720, %v721
        %v723 = vrot.slane %v259, 3
        %v724 = vsel %vm704, %v721, %v723
        %v725 = vrot.slane %v260, 3
        %v726 = vrot.slane %v261, 3
        %v727 = vsel %vm704, %v725, %v726
        %v728 = vrot.slane %v262, 3
        %v729 = vsel %vm704, %v726, %v728
        %v730 = vrot.slane %v263, 3
        %v731 = vrot.slane %v264, 3
        %v732 = vsel %vm704, %v730, %v731
        %v733 = vrot.slane %v265, 3
        %v734 = vsel %vm704, %v731, %v733
        %v735 = vrot.slane %v266, 3
        %v736 = vrot.slane %v267, 3
        %v737 = vsel %vm704, %v735, %v736
        %v738 = vrot.slane %v268, 3
        %v739 = vsel %vm704, %v736, %v738
        %v740 = vrot.slane %v269, 3
        %v741 = vrot.slane %v270, 3
        %v742 = vsel %vm704, %v740, %v741
        %v743 = vrot.slane %v271, 3
        %v744 = vsel %vm704, %v741, %v743
        %v745 = vrot.slane %v272, 3
        %v746 = vrot.slane %v273, 3
        %v747 = vsel %vm704, %v745, %v746
        %v748 = vrot.slane %v274, 3
        %v749 = vsel %vm704, %v746, %v748
        %v750 = vrot.slane %v275, 3
        %v751 = vrot.slane %v276, 3
        %v752 = vsel %vm704, %v750, %v751
        %v753 = vrot.slane %v277, 3
        %v754 = vsel %vm704, %v751, %v753
        %v755 = vrot.slane %v278, 3
        %v756 = vrot.slane %v279, 3
        %v757 = vsel %vm704, %v755, %v756
        %v758 = vrot.slane %v280, 3
        %v759 = vsel %vm704, %v756, %v758
        %v760 = vrot.slane %v281, 3
        %v761 = vrot.slane %v282, 3
        %v762 = vsel %vm704, %v760, %v761
        %v763 = vrot.slane %v283, 3
        %v764 = vsel %vm704, %v761, %v763
        %v765 = vrot.slane %v284, 3
        %v766 = vrot.slane %v285, 3
        %v767 = vsel %vm704, %v765, %v766
        %v768 = vrot.slane %v286, 3
        %v769 = vsel %vm704, %v766, %v768
        %v770 = vrot.slane %v287, 3
        %v771 = vrot.slane %v288, 3
        %v772 = vsel %vm704, %v770, %v771
        %v773 = vrot.slane %v289, 3
        %v774 = vsel %vm704, %v771, %v773
        %v775 = vrot.slane %v290, 3
        %v776 = vrot.slane %v291, 3
        %v777 = vsel %vm704, %v775, %v776
        %v778 = vrot.slane %v292, 3
        %v779 = vsel %vm704, %v776, %v778
        %v780 = vrot.slane %v293, 3
        %v781 = vrot.slane %v294, 3
        %v782 = vsel %vm704, %v780, %v781
        %v783 = vrot.slane %v295, 3
        %v784 = vsel %vm704, %v781, %v783
        %785 = vrot.lane.b32.xlu0 %v707, 12
        %v786 = vpop.permute.xlu0 %785
        %787 = vrot.lane.b32.xlu0 %v709, 12
        %v788 = vpop.permute.xlu0 %787
        %789 = vrot.lane.b32.xlu0 %v712, 12
        %v790 = vpop.permute.xlu0 %789
        %791 = vrot.lane.b32.xlu0 %v714, 12
        %v792 = vpop.permute.xlu0 %791
        %793 = vrot.lane.b32.xlu0 %v717, 12
        %v794 = vpop.permute.xlu0 %793
        %795 = vrot.lane.b32.xlu0 %v719, 12
        %v796 = vpop.permute.xlu0 %795
        %797 = vrot.lane.b32.xlu0 %v722, 12
        %v798 = vpop.permute.xlu0 %797
        %799 = vrot.lane.b32.xlu0 %v724, 12
        %v800 = vpop.permute.xlu0 %799
        %801 = vrot.lane.b32.xlu0 %v727, 12
        %v802 = vpop.permute.xlu0 %801
        %803 = vrot.lane.b32.xlu0 %v729, 12
        %v804 = vpop.permute.xlu0 %803
        %805 = vrot.lane.b32.xlu0 %v732, 12
        %v806 = vpop.permute.xlu0 %805
        %807 = vrot.lane.b32.xlu0 %v734, 12
        %v808 = vpop.permute.xlu0 %807
        %809 = vrot.lane.b32.xlu0 %v737, 12
        %v810 = vpop.permute.xlu0 %809
        %811 = vrot.lane.b32.xlu0 %v739, 12
        %v812 = vpop.permute.xlu0 %811
        %813 = vrot.lane.b32.xlu0 %v742, 12
        %v814 = vpop.permute.xlu0 %813
        %815 = vrot.lane.b32.xlu0 %v744, 12
        %v816 = vpop.permute.xlu0 %815
        %817 = vrot.lane.b32.xlu0 %v747, 12
        %v818 = vpop.permute.xlu0 %817
        %819 = vrot.lane.b32.xlu0 %v749, 12
        %v820 = vpop.permute.xlu0 %819
        %821 = vrot.lane.b32.xlu0 %v752, 12
        %v822 = vpop.permute.xlu0 %821
        %823 = vrot.lane.b32.xlu0 %v754, 12
        %v824 = vpop.permute.xlu0 %823
        %825 = vrot.lane.b32.xlu0 %v757, 12
        %v826 = vpop.permute.xlu0 %825
        %827 = vrot.lane.b32.xlu0 %v759, 12
        %v828 = vpop.permute.xlu0 %827
        %829 = vrot.lane.b32.xlu0 %v762, 12
        %v830 = vpop.permute.xlu0 %829
        %831 = vrot.lane.b32.xlu0 %v764, 12
        %v832 = vpop.permute.xlu0 %831
        %833 = vrot.lane.b32.xlu0 %v767, 12
        %v834 = vpop.permute.xlu0 %833
        %835 = vrot.lane.b32.xlu0 %v769, 12
        %v836 = vpop.permute.xlu0 %835
        %837 = vrot.lane.b32.xlu0 %v772, 12
        %v838 = vpop.permute.xlu0 %837
        %839 = vrot.lane.b32.xlu0 %v774, 12
        %v840 = vpop.permute.xlu0 %839
        %841 = vrot.lane.b32.xlu0 %v777, 12
        %v842 = vpop.permute.xlu0 %841
        %843 = vrot.lane.b32.xlu0 %v779, 12
        %v844 = vpop.permute.xlu0 %843
        %845 = vrot.lane.b32.xlu0 %v782, 12
        %v846 = vpop.permute.xlu0 %845
        %847 = vrot.lane.b32.xlu0 %v784, 12
        %v848 = vpop.permute.xlu0 %847
        %vm881 = vcmask 1043456
        %v882 = vrot.slane %v248, 4
        %v883 = vrot.slane %v249, 4
        %v884 = vsel %vm881, %v882, %v883
        %v885 = vrot.slane %v250, 4
        %v886 = vsel %vm881, %v883, %v885
        %v887 = vrot.slane %v251, 4
        %v888 = vrot.slane %v252, 4
        %v889 = vsel %vm881, %v887, %v888
        %v890 = vrot.slane %v253, 4
        %v891 = vsel %vm881, %v888, %v890
        %v892 = vrot.slane %v254, 4
        %v893 = vrot.slane %v255, 4
        %v894 = vsel %vm881, %v892, %v893
        %v895 = vrot.slane %v256, 4
        %v896 = vsel %vm881, %v893, %v895
        %v897 = vrot.slane %v257, 4
        %v898 = vrot.slane %v258, 4
        %v899 = vsel %vm881, %v897, %v898
        %v900 = vrot.slane %v259, 4
        %v901 = vsel %vm881, %v898, %v900
        %v902 = vrot.slane %v260, 4
        %v903 = vrot.slane %v261, 4
        %v904 = vsel %vm881, %v902, %v903
        %v905 = vrot.slane %v262, 4
        %v906 = vsel %vm881, %v903, %v905
        %v907 = vrot.slane %v263, 4
        %v908 = vrot.slane %v264, 4
        %v909 = vsel %vm881, %v907, %v908
        %v910 = vrot.slane %v265, 4
        %v911 = vsel %vm881, %v908, %v910
        %v912 = vrot.slane %v266, 4
        %v913 = vrot.slane %v267, 4
        %v914 = vsel %vm881, %v912, %v913
        %v915 = vrot.slane %v268, 4
        %v916 = vsel %vm881, %v913, %v915
        %v917 = vrot.slane %v269, 4
        %v918 = vrot.slane %v270, 4
        %v919 = vsel %vm881, %v917, %v918
        %v920 = vrot.slane %v271, 4
        %v921 = vsel %vm881, %v918, %v920
        %v922 = vrot.slane %v272, 4
        %v923 = vrot.slane %v273, 4
        %v924 = vsel %vm881, %v922, %v923
        %v925 = vrot.slane %v274, 4
        %v926 = vsel %vm881, %v923, %v925
        %v927 = vrot.slane %v275, 4
        %v928 = vrot.slane %v276, 4
        %v929 = vsel %vm881, %v927, %v928
        %v930 = vrot.slane %v277, 4
        %v931 = vsel %vm881, %v928, %v930
        %v932 = vrot.slane %v278, 4
        %v933 = vrot.slane %v279, 4
        %v934 = vsel %vm881, %v932, %v933
        %v935 = vrot.slane %v280, 4
        %v936 = vsel %vm881, %v933, %v935
        %v937 = vrot.slane %v281, 4
        %v938 = vrot.slane %v282, 4
        %v939 = vsel %vm881, %v937, %v938
        %v940 = vrot.slane %v283, 4
        %v941 = vsel %vm881, %v938, %v940
        %v942 = vrot.slane %v284, 4
        %v943 = vrot.slane %v285, 4
        %v944 = vsel %vm881, %v942, %v943
        %v945 = vrot.slane %v286, 4
        %v946 = vsel %vm881, %v943, %v945
        %v947 = vrot.slane %v287, 4
        %v948 = vrot.slane %v288, 4
        %v949 = vsel %vm881, %v947, %v948
        %v950 = vrot.slane %v289, 4
        %v951 = vsel %vm881, %v948, %v950
        %v952 = vrot.slane %v290, 4
        %v953 = vrot.slane %v291, 4
        %v954 = vsel %vm881, %v952, %v953
        %v955 = vrot.slane %v292, 4
        %v956 = vsel %vm881, %v953, %v955
        %v957 = vrot.slane %v293, 4
        %v958 = vrot.slane %v294, 4
        %v959 = vsel %vm881, %v957, %v958
        %v960 = vrot.slane %v295, 4
        %v961 = vsel %vm881, %v958, %v960
        %962 = vrot.lane.b32.xlu0 %v884, 16
        %v963 = vpop.permute.xlu0 %962
        %964 = vrot.lane.b32.xlu0 %v886, 16
        %v965 = vpop.permute.xlu0 %964
        %966 = vrot.lane.b32.xlu0 %v889, 16
        %v967 = vpop.permute.xlu0 %966
        %968 = vrot.lane.b32.xlu0 %v891, 16
        %v969 = vpop.permute.xlu0 %968
        %970 = vrot.lane.b32.xlu0 %v894, 16
        %v971 = vpop.permute.xlu0 %970
        %972 = vrot.lane.b32.xlu0 %v896, 16
        %v973 = vpop.permute.xlu0 %972
        %974 = vrot.lane.b32.xlu0 %v899, 16
        %v975 = vpop.permute.xlu0 %974
        %976 = vrot.lane.b32.xlu0 %v901, 16
        %v977 = vpop.permute.xlu0 %976
        %978 = vrot.lane.b32.xlu0 %v904, 16
        %v979 = vpop.permute.xlu0 %978
        %980 = vrot.lane.b32.xlu0 %v906, 16
        %v981 = vpop.permute.xlu0 %980
        %982 = vrot.lane.b32.xlu0 %v909, 16
        %v983 = vpop.permute.xlu0 %982
        %984 = vrot.lane.b32.xlu0 %v911, 16
        %v985 = vpop.permute.xlu0 %984
        %986 = vrot.lane.b32.xlu0 %v914, 16
        %v987 = vpop.permute.xlu0 %986
        %988 = vrot.lane.b32.xlu0 %v916, 16
        %v989 = vpop.permute.xlu0 %988
        %990 = vrot.lane.b32.xlu0 %v919, 16
        %v991 = vpop.permute.xlu0 %990
        %992 = vrot.lane.b32.xlu0 %v921, 16
        %v993 = vpop.permute.xlu0 %992
        %994 = vrot.lane.b32.xlu0 %v924, 16
        %v995 = vpop.permute.xlu0 %994
        %996 = vrot.lane.b32.xlu0 %v926, 16
        %v997 = vpop.permute.xlu0 %996
        %998 = vrot.lane.b32.xlu0 %v929, 16
        %v999 = vpop.permute.xlu0 %998
        %1000 = vrot.lane.b32.xlu0 %v931, 16
        %v1001 = vpop.permute.xlu0 %1000
        %1002 = vrot.lane.b32.xlu0 %v934, 16
        %v1003 = vpop.permute.xlu0 %1002
        %1004 = vrot.lane.b32.xlu0 %v936, 16
        %v1005 = vpop.permute.xlu0 %1004
        %1006 = vrot.lane.b32.xlu0 %v939, 16
        %v1007 = vpop.permute.xlu0 %1006
        %1008 = vrot.lane.b32.xlu0 %v941, 16
        %v1009 = vpop.permute.xlu0 %1008
        %1010 = vrot.lane.b32.xlu0 %v944, 16
        %v1011 = vpop.permute.xlu0 %1010
        %1012 = vrot.lane.b32.xlu0 %v946, 16
        %v1013 = vpop.permute.xlu0 %1012
        %1014 = vrot.lane.b32.xlu0 %v949, 16
        %v1015 = vpop.permute.xlu0 %1014
        %1016 = vrot.lane.b32.xlu0 %v951, 16
        %v1017 = vpop.permute.xlu0 %1016
        %1018 = vrot.lane.b32.xlu0 %v954, 16
        %v1019 = vpop.permute.xlu0 %1018
        %1020 = vrot.lane.b32.xlu0 %v956, 16
        %v1021 = vpop.permute.xlu0 %1020
        %1022 = vrot.lane.b32.xlu0 %v959, 16
        %v1023 = vpop.permute.xlu0 %1022
        %1024 = vrot.lane.b32.xlu0 %v961, 16
        %v1025 = vpop.permute.xlu0 %1024
        %vm1058 = vcmask 1042432
        %v1059 = vrot.slane %v248, 5
        %v1060 = vrot.slane %v249, 5
        %v1061 = vsel %vm1058, %v1059, %v1060
        %v1062 = vrot.slane %v250, 5
        %v1063 = vsel %vm1058, %v1060, %v1062
        %v1064 = vrot.slane %v251, 5
        %v1065 = vrot.slane %v252, 5
        %v1066 = vsel %vm1058, %v1064, %v1065
        %v1067 = vrot.slane %v253, 5
        %v1068 = vsel %vm1058, %v1065, %v1067
        %v1069 = vrot.slane %v254, 5
        %v1070 = vrot.slane %v255, 5
        %v1071 = vsel %vm1058, %v1069, %v1070
        %v1072 = vrot.slane %v256, 5
        %v1073 = vsel %vm1058, %v1070, %v1072
        %v1074 = vrot.slane %v257, 5
        %v1075 = vrot.slane %v258, 5
        %v1076 = vsel %vm1058, %v1074, %v1075
        %v1077 = vrot.slane %v259, 5
        %v1078 = vsel %vm1058, %v1075, %v1077
        %v1079 = vrot.slane %v260, 5
        %v1080 = vrot.slane %v261, 5
        %v1081 = vsel %vm1058, %v1079, %v1080
        %v1082 = vrot.slane %v262, 5
        %v1083 = vsel %vm1058, %v1080, %v1082
        %v1084 = vrot.slane %v263, 5
        %v1085 = vrot.slane %v264, 5
        %v1086 = vsel %vm1058, %v1084, %v1085
        %v1087 = vrot.slane %v265, 5
        %v1088 = vsel %vm1058, %v1085, %v1087
        %v1089 = vrot.slane %v266, 5
        %v1090 = vrot.slane %v267, 5
        %v1091 = vsel %vm1058, %v1089, %v1090
        %v1092 = vrot.slane %v268, 5
        %v1093 = vsel %vm1058, %v1090, %v1092
        %v1094 = vrot.slane %v269, 5
        %v1095 = vrot.slane %v270, 5
        %v1096 = vsel %vm1058, %v1094, %v1095
        %v1097 = vrot.slane %v271, 5
        %v1098 = vsel %vm1058, %v1095, %v1097
        %v1099 = vrot.slane %v272, 5
        %v1100 = vrot.slane %v273, 5
        %v1101 = vsel %vm1058, %v1099, %v1100
        %v1102 = vrot.slane %v274, 5
        %v1103 = vsel %vm1058, %v1100, %v1102
        %v1104 = vrot.slane %v275, 5
        %v1105 = vrot.slane %v276, 5
        %v1106 = vsel %vm1058, %v1104, %v1105
        %v1107 = vrot.slane %v277, 5
        %v1108 = vsel %vm1058, %v1105, %v1107
        %v1109 = vrot.slane %v278, 5
        %v1110 = vrot.slane %v279, 5
        %v1111 = vsel %vm1058, %v1109, %v1110
        %v1112 = vrot.slane %v280, 5
        %v1113 = vsel %vm1058, %v1110, %v1112
        %v1114 = vrot.slane %v281, 5
        %v1115 = vrot.slane %v282, 5
        %v1116 = vsel %vm1058, %v1114, %v1115
        %v1117 = vrot.slane %v283, 5
        %v1118 = vsel %vm1058, %v1115, %v1117
        %v1119 = vrot.slane %v284, 5
        %v1120 = vrot.slane %v285, 5
        %v1121 = vsel %vm1058, %v1119, %v1120
        %v1122 = vrot.slane %v286, 5
        %v1123 = vsel %vm1058, %v1120, %v1122
        %v1124 = vrot.slane %v287, 5
        %v1125 = vrot.slane %v288, 5
        %v1126 = vsel %vm1058, %v1124, %v1125
        %v1127 = vrot.slane %v289, 5
        %v1128 = vsel %vm1058, %v1125, %v1127
        %v1129 = vrot.slane %v290, 5
        %v1130 = vrot.slane %v291, 5
        %v1131 = vsel %vm1058, %v1129, %v1130
        %v1132 = vrot.slane %v292, 5
        %v1133 = vsel %vm1058, %v1130, %v1132
        %v1134 = vrot.slane %v293, 5
        %v1135 = vrot.slane %v294, 5
        %v1136 = vsel %vm1058, %v1134, %v1135
        %v1137 = vrot.slane %v295, 5
        %v1138 = vsel %vm1058, %v1135, %v1137
        %1139 = vrot.lane.b32.xlu0 %v1061, 20
        %v1140 = vpop.permute.xlu0 %1139
        %1141 = vrot.lane.b32.xlu0 %v1063, 20
        %v1142 = vpop.permute.xlu0 %1141
        %1143 = vrot.lane.b32.xlu0 %v1066, 20
        %v1144 = vpop.permute.xlu0 %1143
        %1145 = vrot.lane.b32.xlu0 %v1068, 20
        %v1146 = vpop.permute.xlu0 %1145
        %1147 = vrot.lane.b32.xlu0 %v1071, 20
        %v1148 = vpop.permute.xlu0 %1147
        %1149 = vrot.lane.b32.xlu0 %v1073, 20
        %v1150 = vpop.permute.xlu0 %1149
        %1151 = vrot.lane.b32.xlu0 %v1076, 20
        %v1152 = vpop.permute.xlu0 %1151
        %1153 = vrot.lane.b32.xlu0 %v1078, 20
        %v1154 = vpop.permute.xlu0 %1153
        %1155 = vrot.lane.b32.xlu0 %v1081, 20
        %v1156 = vpop.permute.xlu0 %1155
        %1157 = vrot.lane.b32.xlu0 %v1083, 20
        %v1158 = vpop.permute.xlu0 %1157
        %1159 = vrot.lane.b32.xlu0 %v1086, 20
        %v1160 = vpop.permute.xlu0 %1159
        %1161 = vrot.lane.b32.xlu0 %v1088, 20
        %v1162 = vpop.permute.xlu0 %1161
        %1163 = vrot.lane.b32.xlu0 %v1091, 20
        %v1164 = vpop.permute.xlu0 %1163
        %1165 = vrot.lane.b32.xlu0 %v1093, 20
        %v1166 = vpop.permute.xlu0 %1165
        %1167 = vrot.lane.b32.xlu0 %v1096, 20
        %v1168 = vpop.permute.xlu0 %1167
        %1169 = vrot.lane.b32.xlu0 %v1098, 20
        %v1170 = vpop.permute.xlu0 %1169
        %1171 = vrot.lane.b32.xlu0 %v1101, 20
        %v1172 = vpop.permute.xlu0 %1171
        %1173 = vrot.lane.b32.xlu0 %v1103, 20
        %v1174 = vpop.permute.xlu0 %1173
        %1175 = vrot.lane.b32.xlu0 %v1106, 20
        %v1176 = vpop.permute.xlu0 %1175
        %1177 = vrot.lane.b32.xlu0 %v1108, 20
        %v1178 = vpop.permute.xlu0 %1177
        %1179 = vrot.lane.b32.xlu0 %v1111, 20
        %v1180 = vpop.permute.xlu0 %1179
        %1181 = vrot.lane.b32.xlu0 %v1113, 20
        %v1182 = vpop.permute.xlu0 %1181
        %1183 = vrot.lane.b32.xlu0 %v1116, 20
        %v1184 = vpop.permute.xlu0 %1183
        %1185 = vrot.lane.b32.xlu0 %v1118, 20
        %v1186 = vpop.permute.xlu0 %1185
        %1187 = vrot.lane.b32.xlu0 %v1121, 20
        %v1188 = vpop.permute.xlu0 %1187
        %1189 = vrot.lane.b32.xlu0 %v1123, 20
        %v1190 = vpop.permute.xlu0 %1189
        %1191 = vrot.lane.b32.xlu0 %v1126, 20
        %v1192 = vpop.permute.xlu0 %1191
        %1193 = vrot.lane.b32.xlu0 %v1128, 20
        %v1194 = vpop.permute.xlu0 %1193
        %1195 = vrot.lane.b32.xlu0 %v1131, 20
        %v1196 = vpop.permute.xlu0 %1195
        %1197 = vrot.lane.b32.xlu0 %v1133, 20
        %v1198 = vpop.permute.xlu0 %1197
        %1199 = vrot.lane.b32.xlu0 %v1136, 20
        %v1200 = vpop.permute.xlu0 %1199
        %1201 = vrot.lane.b32.xlu0 %v1138, 20
        %v1202 = vpop.permute.xlu0 %1201
        %vm1235 = vcmask 1041408
        %v1236 = vrot.slane %v248, 6
        %v1237 = vrot.slane %v249, 6
        %v1238 = vsel %vm1235, %v1236, %v1237
        %v1239 = vrot.slane %v250, 6
        %v1240 = vsel %vm1235, %v1237, %v1239
        %v1241 = vrot.slane %v251, 6
        %v1242 = vrot.slane %v252, 6
        %v1243 = vsel %vm1235, %v1241, %v1242
        %v1244 = vrot.slane %v253, 6
        %v1245 = vsel %vm1235, %v1242, %v1244
        %v1246 = vrot.slane %v254, 6
        %v1247 = vrot.slane %v255, 6
        %v1248 = vsel %vm1235, %v1246, %v1247
        %v1249 = vrot.slane %v256, 6
        %v1250 = vsel %vm1235, %v1247, %v1249
        %v1251 = vrot.slane %v257, 6
        %v1252 = vrot.slane %v258, 6
        %v1253 = vsel %vm1235, %v1251, %v1252
        %v1254 = vrot.slane %v259, 6
        %v1255 = vsel %vm1235, %v1252, %v1254
        %v1256 = vrot.slane %v260, 6
        %v1257 = vrot.slane %v261, 6
        %v1258 = vsel %vm1235, %v1256, %v1257
        %v1259 = vrot.slane %v262, 6
        %v1260 = vsel %vm1235, %v1257, %v1259
        %v1261 = vrot.slane %v263, 6
        %v1262 = vrot.slane %v264, 6
        %v1263 = vsel %vm1235, %v1261, %v1262
        %v1264 = vrot.slane %v265, 6
        %v1265 = vsel %vm1235, %v1262, %v1264
        %v1266 = vrot.slane %v266, 6
        %v1267 = vrot.slane %v267, 6
        %v1268 = vsel %vm1235, %v1266, %v1267
        %v1269 = vrot.slane %v268, 6
        %v1270 = vsel %vm1235, %v1267, %v1269
        %v1271 = vrot.slane %v269, 6
        %v1272 = vrot.slane %v270, 6
        %v1273 = vsel %vm1235, %v1271, %v1272
        %v1274 = vrot.slane %v271, 6
        %v1275 = vsel %vm1235, %v1272, %v1274
        %v1276 = vrot.slane %v272, 6
        %v1277 = vrot.slane %v273, 6
        %v1278 = vsel %vm1235, %v1276, %v1277
        %v1279 = vrot.slane %v274, 6
        %v1280 = vsel %vm1235, %v1277, %v1279
        %v1281 = vrot.slane %v275, 6
        %v1282 = vrot.slane %v276, 6
        %v1283 = vsel %vm1235, %v1281, %v1282
        %v1284 = vrot.slane %v277, 6
        %v1285 = vsel %vm1235, %v1282, %v1284
        %v1286 = vrot.slane %v278, 6
        %v1287 = vrot.slane %v279, 6
        %v1288 = vsel %vm1235, %v1286, %v1287
        %v1289 = vrot.slane %v280, 6
        %v1290 = vsel %vm1235, %v1287, %v1289
        %v1291 = vrot.slane %v281, 6
        %v1292 = vrot.slane %v282, 6
        %v1293 = vsel %vm1235, %v1291, %v1292
        %v1294 = vrot.slane %v283, 6
        %v1295 = vsel %vm1235, %v1292, %v1294
        %v1296 = vrot.slane %v284, 6
        %v1297 = vrot.slane %v285, 6
        %v1298 = vsel %vm1235, %v1296, %v1297
        %v1299 = vrot.slane %v286, 6
        %v1300 = vsel %vm1235, %v1297, %v1299
        %v1301 = vrot.slane %v287, 6
        %v1302 = vrot.slane %v288, 6
        %v1303 = vsel %vm1235, %v1301, %v1302
        %v1304 = vrot.slane %v289, 6
        %v1305 = vsel %vm1235, %v1302, %v1304
        %v1306 = vrot.slane %v290, 6
        %v1307 = vrot.slane %v291, 6
        %v1308 = vsel %vm1235, %v1306, %v1307
        %v1309 = vrot.slane %v292, 6
        %v1310 = vsel %vm1235, %v1307, %v1309
        %v1311 = vrot.slane %v293, 6
        %v1312 = vrot.slane %v294, 6
        %v1313 = vsel %vm1235, %v1311, %v1312
        %v1314 = vrot.slane %v295, 6
        %v1315 = vsel %vm1235, %v1312, %v1314
        %1316 = vrot.lane.b32.xlu0 %v1238, 24
        %v1317 = vpop.permute.xlu0 %1316
        %1318 = vrot.lane.b32.xlu0 %v1240, 24
        %v1319 = vpop.permute.xlu0 %1318
        %1320 = vrot.lane.b32.xlu0 %v1243, 24
        %v1321 = vpop.permute.xlu0 %1320
        %1322 = vrot.lane.b32.xlu0 %v1245, 24
        %v1323 = vpop.permute.xlu0 %1322
        %1324 = vrot.lane.b32.xlu0 %v1248, 24
        %v1325 = vpop.permute.xlu0 %1324
        %1326 = vrot.lane.b32.xlu0 %v1250, 24
        %v1327 = vpop.permute.xlu0 %1326
        %1328 = vrot.lane.b32.xlu0 %v1253, 24
        %v1329 = vpop.permute.xlu0 %1328
        %1330 = vrot.lane.b32.xlu0 %v1255, 24
        %v1331 = vpop.permute.xlu0 %1330
        %1332 = vrot.lane.b32.xlu0 %v1258, 24
        %v1333 = vpop.permute.xlu0 %1332
        %1334 = vrot.lane.b32.xlu0 %v1260, 24
        %v1335 = vpop.permute.xlu0 %1334
        %1336 = vrot.lane.b32.xlu0 %v1263, 24
        %v1337 = vpop.permute.xlu0 %1336
        %1338 = vrot.lane.b32.xlu0 %v1265, 24
        %v1339 = vpop.permute.xlu0 %1338
        %1340 = vrot.lane.b32.xlu0 %v1268, 24
        %v1341 = vpop.permute.xlu0 %1340
        %1342 = vrot.lane.b32.xlu0 %v1270, 24
        %v1343 = vpop.permute.xlu0 %1342
        %1344 = vrot.lane.b32.xlu0 %v1273, 24
        %v1345 = vpop.permute.xlu0 %1344
        %1346 = vrot.lane.b32.xlu0 %v1275, 24
        %v1347 = vpop.permute.xlu0 %1346
        %1348 = vrot.lane.b32.xlu0 %v1278, 24
        %v1349 = vpop.permute.xlu0 %1348
        %1350 = vrot.lane.b32.xlu0 %v1280, 24
        %v1351 = vpop.permute.xlu0 %1350
        %1352 = vrot.lane.b32.xlu0 %v1283, 24
        %v1353 = vpop.permute.xlu0 %1352
        %1354 = vrot.lane.b32.xlu0 %v1285, 24
        %v1355 = vpop.permute.xlu0 %1354
        %1356 = vrot.lane.b32.xlu0 %v1288, 24
        %v1357 = vpop.permute.xlu0 %1356
        %1358 = vrot.lane.b32.xlu0 %v1290, 24
        %v1359 = vpop.permute.xlu0 %1358
        %1360 = vrot.lane.b32.xlu0 %v1293, 24
        %v1361 = vpop.permute.xlu0 %1360
        %1362 = vrot.lane.b32.xlu0 %v1295, 24
        %v1363 = vpop.permute.xlu0 %1362
        %1364 = vrot.lane.b32.xlu0 %v1298, 24
        %v1365 = vpop.permute.xlu0 %1364
        %1366 = vrot.lane.b32.xlu0 %v1300, 24
        %v1367 = vpop.permute.xlu0 %1366
        %1368 = vrot.lane.b32.xlu0 %v1303, 24
        %v1369 = vpop.permute.xlu0 %1368
        %1370 = vrot.lane.b32.xlu0 %v1305, 24
        %v1371 = vpop.permute.xlu0 %1370
        %1372 = vrot.lane.b32.xlu0 %v1308, 24
        %v1373 = vpop.permute.xlu0 %1372
        %1374 = vrot.lane.b32.xlu0 %v1310, 24
        %v1375 = vpop.permute.xlu0 %1374
        %1376 = vrot.lane.b32.xlu0 %v1313, 24
        %v1377 = vpop.permute.xlu0 %1376
        %1378 = vrot.lane.b32.xlu0 %v1315, 24
        %v1379 = vpop.permute.xlu0 %1378
        %1414 = vrot.lane.b32.xlu0 %v251, 28
        %v1415 = vpop.permute.xlu0 %1414
        %1416 = vrot.lane.b32.xlu0 %v252, 28
        %v1417 = vpop.permute.xlu0 %1416
        %1418 = vrot.lane.b32.xlu0 %v254, 28
        %v1419 = vpop.permute.xlu0 %1418
        %1420 = vrot.lane.b32.xlu0 %v255, 28
        %v1421 = vpop.permute.xlu0 %1420
        %1422 = vrot.lane.b32.xlu0 %v257, 28
        %v1423 = vpop.permute.xlu0 %1422
        %1424 = vrot.lane.b32.xlu0 %v258, 28
        %v1425 = vpop.permute.xlu0 %1424
        %1426 = vrot.lane.b32.xlu0 %v260, 28
        %v1427 = vpop.permute.xlu0 %1426
        %1428 = vrot.lane.b32.xlu0 %v261, 28
        %v1429 = vpop.permute.xlu0 %1428
        %1430 = vrot.lane.b32.xlu0 %v263, 28
        %v1431 = vpop.permute.xlu0 %1430
        %1432 = vrot.lane.b32.xlu0 %v264, 28
        %v1433 = vpop.permute.xlu0 %1432
        %1434 = vrot.lane.b32.xlu0 %v266, 28
        %v1435 = vpop.permute.xlu0 %1434
        %1436 = vrot.lane.b32.xlu0 %v267, 28
        %v1437 = vpop.permute.xlu0 %1436
        %1438 = vrot.lane.b32.xlu0 %v269, 28
        %v1439 = vpop.permute.xlu0 %1438
        %1440 = vrot.lane.b32.xlu0 %v270, 28
        %v1441 = vpop.permute.xlu0 %1440
        %1442 = vrot.lane.b32.xlu0 %v272, 28
        %v1443 = vpop.permute.xlu0 %1442
        %1444 = vrot.lane.b32.xlu0 %v273, 28
        %v1445 = vpop.permute.xlu0 %1444
        %1446 = vrot.lane.b32.xlu0 %v275, 28
        %v1447 = vpop.permute.xlu0 %1446
        %1448 = vrot.lane.b32.xlu0 %v276, 28
        %v1449 = vpop.permute.xlu0 %1448
        %1450 = vrot.lane.b32.xlu0 %v278, 28
        %v1451 = vpop.permute.xlu0 %1450
        %1452 = vrot.lane.b32.xlu0 %v279, 28
        %v1453 = vpop.permute.xlu0 %1452
        %1454 = vrot.lane.b32.xlu0 %v281, 28
        %v1455 = vpop.permute.xlu0 %1454
        %1456 = vrot.lane.b32.xlu0 %v282, 28
        %v1457 = vpop.permute.xlu0 %1456
        %1458 = vrot.lane.b32.xlu0 %v284, 28
        %v1459 = vpop.permute.xlu0 %1458
        %1460 = vrot.lane.b32.xlu0 %v285, 28
        %v1461 = vpop.permute.xlu0 %1460
        %1462 = vrot.lane.b32.xlu0 %v287, 28
        %v1463 = vpop.permute.xlu0 %1462
        %1464 = vrot.lane.b32.xlu0 %v288, 28
        %v1465 = vpop.permute.xlu0 %1464
        %1466 = vrot.lane.b32.xlu0 %v290, 28
        %v1467 = vpop.permute.xlu0 %1466
        %1468 = vrot.lane.b32.xlu0 %v291, 28
        %v1469 = vpop.permute.xlu0 %1468
        %1470 = vrot.lane.b32.xlu0 %v293, 28
        %v1471 = vpop.permute.xlu0 %1470
        %1472 = vrot.lane.b32.xlu0 %v294, 28
        %v1473 = vpop.permute.xlu0 %1472
        %1474 = vrot.lane.b32.xlu0 %v296, 28
        %v1475 = vpop.permute.xlu0 %1474
        %1476 = vrot.lane.b32.xlu0 %v297, 28
        %v1477 = vpop.permute.xlu0 %1476
        %v1511 = vrot.slane %v296, 1
        %v1512 = vrot.slane %v297, 1
        %v1513 = vsel %vm350, %v1511, %v1512
        %v1514 = vrot.slane %v298, 1
        %v1515 = vsel %vm350, %v1512, %v1514
        %1516 = vrot.lane.b32.xlu0 %v358, 32
        %v1517 = vpop.permute.xlu0 %1516
        %1518 = vrot.lane.b32.xlu0 %v360, 32
        %v1519 = vpop.permute.xlu0 %1518
        %1520 = vrot.lane.b32.xlu0 %v363, 32
        %v1521 = vpop.permute.xlu0 %1520
        %1522 = vrot.lane.b32.xlu0 %v365, 32
        %v1523 = vpop.permute.xlu0 %1522
        %1524 = vrot.lane.b32.xlu0 %v368, 32
        %v1525 = vpop.permute.xlu0 %1524
        %1526 = vrot.lane.b32.xlu0 %v370, 32
        %v1527 = vpop.permute.xlu0 %1526
        %1528 = vrot.lane.b32.xlu0 %v373, 32
        %v1529 = vpop.permute.xlu0 %1528
        %1530 = vrot.lane.b32.xlu0 %v375, 32
        %v1531 = vpop.permute.xlu0 %1530
        %1532 = vrot.lane.b32.xlu0 %v378, 32
        %v1533 = vpop.permute.xlu0 %1532
        %1534 = vrot.lane.b32.xlu0 %v380, 32
        %v1535 = vpop.permute.xlu0 %1534
        %1536 = vrot.lane.b32.xlu0 %v383, 32
        %v1537 = vpop.permute.xlu0 %1536
        %1538 = vrot.lane.b32.xlu0 %v385, 32
        %v1539 = vpop.permute.xlu0 %1538
        %1540 = vrot.lane.b32.xlu0 %v388, 32
        %v1541 = vpop.permute.xlu0 %1540
        %1542 = vrot.lane.b32.xlu0 %v390, 32
        %v1543 = vpop.permute.xlu0 %1542
        %1544 = vrot.lane.b32.xlu0 %v393, 32
        %v1545 = vpop.permute.xlu0 %1544
        %1546 = vrot.lane.b32.xlu0 %v395, 32
        %v1547 = vpop.permute.xlu0 %1546
        %1548 = vrot.lane.b32.xlu0 %v398, 32
        %v1549 = vpop.permute.xlu0 %1548
        %1550 = vrot.lane.b32.xlu0 %v400, 32
        %v1551 = vpop.permute.xlu0 %1550
        %1552 = vrot.lane.b32.xlu0 %v403, 32
        %v1553 = vpop.permute.xlu0 %1552
        %1554 = vrot.lane.b32.xlu0 %v405, 32
        %v1555 = vpop.permute.xlu0 %1554
        %1556 = vrot.lane.b32.xlu0 %v408, 32
        %v1557 = vpop.permute.xlu0 %1556
        %1558 = vrot.lane.b32.xlu0 %v410, 32
        %v1559 = vpop.permute.xlu0 %1558
        %1560 = vrot.lane.b32.xlu0 %v413, 32
        %v1561 = vpop.permute.xlu0 %1560
        %1562 = vrot.lane.b32.xlu0 %v415, 32
        %v1563 = vpop.permute.xlu0 %1562
        %1564 = vrot.lane.b32.xlu0 %v418, 32
        %v1565 = vpop.permute.xlu0 %1564
        %1566 = vrot.lane.b32.xlu0 %v420, 32
        %v1567 = vpop.permute.xlu0 %1566
        %1568 = vrot.lane.b32.xlu0 %v423, 32
        %v1569 = vpop.permute.xlu0 %1568
        %1570 = vrot.lane.b32.xlu0 %v425, 32
        %v1571 = vpop.permute.xlu0 %1570
        %1572 = vrot.lane.b32.xlu0 %v428, 32
        %v1573 = vpop.permute.xlu0 %1572
        %1574 = vrot.lane.b32.xlu0 %v430, 32
        %v1575 = vpop.permute.xlu0 %1574
        %1576 = vrot.lane.b32.xlu0 %v1513, 32
        %v1577 = vpop.permute.xlu0 %1576
        %1578 = vrot.lane.b32.xlu0 %v1515, 32
        %v1579 = vpop.permute.xlu0 %1578
        %v1612 = vrot.slane %v296, 2
        %v1613 = vrot.slane %v297, 2
        %v1614 = vsel %vm527, %v1612, %v1613
        %v1615 = vrot.slane %v298, 2
        %v1616 = vsel %vm527, %v1613, %v1615
        %1617 = vrot.lane.b32.xlu0 %v535, 36
        %v1618 = vpop.permute.xlu0 %1617
        %1619 = vrot.lane.b32.xlu0 %v537, 36
        %v1620 = vpop.permute.xlu0 %1619
        %1621 = vrot.lane.b32.xlu0 %v540, 36
        %v1622 = vpop.permute.xlu0 %1621
        %1623 = vrot.lane.b32.xlu0 %v542, 36
        %v1624 = vpop.permute.xlu0 %1623
        %1625 = vrot.lane.b32.xlu0 %v545, 36
        %v1626 = vpop.permute.xlu0 %1625
        %1627 = vrot.lane.b32.xlu0 %v547, 36
        %v1628 = vpop.permute.xlu0 %1627
        %1629 = vrot.lane.b32.xlu0 %v550, 36
        %v1630 = vpop.permute.xlu0 %1629
        %1631 = vrot.lane.b32.xlu0 %v552, 36
        %v1632 = vpop.permute.xlu0 %1631
        %1633 = vrot.lane.b32.xlu0 %v555, 36
        %v1634 = vpop.permute.xlu0 %1633
        %1635 = vrot.lane.b32.xlu0 %v557, 36
        %v1636 = vpop.permute.xlu0 %1635
        %1637 = vrot.lane.b32.xlu0 %v560, 36
        %v1638 = vpop.permute.xlu0 %1637
        %1639 = vrot.lane.b32.xlu0 %v562, 36
        %v1640 = vpop.permute.xlu0 %1639
        %1641 = vrot.lane.b32.xlu0 %v565, 36
        %v1642 = vpop.permute.xlu0 %1641
        %1643 = vrot.lane.b32.xlu0 %v567, 36
        %v1644 = vpop.permute.xlu0 %1643
        %1645 = vrot.lane.b32.xlu0 %v570, 36
        %v1646 = vpop.permute.xlu0 %1645
        %1647 = vrot.lane.b32.xlu0 %v572, 36
        %v1648 = vpop.permute.xlu0 %1647
        %1649 = vrot.lane.b32.xlu0 %v575, 36
        %v1650 = vpop.permute.xlu0 %1649
        %1651 = vrot.lane.b32.xlu0 %v577, 36
        %v1652 = vpop.permute.xlu0 %1651
        %1653 = vrot.lane.b32.xlu0 %v580, 36
        %v1654 = vpop.permute.xlu0 %1653
        %1655 = vrot.lane.b32.xlu0 %v582, 36
        %v1656 = vpop.permute.xlu0 %1655
        %1657 = vrot.lane.b32.xlu0 %v585, 36
        %v1658 = vpop.permute.xlu0 %1657
        %1659 = vrot.lane.b32.xlu0 %v587, 36
        %v1660 = vpop.permute.xlu0 %1659
        %1661 = vrot.lane.b32.xlu0 %v590, 36
        %v1662 = vpop.permute.xlu0 %1661
        %1663 = vrot.lane.b32.xlu0 %v592, 36
        %v1664 = vpop.permute.xlu0 %1663
        %1665 = vrot.lane.b32.xlu0 %v595, 36
        %v1666 = vpop.permute.xlu0 %1665
        %1667 = vrot.lane.b32.xlu0 %v597, 36
        %v1668 = vpop.permute.xlu0 %1667
        %1669 = vrot.lane.b32.xlu0 %v600, 36
        %v1670 = vpop.permute.xlu0 %1669
        %1671 = vrot.lane.b32.xlu0 %v602, 36
        %v1672 = vpop.permute.xlu0 %1671
        %1673 = vrot.lane.b32.xlu0 %v605, 36
        %v1674 = vpop.permute.xlu0 %1673
        %1675 = vrot.lane.b32.xlu0 %v607, 36
        %v1676 = vpop.permute.xlu0 %1675
        %1677 = vrot.lane.b32.xlu0 %v1614, 36
        %v1678 = vpop.permute.xlu0 %1677
        %1679 = vrot.lane.b32.xlu0 %v1616, 36
        %v1680 = vpop.permute.xlu0 %1679
        %v1713 = vrot.slane %v296, 3
        %v1714 = vrot.slane %v297, 3
        %v1715 = vsel %vm704, %v1713, %v1714
        %v1716 = vrot.slane %v298, 3
        %v1717 = vsel %vm704, %v1714, %v1716
        %1718 = vrot.lane.b32.xlu0 %v712, 40
        %v1719 = vpop.permute.xlu0 %1718
        %1720 = vrot.lane.b32.xlu0 %v714, 40
        %v1721 = vpop.permute.xlu0 %1720
        %1722 = vrot.lane.b32.xlu0 %v717, 40
        %v1723 = vpop.permute.xlu0 %1722
        %1724 = vrot.lane.b32.xlu0 %v719, 40
        %v1725 = vpop.permute.xlu0 %1724
        %1726 = vrot.lane.b32.xlu0 %v722, 40
        %v1727 = vpop.permute.xlu0 %1726
        %1728 = vrot.lane.b32.xlu0 %v724, 40
        %v1729 = vpop.permute.xlu0 %1728
        %1730 = vrot.lane.b32.xlu0 %v727, 40
        %v1731 = vpop.permute.xlu0 %1730
        %1732 = vrot.lane.b32.xlu0 %v729, 40
        %v1733 = vpop.permute.xlu0 %1732
        %1734 = vrot.lane.b32.xlu0 %v732, 40
        %v1735 = vpop.permute.xlu0 %1734
        %1736 = vrot.lane.b32.xlu0 %v734, 40
        %v1737 = vpop.permute.xlu0 %1736
        %1738 = vrot.lane.b32.xlu0 %v737, 40
        %v1739 = vpop.permute.xlu0 %1738
        %1740 = vrot.lane.b32.xlu0 %v739, 40
        %v1741 = vpop.permute.xlu0 %1740
        %1742 = vrot.lane.b32.xlu0 %v742, 40
        %v1743 = vpop.permute.xlu0 %1742
        %1744 = vrot.lane.b32.xlu0 %v744, 40
        %v1745 = vpop.permute.xlu0 %1744
        %1746 = vrot.lane.b32.xlu0 %v747, 40
        %v1747 = vpop.permute.xlu0 %1746
        %1748 = vrot.lane.b32.xlu0 %v749, 40
        %v1749 = vpop.permute.xlu0 %1748
        %1750 = vrot.lane.b32.xlu0 %v752, 40
        %v1751 = vpop.permute.xlu0 %1750
        %1752 = vrot.lane.b32.xlu0 %v754, 40
        %v1753 = vpop.permute.xlu0 %1752
        %1754 = vrot.lane.b32.xlu0 %v757, 40
        %v1755 = vpop.permute.xlu0 %1754
        %1756 = vrot.lane.b32.xlu0 %v759, 40
        %v1757 = vpop.permute.xlu0 %1756
        %1758 = vrot.lane.b32.xlu0 %v762, 40
        %v1759 = vpop.permute.xlu0 %1758
        %1760 = vrot.lane.b32.xlu0 %v764, 40
        %v1761 = vpop.permute.xlu0 %1760
        %1762 = vrot.lane.b32.xlu0 %v767, 40
        %v1763 = vpop.permute.xlu0 %1762
        %1764 = vrot.lane.b32.xlu0 %v769, 40
        %v1765 = vpop.permute.xlu0 %1764
        %1766 = vrot.lane.b32.xlu0 %v772, 40
        %v1767 = vpop.permute.xlu0 %1766
        %1768 = vrot.lane.b32.xlu0 %v774, 40
        %v1769 = vpop.permute.xlu0 %1768
        %1770 = vrot.lane.b32.xlu0 %v777, 40
        %v1771 = vpop.permute.xlu0 %1770
        %1772 = vrot.lane.b32.xlu0 %v779, 40
        %v1773 = vpop.permute.xlu0 %1772
        %1774 = vrot.lane.b32.xlu0 %v782, 40
        %v1775 = vpop.permute.xlu0 %1774
        %1776 = vrot.lane.b32.xlu0 %v784, 40
        %v1777 = vpop.permute.xlu0 %1776
        %1778 = vrot.lane.b32.xlu0 %v1715, 40
        %v1779 = vpop.permute.xlu0 %1778
        %1780 = vrot.lane.b32.xlu0 %v1717, 40
        %v1781 = vpop.permute.xlu0 %1780
        %v1814 = vrot.slane %v296, 4
        %v1815 = vrot.slane %v297, 4
        %v1816 = vsel %vm881, %v1814, %v1815
        %v1817 = vrot.slane %v298, 4
        %v1818 = vsel %vm881, %v1815, %v1817
        %1819 = vrot.lane.b32.xlu0 %v889, 44
        %v1820 = vpop.permute.xlu0 %1819
        %1821 = vrot.lane.b32.xlu0 %v891, 44
        %v1822 = vpop.permute.xlu0 %1821
        %1823 = vrot.lane.b32.xlu0 %v894, 44
        %v1824 = vpop.permute.xlu0 %1823
        %1825 = vrot.lane.b32.xlu0 %v896, 44
        %v1826 = vpop.permute.xlu0 %1825
        %1827 = vrot.lane.b32.xlu0 %v899, 44
        %v1828 = vpop.permute.xlu0 %1827
        %1829 = vrot.lane.b32.xlu0 %v901, 44
        %v1830 = vpop.permute.xlu0 %1829
        %1831 = vrot.lane.b32.xlu0 %v904, 44
        %v1832 = vpop.permute.xlu0 %1831
        %1833 = vrot.lane.b32.xlu0 %v906, 44
        %v1834 = vpop.permute.xlu0 %1833
        %1835 = vrot.lane.b32.xlu0 %v909, 44
        %v1836 = vpop.permute.xlu0 %1835
        %1837 = vrot.lane.b32.xlu0 %v911, 44
        %v1838 = vpop.permute.xlu0 %1837
        %1839 = vrot.lane.b32.xlu0 %v914, 44
        %v1840 = vpop.permute.xlu0 %1839
        %1841 = vrot.lane.b32.xlu0 %v916, 44
        %v1842 = vpop.permute.xlu0 %1841
        %1843 = vrot.lane.b32.xlu0 %v919, 44
        %v1844 = vpop.permute.xlu0 %1843
        %1845 = vrot.lane.b32.xlu0 %v921, 44
        %v1846 = vpop.permute.xlu0 %1845
        %1847 = vrot.lane.b32.xlu0 %v924, 44
        %v1848 = vpop.permute.xlu0 %1847
        %1849 = vrot.lane.b32.xlu0 %v926, 44
        %v1850 = vpop.permute.xlu0 %1849
        %1851 = vrot.lane.b32.xlu0 %v929, 44
        %v1852 = vpop.permute.xlu0 %1851
        %1853 = vrot.lane.b32.xlu0 %v931, 44
        %v1854 = vpop.permute.xlu0 %1853
        %1855 = vrot.lane.b32.xlu0 %v934, 44
        %v1856 = vpop.permute.xlu0 %1855
        %1857 = vrot.lane.b32.xlu0 %v936, 44
        %v1858 = vpop.permute.xlu0 %1857
        %1859 = vrot.lane.b32.xlu0 %v939, 44
        %v1860 = vpop.permute.xlu0 %1859
        %1861 = vrot.lane.b32.xlu0 %v941, 44
        %v1862 = vpop.permute.xlu0 %1861
        %1863 = vrot.lane.b32.xlu0 %v944, 44
        %v1864 = vpop.permute.xlu0 %1863
        %1865 = vrot.lane.b32.xlu0 %v946, 44
        %v1866 = vpop.permute.xlu0 %1865
        %1867 = vrot.lane.b32.xlu0 %v949, 44
        %v1868 = vpop.permute.xlu0 %1867
        %1869 = vrot.lane.b32.xlu0 %v951, 44
        %v1870 = vpop.permute.xlu0 %1869
        %1871 = vrot.lane.b32.xlu0 %v954, 44
        %v1872 = vpop.permute.xlu0 %1871
        %1873 = vrot.lane.b32.xlu0 %v956, 44
        %v1874 = vpop.permute.xlu0 %1873
        %1875 = vrot.lane.b32.xlu0 %v959, 44
        %v1876 = vpop.permute.xlu0 %1875
        %1877 = vrot.lane.b32.xlu0 %v961, 44
        %v1878 = vpop.permute.xlu0 %1877
        %1879 = vrot.lane.b32.xlu0 %v1816, 44
        %v1880 = vpop.permute.xlu0 %1879
        %1881 = vrot.lane.b32.xlu0 %v1818, 44
        %v1882 = vpop.permute.xlu0 %1881
        %v1915 = vrot.slane %v296, 5
        %v1916 = vrot.slane %v297, 5
        %v1917 = vsel %vm1058, %v1915, %v1916
        %v1918 = vrot.slane %v298, 5
        %v1919 = vsel %vm1058, %v1916, %v1918
        %1920 = vrot.lane.b32.xlu0 %v1066, 48
        %v1921 = vpop.permute.xlu0 %1920
        %1922 = vrot.lane.b32.xlu0 %v1068, 48
        %v1923 = vpop.permute.xlu0 %1922
        %1924 = vrot.lane.b32.xlu0 %v1071, 48
        %v1925 = vpop.permute.xlu0 %1924
        %1926 = vrot.lane.b32.xlu0 %v1073, 48
        %v1927 = vpop.permute.xlu0 %1926
        %1928 = vrot.lane.b32.xlu0 %v1076, 48
        %v1929 = vpop.permute.xlu0 %1928
        %1930 = vrot.lane.b32.xlu0 %v1078, 48
        %v1931 = vpop.permute.xlu0 %1930
        %1932 = vrot.lane.b32.xlu0 %v1081, 48
        %v1933 = vpop.permute.xlu0 %1932
        %1934 = vrot.lane.b32.xlu0 %v1083, 48
        %v1935 = vpop.permute.xlu0 %1934
        %1936 = vrot.lane.b32.xlu0 %v1086, 48
        %v1937 = vpop.permute.xlu0 %1936
        %1938 = vrot.lane.b32.xlu0 %v1088, 48
        %v1939 = vpop.permute.xlu0 %1938
        %1940 = vrot.lane.b32.xlu0 %v1091, 48
        %v1941 = vpop.permute.xlu0 %1940
        %1942 = vrot.lane.b32.xlu0 %v1093, 48
        %v1943 = vpop.permute.xlu0 %1942
        %1944 = vrot.lane.b32.xlu0 %v1096, 48
        %v1945 = vpop.permute.xlu0 %1944
        %1946 = vrot.lane.b32.xlu0 %v1098, 48
        %v1947 = vpop.permute.xlu0 %1946
        %1948 = vrot.lane.b32.xlu0 %v1101, 48
        %v1949 = vpop.permute.xlu0 %1948
        %1950 = vrot.lane.b32.xlu0 %v1103, 48
        %v1951 = vpop.permute.xlu0 %1950
        %1952 = vrot.lane.b32.xlu0 %v1106, 48
        %v1953 = vpop.permute.xlu0 %1952
        %1954 = vrot.lane.b32.xlu0 %v1108, 48
        %v1955 = vpop.permute.xlu0 %1954
        %1956 = vrot.lane.b32.xlu0 %v1111, 48
        %v1957 = vpop.permute.xlu0 %1956
        %1958 = vrot.lane.b32.xlu0 %v1113, 48
        %v1959 = vpop.permute.xlu0 %1958
        %1960 = vrot.lane.b32.xlu0 %v1116, 48
        %v1961 = vpop.permute.xlu0 %1960
        %1962 = vrot.lane.b32.xlu0 %v1118, 48
        %v1963 = vpop.permute.xlu0 %1962
        %1964 = vrot.lane.b32.xlu0 %v1121, 48
        %v1965 = vpop.permute.xlu0 %1964
        %1966 = vrot.lane.b32.xlu0 %v1123, 48
        %v1967 = vpop.permute.xlu0 %1966
        %1968 = vrot.lane.b32.xlu0 %v1126, 48
        %v1969 = vpop.permute.xlu0 %1968
        %1970 = vrot.lane.b32.xlu0 %v1128, 48
        %v1971 = vpop.permute.xlu0 %1970
        %1972 = vrot.lane.b32.xlu0 %v1131, 48
        %v1973 = vpop.permute.xlu0 %1972
        %1974 = vrot.lane.b32.xlu0 %v1133, 48
        %v1975 = vpop.permute.xlu0 %1974
        %1976 = vrot.lane.b32.xlu0 %v1136, 48
        %v1977 = vpop.permute.xlu0 %1976
        %1978 = vrot.lane.b32.xlu0 %v1138, 48
        %v1979 = vpop.permute.xlu0 %1978
        %1980 = vrot.lane.b32.xlu0 %v1917, 48
        %v1981 = vpop.permute.xlu0 %1980
        %1982 = vrot.lane.b32.xlu0 %v1919, 48
        %v1983 = vpop.permute.xlu0 %1982
        %v2016 = vrot.slane %v296, 6
        %v2017 = vrot.slane %v297, 6
        %v2018 = vsel %vm1235, %v2016, %v2017
        %v2019 = vrot.slane %v298, 6
        %v2020 = vsel %vm1235, %v2017, %v2019
        %2021 = vrot.lane.b32.xlu0 %v1243, 52
        %v2022 = vpop.permute.xlu0 %2021
        %2023 = vrot.lane.b32.xlu0 %v1245, 52
        %v2024 = vpop.permute.xlu0 %2023
        %2025 = vrot.lane.b32.xlu0 %v1248, 52
        %v2026 = vpop.permute.xlu0 %2025
        %2027 = vrot.lane.b32.xlu0 %v1250, 52
        %v2028 = vpop.permute.xlu0 %2027
        %2029 = vrot.lane.b32.xlu0 %v1253, 52
        %v2030 = vpop.permute.xlu0 %2029
        %2031 = vrot.lane.b32.xlu0 %v1255, 52
        %v2032 = vpop.permute.xlu0 %2031
        %2033 = vrot.lane.b32.xlu0 %v1258, 52
        %v2034 = vpop.permute.xlu0 %2033
        %2035 = vrot.lane.b32.xlu0 %v1260, 52
        %v2036 = vpop.permute.xlu0 %2035
        %2037 = vrot.lane.b32.xlu0 %v1263, 52
        %v2038 = vpop.permute.xlu0 %2037
        %2039 = vrot.lane.b32.xlu0 %v1265, 52
        %v2040 = vpop.permute.xlu0 %2039
        %2041 = vrot.lane.b32.xlu0 %v1268, 52
        %v2042 = vpop.permute.xlu0 %2041
        %2043 = vrot.lane.b32.xlu0 %v1270, 52
        %v2044 = vpop.permute.xlu0 %2043
        %2045 = vrot.lane.b32.xlu0 %v1273, 52
        %v2046 = vpop.permute.xlu0 %2045
        %2047 = vrot.lane.b32.xlu0 %v1275, 52
        %v2048 = vpop.permute.xlu0 %2047
        %2049 = vrot.lane.b32.xlu0 %v1278, 52
        %v2050 = vpop.permute.xlu0 %2049
        %2051 = vrot.lane.b32.xlu0 %v1280, 52
        %v2052 = vpop.permute.xlu0 %2051
        %2053 = vrot.lane.b32.xlu0 %v1283, 52
        %v2054 = vpop.permute.xlu0 %2053
        %2055 = vrot.lane.b32.xlu0 %v1285, 52
        %v2056 = vpop.permute.xlu0 %2055
        %2057 = vrot.lane.b32.xlu0 %v1288, 52
        %v2058 = vpop.permute.xlu0 %2057
        %2059 = vrot.lane.b32.xlu0 %v1290, 52
        %v2060 = vpop.permute.xlu0 %2059
        %2061 = vrot.lane.b32.xlu0 %v1293, 52
        %v2062 = vpop.permute.xlu0 %2061
        %2063 = vrot.lane.b32.xlu0 %v1295, 52
        %v2064 = vpop.permute.xlu0 %2063
        %2065 = vrot.lane.b32.xlu0 %v1298, 52
        %v2066 = vpop.permute.xlu0 %2065
        %2067 = vrot.lane.b32.xlu0 %v1300, 52
        %v2068 = vpop.permute.xlu0 %2067
        %2069 = vrot.lane.b32.xlu0 %v1303, 52
        %v2070 = vpop.permute.xlu0 %2069
        %2071 = vrot.lane.b32.xlu0 %v1305, 52
        %v2072 = vpop.permute.xlu0 %2071
        %2073 = vrot.lane.b32.xlu0 %v1308, 52
        %v2074 = vpop.permute.xlu0 %2073
        %2075 = vrot.lane.b32.xlu0 %v1310, 52
        %v2076 = vpop.permute.xlu0 %2075
        %2077 = vrot.lane.b32.xlu0 %v1313, 52
        %v2078 = vpop.permute.xlu0 %2077
        %2079 = vrot.lane.b32.xlu0 %v1315, 52
        %v2080 = vpop.permute.xlu0 %2079
        %2081 = vrot.lane.b32.xlu0 %v2018, 52
        %v2082 = vpop.permute.xlu0 %2081
        %2083 = vrot.lane.b32.xlu0 %v2020, 52
        %v2084 = vpop.permute.xlu0 %2083
        %2119 = vrot.lane.b32.xlu0 %v254, 56
        %v2120 = vpop.permute.xlu0 %2119
        %2121 = vrot.lane.b32.xlu0 %v255, 56
        %v2122 = vpop.permute.xlu0 %2121
        %2123 = vrot.lane.b32.xlu0 %v257, 56
        %v2124 = vpop.permute.xlu0 %2123
        %2125 = vrot.lane.b32.xlu0 %v258, 56
        %v2126 = vpop.permute.xlu0 %2125
        %2127 = vrot.lane.b32.xlu0 %v260, 56
        %v2128 = vpop.permute.xlu0 %2127
        %2129 = vrot.lane.b32.xlu0 %v261, 56
        %v2130 = vpop.permute.xlu0 %2129
        %2131 = vrot.lane.b32.xlu0 %v263, 56
        %v2132 = vpop.permute.xlu0 %2131
        %2133 = vrot.lane.b32.xlu0 %v264, 56
        %v2134 = vpop.permute.xlu0 %2133
        %2135 = vrot.lane.b32.xlu0 %v266, 56
        %v2136 = vpop.permute.xlu0 %2135
        %2137 = vrot.lane.b32.xlu0 %v267, 56
        %v2138 = vpop.permute.xlu0 %2137
        %2139 = vrot.lane.b32.xlu0 %v269, 56
        %v2140 = vpop.permute.xlu0 %2139
        %2141 = vrot.lane.b32.xlu0 %v270, 56
        %v2142 = vpop.permute.xlu0 %2141
        %2143 = vrot.lane.b32.xlu0 %v272, 56
        %v2144 = vpop.permute.xlu0 %2143
        %2145 = vrot.lane.b32.xlu0 %v273, 56
        %v2146 = vpop.permute.xlu0 %2145
        %2147 = vrot.lane.b32.xlu0 %v275, 56
        %v2148 = vpop.permute.xlu0 %2147
        %2149 = vrot.lane.b32.xlu0 %v276, 56
        %v2150 = vpop.permute.xlu0 %2149
        %2151 = vrot.lane.b32.xlu0 %v278, 56
        %v2152 = vpop.permute.xlu0 %2151
        %2153 = vrot.lane.b32.xlu0 %v279, 56
        %v2154 = vpop.permute.xlu0 %2153
        %2155 = vrot.lane.b32.xlu0 %v281, 56
        %v2156 = vpop.permute.xlu0 %2155
        %2157 = vrot.lane.b32.xlu0 %v282, 56
        %v2158 = vpop.permute.xlu0 %2157
        %2159 = vrot.lane.b32.xlu0 %v284, 56
        %v2160 = vpop.permute.xlu0 %2159
        %2161 = vrot.lane.b32.xlu0 %v285, 56
        %v2162 = vpop.permute.xlu0 %2161
        %2163 = vrot.lane.b32.xlu0 %v287, 56
        %v2164 = vpop.permute.xlu0 %2163
        %2165 = vrot.lane.b32.xlu0 %v288, 56
        %v2166 = vpop.permute.xlu0 %2165
        %2167 = vrot.lane.b32.xlu0 %v290, 56
        %v2168 = vpop.permute.xlu0 %2167
        %2169 = vrot.lane.b32.xlu0 %v291, 56
        %v2170 = vpop.permute.xlu0 %2169
        %2171 = vrot.lane.b32.xlu0 %v293, 56
        %v2172 = vpop.permute.xlu0 %2171
        %2173 = vrot.lane.b32.xlu0 %v294, 56
        %v2174 = vpop.permute.xlu0 %2173
        %2175 = vrot.lane.b32.xlu0 %v296, 56
        %v2176 = vpop.permute.xlu0 %2175
        %2177 = vrot.lane.b32.xlu0 %v297, 56
        %v2178 = vpop.permute.xlu0 %2177
        %2179 = vrot.lane.b32.xlu0 %v299, 56
        %v2180 = vpop.permute.xlu0 %2179
        %2181 = vrot.lane.b32.xlu0 %v300, 56
        %v2182 = vpop.permute.xlu0 %2181
        %v2216 = vrot.slane %v299, 1
        %v2217 = vrot.slane %v300, 1
        %v2218 = vsel %vm350, %v2216, %v2217
        %v2219 = vrot.slane %v301, 1
        %v2220 = vsel %vm350, %v2217, %v2219
        %2221 = vrot.lane.b32.xlu0 %v363, 60
        %v2222 = vpop.permute.xlu0 %2221
        %2223 = vrot.lane.b32.xlu0 %v365, 60
        %v2224 = vpop.permute.xlu0 %2223
        %2225 = vrot.lane.b32.xlu0 %v368, 60
        %v2226 = vpop.permute.xlu0 %2225
        %2227 = vrot.lane.b32.xlu0 %v370, 60
        %v2228 = vpop.permute.xlu0 %2227
        %2229 = vrot.lane.b32.xlu0 %v373, 60
        %v2230 = vpop.permute.xlu0 %2229
        %2231 = vrot.lane.b32.xlu0 %v375, 60
        %v2232 = vpop.permute.xlu0 %2231
        %2233 = vrot.lane.b32.xlu0 %v378, 60
        %v2234 = vpop.permute.xlu0 %2233
        %2235 = vrot.lane.b32.xlu0 %v380, 60
        %v2236 = vpop.permute.xlu0 %2235
        %2237 = vrot.lane.b32.xlu0 %v383, 60
        %v2238 = vpop.permute.xlu0 %2237
        %2239 = vrot.lane.b32.xlu0 %v385, 60
        %v2240 = vpop.permute.xlu0 %2239
        %2241 = vrot.lane.b32.xlu0 %v388, 60
        %v2242 = vpop.permute.xlu0 %2241
        %2243 = vrot.lane.b32.xlu0 %v390, 60
        %v2244 = vpop.permute.xlu0 %2243
        %2245 = vrot.lane.b32.xlu0 %v393, 60
        %v2246 = vpop.permute.xlu0 %2245
        %2247 = vrot.lane.b32.xlu0 %v395, 60
        %v2248 = vpop.permute.xlu0 %2247
        %2249 = vrot.lane.b32.xlu0 %v398, 60
        %v2250 = vpop.permute.xlu0 %2249
        %2251 = vrot.lane.b32.xlu0 %v400, 60
        %v2252 = vpop.permute.xlu0 %2251
        %2253 = vrot.lane.b32.xlu0 %v403, 60
        %v2254 = vpop.permute.xlu0 %2253
        %2255 = vrot.lane.b32.xlu0 %v405, 60
        %v2256 = vpop.permute.xlu0 %2255
        %2257 = vrot.lane.b32.xlu0 %v408, 60
        %v2258 = vpop.permute.xlu0 %2257
        %2259 = vrot.lane.b32.xlu0 %v410, 60
        %v2260 = vpop.permute.xlu0 %2259
        %2261 = vrot.lane.b32.xlu0 %v413, 60
        %v2262 = vpop.permute.xlu0 %2261
        %2263 = vrot.lane.b32.xlu0 %v415, 60
        %v2264 = vpop.permute.xlu0 %2263
        %2265 = vrot.lane.b32.xlu0 %v418, 60
        %v2266 = vpop.permute.xlu0 %2265
        %2267 = vrot.lane.b32.xlu0 %v420, 60
        %v2268 = vpop.permute.xlu0 %2267
        %2269 = vrot.lane.b32.xlu0 %v423, 60
        %v2270 = vpop.permute.xlu0 %2269
        %2271 = vrot.lane.b32.xlu0 %v425, 60
        %v2272 = vpop.permute.xlu0 %2271
        %2273 = vrot.lane.b32.xlu0 %v428, 60
        %v2274 = vpop.permute.xlu0 %2273
        %2275 = vrot.lane.b32.xlu0 %v430, 60
        %v2276 = vpop.permute.xlu0 %2275
        %2277 = vrot.lane.b32.xlu0 %v1513, 60
        %v2278 = vpop.permute.xlu0 %2277
        %2279 = vrot.lane.b32.xlu0 %v1515, 60
        %v2280 = vpop.permute.xlu0 %2279
        %2281 = vrot.lane.b32.xlu0 %v2218, 60
        %v2282 = vpop.permute.xlu0 %2281
        %2283 = vrot.lane.b32.xlu0 %v2220, 60
        %v2284 = vpop.permute.xlu0 %2283
        %vm2317 = vcmask 31744
        %v2318 = vsel %vm2317, %v248, %v432
        %v2319 = vsel %vm2317, %v249, %v434
        %v2320 = vsel %vm2317, %v251, %v436
        %v2321 = vsel %vm2317, %v252, %v438
        %v2322 = vsel %vm2317, %v254, %v440
        %v2323 = vsel %vm2317, %v255, %v442
        %v2324 = vsel %vm2317, %v257, %v444
        %v2325 = vsel %vm2317, %v258, %v446
        %v2326 = vsel %vm2317, %v260, %v448
        %v2327 = vsel %vm2317, %v261, %v450
        %v2328 = vsel %vm2317, %v263, %v452
        %v2329 = vsel %vm2317, %v264, %v454
        %v2330 = vsel %vm2317, %v266, %v456
        %v2331 = vsel %vm2317, %v267, %v458
        %v2332 = vsel %vm2317, %v269, %v460
        %v2333 = vsel %vm2317, %v270, %v462
        %v2334 = vsel %vm2317, %v272, %v464
        %v2335 = vsel %vm2317, %v273, %v466
        %v2336 = vsel %vm2317, %v275, %v468
        %v2337 = vsel %vm2317, %v276, %v470
        %v2338 = vsel %vm2317, %v278, %v472
        %v2339 = vsel %vm2317, %v279, %v474
        %v2340 = vsel %vm2317, %v281, %v476
        %v2341 = vsel %vm2317, %v282, %v478
        %v2342 = vsel %vm2317, %v284, %v480
        %v2343 = vsel %vm2317, %v285, %v482
        %v2344 = vsel %vm2317, %v287, %v484
        %v2345 = vsel %vm2317, %v288, %v486
        %v2346 = vsel %vm2317, %v290, %v488
        %v2347 = vsel %vm2317, %v291, %v490
        %v2348 = vsel %vm2317, %v293, %v492
        %v2349 = vsel %vm2317, %v294, %v494
        %vm2350 = vcmask 64512
        %v2351 = vsel %vm2350, %v2318, %v609
        %v2352 = vsel %vm2350, %v2319, %v611
        %v2353 = vsel %vm2350, %v2320, %v613
        %v2354 = vsel %vm2350, %v2321, %v615
        %v2355 = vsel %vm2350, %v2322, %v617
        %v2356 = vsel %vm2350, %v2323, %v619
        %v2357 = vsel %vm2350, %v2324, %v621
        %v2358 = vsel %vm2350, %v2325, %v623
        %v2359 = vsel %vm2350, %v2326, %v625
        %v2360 = vsel %vm2350, %v2327, %v627
        %v2361 = vsel %vm2350, %v2328, %v629
        %v2362 = vsel %vm2350, %v2329, %v631
        %v2363 = vsel %vm2350, %v2330, %v633
        %v2364 = vsel %vm2350, %v2331, %v635
        %v2365 = vsel %vm2350, %v2332, %v637
        %v2366 = vsel %vm2350, %v2333, %v639
        %v2367 = vsel %vm2350, %v2334, %v641
        %v2368 = vsel %vm2350, %v2335, %v643
        %v2369 = vsel %vm2350, %v2336, %v645
        %v2370 = vsel %vm2350, %v2337, %v647
        %v2371 = vsel %vm2350, %v2338, %v649
        %v2372 = vsel %vm2350, %v2339, %v651
        %v2373 = vsel %vm2350, %v2340, %v653
        %v2374 = vsel %vm2350, %v2341, %v655
        %v2375 = vsel %vm2350, %v2342, %v657
        %v2376 = vsel %vm2350, %v2343, %v659
        %v2377 = vsel %vm2350, %v2344, %v661
        %v2378 = vsel %vm2350, %v2345, %v663
        %v2379 = vsel %vm2350, %v2346, %v665
        %v2380 = vsel %vm2350, %v2347, %v667
        %v2381 = vsel %vm2350, %v2348, %v669
        %v2382 = vsel %vm2350, %v2349, %v671
        %vm2383 = vcmask 97280
        %v2384 = vsel %vm2383, %v2351, %v786
        %v2385 = vsel %vm2383, %v2352, %v788
        %v2386 = vsel %vm2383, %v2353, %v790
        %v2387 = vsel %vm2383, %v2354, %v792
        %v2388 = vsel %vm2383, %v2355, %v794
        %v2389 = vsel %vm2383, %v2356, %v796
        %v2390 = vsel %vm2383, %v2357, %v798
        %v2391 = vsel %vm2383, %v2358, %v800
        %v2392 = vsel %vm2383, %v2359, %v802
        %v2393 = vsel %vm2383, %v2360, %v804
        %v2394 = vsel %vm2383, %v2361, %v806
        %v2395 = vsel %vm2383, %v2362, %v808
        %v2396 = vsel %vm2383, %v2363, %v810
        %v2397 = vsel %vm2383, %v2364, %v812
        %v2398 = vsel %vm2383, %v2365, %v814
        %v2399 = vsel %vm2383, %v2366, %v816
        %v2400 = vsel %vm2383, %v2367, %v818
        %v2401 = vsel %vm2383, %v2368, %v820
        %v2402 = vsel %vm2383, %v2369, %v822
        %v2403 = vsel %vm2383, %v2370, %v824
        %v2404 = vsel %vm2383, %v2371, %v826
        %v2405 = vsel %vm2383, %v2372, %v828
        %v2406 = vsel %vm2383, %v2373, %v830
        %v2407 = vsel %vm2383, %v2374, %v832
        %v2408 = vsel %vm2383, %v2375, %v834
        %v2409 = vsel %vm2383, %v2376, %v836
        %v2410 = vsel %vm2383, %v2377, %v838
        %v2411 = vsel %vm2383, %v2378, %v840
        %v2412 = vsel %vm2383, %v2379, %v842
        %v2413 = vsel %vm2383, %v2380, %v844
        %v2414 = vsel %vm2383, %v2381, %v846
        %v2415 = vsel %vm2383, %v2382, %v848
        %vm2416 = vcmask 130048
        %v2417 = vsel %vm2416, %v2384, %v963
        %v2418 = vsel %vm2416, %v2385, %v965
        %v2419 = vsel %vm2416, %v2386, %v967
        %v2420 = vsel %vm2416, %v2387, %v969
        %v2421 = vsel %vm2416, %v2388, %v971
        %v2422 = vsel %vm2416, %v2389, %v973
        %v2423 = vsel %vm2416, %v2390, %v975
        %v2424 = vsel %vm2416, %v2391, %v977
        %v2425 = vsel %vm2416, %v2392, %v979
        %v2426 = vsel %vm2416, %v2393, %v981
        %v2427 = vsel %vm2416, %v2394, %v983
        %v2428 = vsel %vm2416, %v2395, %v985
        %v2429 = vsel %vm2416, %v2396, %v987
        %v2430 = vsel %vm2416, %v2397, %v989
        %v2431 = vsel %vm2416, %v2398, %v991
        %v2432 = vsel %vm2416, %v2399, %v993
        %v2433 = vsel %vm2416, %v2400, %v995
        %v2434 = vsel %vm2416, %v2401, %v997
        %v2435 = vsel %vm2416, %v2402, %v999
        %v2436 = vsel %vm2416, %v2403, %v1001
        %v2437 = vsel %vm2416, %v2404, %v1003
        %v2438 = vsel %vm2416, %v2405, %v1005
        %v2439 = vsel %vm2416, %v2406, %v1007
        %v2440 = vsel %vm2416, %v2407, %v1009
        %v2441 = vsel %vm2416, %v2408, %v1011
        %v2442 = vsel %vm2416, %v2409, %v1013
        %v2443 = vsel %vm2416, %v2410, %v1015
        %v2444 = vsel %vm2416, %v2411, %v1017
        %v2445 = vsel %vm2416, %v2412, %v1019
        %v2446 = vsel %vm2416, %v2413, %v1021
        %v2447 = vsel %vm2416, %v2414, %v1023
        %v2448 = vsel %vm2416, %v2415, %v1025
        %vm2449 = vcmask 162816
        %v2450 = vsel %vm2449, %v2417, %v1140
        %v2451 = vsel %vm2449, %v2418, %v1142
        %v2452 = vsel %vm2449, %v2419, %v1144
        %v2453 = vsel %vm2449, %v2420, %v1146
        %v2454 = vsel %vm2449, %v2421, %v1148
        %v2455 = vsel %vm2449, %v2422, %v1150
        %v2456 = vsel %vm2449, %v2423, %v1152
        %v2457 = vsel %vm2449, %v2424, %v1154
        %v2458 = vsel %vm2449, %v2425, %v1156
        %v2459 = vsel %vm2449, %v2426, %v1158
        %v2460 = vsel %vm2449, %v2427, %v1160
        %v2461 = vsel %vm2449, %v2428, %v1162
        %v2462 = vsel %vm2449, %v2429, %v1164
        %v2463 = vsel %vm2449, %v2430, %v1166
        %v2464 = vsel %vm2449, %v2431, %v1168
        %v2465 = vsel %vm2449, %v2432, %v1170
        %v2466 = vsel %vm2449, %v2433, %v1172
        %v2467 = vsel %vm2449, %v2434, %v1174
        %v2468 = vsel %vm2449, %v2435, %v1176
        %v2469 = vsel %vm2449, %v2436, %v1178
        %v2470 = vsel %vm2449, %v2437, %v1180
        %v2471 = vsel %vm2449, %v2438, %v1182
        %v2472 = vsel %vm2449, %v2439, %v1184
        %v2473 = vsel %vm2449, %v2440, %v1186
        %v2474 = vsel %vm2449, %v2441, %v1188
        %v2475 = vsel %vm2449, %v2442, %v1190
        %v2476 = vsel %vm2449, %v2443, %v1192
        %v2477 = vsel %vm2449, %v2444, %v1194
        %v2478 = vsel %vm2449, %v2445, %v1196
        %v2479 = vsel %vm2449, %v2446, %v1198
        %v2480 = vsel %vm2449, %v2447, %v1200
        %v2481 = vsel %vm2449, %v2448, %v1202
        %vm2482 = vcmask 195584
        %v2483 = vsel %vm2482, %v2450, %v1317
        %v2484 = vsel %vm2482, %v2451, %v1319
        %v2485 = vsel %vm2482, %v2452, %v1321
        %v2486 = vsel %vm2482, %v2453, %v1323
        %v2487 = vsel %vm2482, %v2454, %v1325
        %v2488 = vsel %vm2482, %v2455, %v1327
        %v2489 = vsel %vm2482, %v2456, %v1329
        %v2490 = vsel %vm2482, %v2457, %v1331
        %v2491 = vsel %vm2482, %v2458, %v1333
        %v2492 = vsel %vm2482, %v2459, %v1335
        %v2493 = vsel %vm2482, %v2460, %v1337
        %v2494 = vsel %vm2482, %v2461, %v1339
        %v2495 = vsel %vm2482, %v2462, %v1341
        %v2496 = vsel %vm2482, %v2463, %v1343
        %v2497 = vsel %vm2482, %v2464, %v1345
        %v2498 = vsel %vm2482, %v2465, %v1347
        %v2499 = vsel %vm2482, %v2466, %v1349
        %v2500 = vsel %vm2482, %v2467, %v1351
        %v2501 = vsel %vm2482, %v2468, %v1353
        %v2502 = vsel %vm2482, %v2469, %v1355
        %v2503 = vsel %vm2482, %v2470, %v1357
        %v2504 = vsel %vm2482, %v2471, %v1359
        %v2505 = vsel %vm2482, %v2472, %v1361
        %v2506 = vsel %vm2482, %v2473, %v1363
        %v2507 = vsel %vm2482, %v2474, %v1365
        %v2508 = vsel %vm2482, %v2475, %v1367
        %v2509 = vsel %vm2482, %v2476, %v1369
        %v2510 = vsel %vm2482, %v2477, %v1371
        %v2511 = vsel %vm2482, %v2478, %v1373
        %v2512 = vsel %vm2482, %v2479, %v1375
        %v2513 = vsel %vm2482, %v2480, %v1377
        %v2514 = vsel %vm2482, %v2481, %v1379
        %vm2515 = vcmask 228352
        %v2516 = vsel %vm2515, %v2483, %v1415
        %v2517 = vsel %vm2515, %v2484, %v1417
        %v2518 = vsel %vm2515, %v2485, %v1419
        %v2519 = vsel %vm2515, %v2486, %v1421
        %v2520 = vsel %vm2515, %v2487, %v1423
        %v2521 = vsel %vm2515, %v2488, %v1425
        %v2522 = vsel %vm2515, %v2489, %v1427
        %v2523 = vsel %vm2515, %v2490, %v1429
        %v2524 = vsel %vm2515, %v2491, %v1431
        %v2525 = vsel %vm2515, %v2492, %v1433
        %v2526 = vsel %vm2515, %v2493, %v1435
        %v2527 = vsel %vm2515, %v2494, %v1437
        %v2528 = vsel %vm2515, %v2495, %v1439
        %v2529 = vsel %vm2515, %v2496, %v1441
        %v2530 = vsel %vm2515, %v2497, %v1443
        %v2531 = vsel %vm2515, %v2498, %v1445
        %v2532 = vsel %vm2515, %v2499, %v1447
        %v2533 = vsel %vm2515, %v2500, %v1449
        %v2534 = vsel %vm2515, %v2501, %v1451
        %v2535 = vsel %vm2515, %v2502, %v1453
        %v2536 = vsel %vm2515, %v2503, %v1455
        %v2537 = vsel %vm2515, %v2504, %v1457
        %v2538 = vsel %vm2515, %v2505, %v1459
        %v2539 = vsel %vm2515, %v2506, %v1461
        %v2540 = vsel %vm2515, %v2507, %v1463
        %v2541 = vsel %vm2515, %v2508, %v1465
        %v2542 = vsel %vm2515, %v2509, %v1467
        %v2543 = vsel %vm2515, %v2510, %v1469
        %v2544 = vsel %vm2515, %v2511, %v1471
        %v2545 = vsel %vm2515, %v2512, %v1473
        %v2546 = vsel %vm2515, %v2513, %v1475
        %v2547 = vsel %vm2515, %v2514, %v1477
        %vm2548 = vcmask 261120
        %v2549 = vsel %vm2548, %v2516, %v1517
        %v2550 = vsel %vm2548, %v2517, %v1519
        %v2551 = vsel %vm2548, %v2518, %v1521
        %v2552 = vsel %vm2548, %v2519, %v1523
        %v2553 = vsel %vm2548, %v2520, %v1525
        %v2554 = vsel %vm2548, %v2521, %v1527
        %v2555 = vsel %vm2548, %v2522, %v1529
        %v2556 = vsel %vm2548, %v2523, %v1531
        %v2557 = vsel %vm2548, %v2524, %v1533
        %v2558 = vsel %vm2548, %v2525, %v1535
        %v2559 = vsel %vm2548, %v2526, %v1537
        %v2560 = vsel %vm2548, %v2527, %v1539
        %v2561 = vsel %vm2548, %v2528, %v1541
        %v2562 = vsel %vm2548, %v2529, %v1543
        %v2563 = vsel %vm2548, %v2530, %v1545
        %v2564 = vsel %vm2548, %v2531, %v1547
        %v2565 = vsel %vm2548, %v2532, %v1549
        %v2566 = vsel %vm2548, %v2533, %v1551
        %v2567 = vsel %vm2548, %v2534, %v1553
        %v2568 = vsel %vm2548, %v2535, %v1555
        %v2569 = vsel %vm2548, %v2536, %v1557
        %v2570 = vsel %vm2548, %v2537, %v1559
        %v2571 = vsel %vm2548, %v2538, %v1561
        %v2572 = vsel %vm2548, %v2539, %v1563
        %v2573 = vsel %vm2548, %v2540, %v1565
        %v2574 = vsel %vm2548, %v2541, %v1567
        %v2575 = vsel %vm2548, %v2542, %v1569
        %v2576 = vsel %vm2548, %v2543, %v1571
        %v2577 = vsel %vm2548, %v2544, %v1573
        %v2578 = vsel %vm2548, %v2545, %v1575
        %v2579 = vsel %vm2548, %v2546, %v1577
        %v2580 = vsel %vm2548, %v2547, %v1579
        %vm2581 = vcmask 293888
        %v2582 = vsel %vm2581, %v2549, %v1618
        %v2583 = vsel %vm2581, %v2550, %v1620
        %v2584 = vsel %vm2581, %v2551, %v1622
        %v2585 = vsel %vm2581, %v2552, %v1624
        %v2586 = vsel %vm2581, %v2553, %v1626
        %v2587 = vsel %vm2581, %v2554, %v1628
        %v2588 = vsel %vm2581, %v2555, %v1630
        %v2589 = vsel %vm2581, %v2556, %v1632
        %v2590 = vsel %vm2581, %v2557, %v1634
        %v2591 = vsel %vm2581, %v2558, %v1636
        %v2592 = vsel %vm2581, %v2559, %v1638
        %v2593 = vsel %vm2581, %v2560, %v1640
        %v2594 = vsel %vm2581, %v2561, %v1642
        %v2595 = vsel %vm2581, %v2562, %v1644
        %v2596 = vsel %vm2581, %v2563, %v1646
        %v2597 = vsel %vm2581, %v2564, %v1648
        %v2598 = vsel %vm2581, %v2565, %v1650
        %v2599 = vsel %vm2581, %v2566, %v1652
        %v2600 = vsel %vm2581, %v2567, %v1654
        %v2601 = vsel %vm2581, %v2568, %v1656
        %v2602 = vsel %vm2581, %v2569, %v1658
        %v2603 = vsel %vm2581, %v2570, %v1660
        %v2604 = vsel %vm2581, %v2571, %v1662
        %v2605 = vsel %vm2581, %v2572, %v1664
        %v2606 = vsel %vm2581, %v2573, %v1666
        %v2607 = vsel %vm2581, %v2574, %v1668
        %v2608 = vsel %vm2581, %v2575, %v1670
        %v2609 = vsel %vm2581, %v2576, %v1672
        %v2610 = vsel %vm2581, %v2577, %v1674
        %v2611 = vsel %vm2581, %v2578, %v1676
        %v2612 = vsel %vm2581, %v2579, %v1678
        %v2613 = vsel %vm2581, %v2580, %v1680
        %vm2614 = vcmask 326656
        %v2615 = vsel %vm2614, %v2582, %v1719
        %v2616 = vsel %vm2614, %v2583, %v1721
        %v2617 = vsel %vm2614, %v2584, %v1723
        %v2618 = vsel %vm2614, %v2585, %v1725
        %v2619 = vsel %vm2614, %v2586, %v1727
        %v2620 = vsel %vm2614, %v2587, %v1729
        %v2621 = vsel %vm2614, %v2588, %v1731
        %v2622 = vsel %vm2614, %v2589, %v1733
        %v2623 = vsel %vm2614, %v2590, %v1735
        %v2624 = vsel %vm2614, %v2591, %v1737
        %v2625 = vsel %vm2614, %v2592, %v1739
        %v2626 = vsel %vm2614, %v2593, %v1741
        %v2627 = vsel %vm2614, %v2594, %v1743
        %v2628 = vsel %vm2614, %v2595, %v1745
        %v2629 = vsel %vm2614, %v2596, %v1747
        %v2630 = vsel %vm2614, %v2597, %v1749
        %v2631 = vsel %vm2614, %v2598, %v1751
        %v2632 = vsel %vm2614, %v2599, %v1753
        %v2633 = vsel %vm2614, %v2600, %v1755
        %v2634 = vsel %vm2614, %v2601, %v1757
        %v2635 = vsel %vm2614, %v2602, %v1759
        %v2636 = vsel %vm2614, %v2603, %v1761
        %v2637 = vsel %vm2614, %v2604, %v1763
        %v2638 = vsel %vm2614, %v2605, %v1765
        %v2639 = vsel %vm2614, %v2606, %v1767
        %v2640 = vsel %vm2614, %v2607, %v1769
        %v2641 = vsel %vm2614, %v2608, %v1771
        %v2642 = vsel %vm2614, %v2609, %v1773
        %v2643 = vsel %vm2614, %v2610, %v1775
        %v2644 = vsel %vm2614, %v2611, %v1777
        %v2645 = vsel %vm2614, %v2612, %v1779
        %v2646 = vsel %vm2614, %v2613, %v1781
        %vm2647 = vcmask 359424
        %v2648 = vsel %vm2647, %v2615, %v1820
        %v2649 = vsel %vm2647, %v2616, %v1822
        %v2650 = vsel %vm2647, %v2617, %v1824
        %v2651 = vsel %vm2647, %v2618, %v1826
        %v2652 = vsel %vm2647, %v2619, %v1828
        %v2653 = vsel %vm2647, %v2620, %v1830
        %v2654 = vsel %vm2647, %v2621, %v1832
        %v2655 = vsel %vm2647, %v2622, %v1834
        %v2656 = vsel %vm2647, %v2623, %v1836
        %v2657 = vsel %vm2647, %v2624, %v1838
        %v2658 = vsel %vm2647, %v2625, %v1840
        %v2659 = vsel %vm2647, %v2626, %v1842
        %v2660 = vsel %vm2647, %v2627, %v1844
        %v2661 = vsel %vm2647, %v2628, %v1846
        %v2662 = vsel %vm2647, %v2629, %v1848
        %v2663 = vsel %vm2647, %v2630, %v1850
        %v2664 = vsel %vm2647, %v2631, %v1852
        %v2665 = vsel %vm2647, %v2632, %v1854
        %v2666 = vsel %vm2647, %v2633, %v1856
        %v2667 = vsel %vm2647, %v2634, %v1858
        %v2668 = vsel %vm2647, %v2635, %v1860
        %v2669 = vsel %vm2647, %v2636, %v1862
        %v2670 = vsel %vm2647, %v2637, %v1864
        %v2671 = vsel %vm2647, %v2638, %v1866
        %v2672 = vsel %vm2647, %v2639, %v1868
        %v2673 = vsel %vm2647, %v2640, %v1870
        %v2674 = vsel %vm2647, %v2641, %v1872
        %v2675 = vsel %vm2647, %v2642, %v1874
        %v2676 = vsel %vm2647, %v2643, %v1876
        %v2677 = vsel %vm2647, %v2644, %v1878
        %v2678 = vsel %vm2647, %v2645, %v1880
        %v2679 = vsel %vm2647, %v2646, %v1882
        %vm2680 = vcmask 392192
        %v2681 = vsel %vm2680, %v2648, %v1921
        %v2682 = vsel %vm2680, %v2649, %v1923
        %v2683 = vsel %vm2680, %v2650, %v1925
        %v2684 = vsel %vm2680, %v2651, %v1927
        %v2685 = vsel %vm2680, %v2652, %v1929
        %v2686 = vsel %vm2680, %v2653, %v1931
        %v2687 = vsel %vm2680, %v2654, %v1933
        %v2688 = vsel %vm2680, %v2655, %v1935
        %v2689 = vsel %vm2680, %v2656, %v1937
        %v2690 = vsel %vm2680, %v2657, %v1939
        %v2691 = vsel %vm2680, %v2658, %v1941
        %v2692 = vsel %vm2680, %v2659, %v1943
        %v2693 = vsel %vm2680, %v2660, %v1945
        %v2694 = vsel %vm2680, %v2661, %v1947
        %v2695 = vsel %vm2680, %v2662, %v1949
        %v2696 = vsel %vm2680, %v2663, %v1951
        %v2697 = vsel %vm2680, %v2664, %v1953
        %v2698 = vsel %vm2680, %v2665, %v1955
        %v2699 = vsel %vm2680, %v2666, %v1957
        %v2700 = vsel %vm2680, %v2667, %v1959
        %v2701 = vsel %vm2680, %v2668, %v1961
        %v2702 = vsel %vm2680, %v2669, %v1963
        %v2703 = vsel %vm2680, %v2670, %v1965
        %v2704 = vsel %vm2680, %v2671, %v1967
        %v2705 = vsel %vm2680, %v2672, %v1969
        %v2706 = vsel %vm2680, %v2673, %v1971
        %v2707 = vsel %vm2680, %v2674, %v1973
        %v2708 = vsel %vm2680, %v2675, %v1975
        %v2709 = vsel %vm2680, %v2676, %v1977
        %v2710 = vsel %vm2680, %v2677, %v1979
        %v2711 = vsel %vm2680, %v2678, %v1981
        %v2712 = vsel %vm2680, %v2679, %v1983
        %vm2713 = vcmask 424960
        %v2714 = vsel %vm2713, %v2681, %v2022
        %v2715 = vsel %vm2713, %v2682, %v2024
        %v2716 = vsel %vm2713, %v2683, %v2026
        %v2717 = vsel %vm2713, %v2684, %v2028
        %v2718 = vsel %vm2713, %v2685, %v2030
        %v2719 = vsel %vm2713, %v2686, %v2032
        %v2720 = vsel %vm2713, %v2687, %v2034
        %v2721 = vsel %vm2713, %v2688, %v2036
        %v2722 = vsel %vm2713, %v2689, %v2038
        %v2723 = vsel %vm2713, %v2690, %v2040
        %v2724 = vsel %vm2713, %v2691, %v2042
        %v2725 = vsel %vm2713, %v2692, %v2044
        %v2726 = vsel %vm2713, %v2693, %v2046
        %v2727 = vsel %vm2713, %v2694, %v2048
        %v2728 = vsel %vm2713, %v2695, %v2050
        %v2729 = vsel %vm2713, %v2696, %v2052
        %v2730 = vsel %vm2713, %v2697, %v2054
        %v2731 = vsel %vm2713, %v2698, %v2056
        %v2732 = vsel %vm2713, %v2699, %v2058
        %v2733 = vsel %vm2713, %v2700, %v2060
        %v2734 = vsel %vm2713, %v2701, %v2062
        %v2735 = vsel %vm2713, %v2702, %v2064
        %v2736 = vsel %vm2713, %v2703, %v2066
        %v2737 = vsel %vm2713, %v2704, %v2068
        %v2738 = vsel %vm2713, %v2705, %v2070
        %v2739 = vsel %vm2713, %v2706, %v2072
        %v2740 = vsel %vm2713, %v2707, %v2074
        %v2741 = vsel %vm2713, %v2708, %v2076
        %v2742 = vsel %vm2713, %v2709, %v2078
        %v2743 = vsel %vm2713, %v2710, %v2080
        %v2744 = vsel %vm2713, %v2711, %v2082
        %v2745 = vsel %vm2713, %v2712, %v2084
        %vm2746 = vcmask 457728
        %v2747 = vsel %vm2746, %v2714, %v2120
        %v2748 = vsel %vm2746, %v2715, %v2122
        %v2749 = vsel %vm2746, %v2716, %v2124
        %v2750 = vsel %vm2746, %v2717, %v2126
        %v2751 = vsel %vm2746, %v2718, %v2128
        %v2752 = vsel %vm2746, %v2719, %v2130
        %v2753 = vsel %vm2746, %v2720, %v2132
        %v2754 = vsel %vm2746, %v2721, %v2134
        %v2755 = vsel %vm2746, %v2722, %v2136
        %v2756 = vsel %vm2746, %v2723, %v2138
        %v2757 = vsel %vm2746, %v2724, %v2140
        %v2758 = vsel %vm2746, %v2725, %v2142
        %v2759 = vsel %vm2746, %v2726, %v2144
        %v2760 = vsel %vm2746, %v2727, %v2146
        %v2761 = vsel %vm2746, %v2728, %v2148
        %v2762 = vsel %vm2746, %v2729, %v2150
        %v2763 = vsel %vm2746, %v2730, %v2152
        %v2764 = vsel %vm2746, %v2731, %v2154
        %v2765 = vsel %vm2746, %v2732, %v2156
        %v2766 = vsel %vm2746, %v2733, %v2158
        %v2767 = vsel %vm2746, %v2734, %v2160
        %v2768 = vsel %vm2746, %v2735, %v2162
        %v2769 = vsel %vm2746, %v2736, %v2164
        %v2770 = vsel %vm2746, %v2737, %v2166
        %v2771 = vsel %vm2746, %v2738, %v2168
        %v2772 = vsel %vm2746, %v2739, %v2170
        %v2773 = vsel %vm2746, %v2740, %v2172
        %v2774 = vsel %vm2746, %v2741, %v2174
        %v2775 = vsel %vm2746, %v2742, %v2176
        %v2776 = vsel %vm2746, %v2743, %v2178
        %v2777 = vsel %vm2746, %v2744, %v2180
        %v2778 = vsel %vm2746, %v2745, %v2182
        %vm2779 = vcmask 490496
        %v2780 = vsel %vm2779, %v2747, %v2222
        %v2781 = vsel %vm2779, %v2748, %v2224
        %v2782 = vsel %vm2779, %v2749, %v2226
        %v2783 = vsel %vm2779, %v2750, %v2228
        %v2784 = vsel %vm2779, %v2751, %v2230
        %v2785 = vsel %vm2779, %v2752, %v2232
        %v2786 = vsel %vm2779, %v2753, %v2234
        %v2787 = vsel %vm2779, %v2754, %v2236
        %v2788 = vsel %vm2779, %v2755, %v2238
        %v2789 = vsel %vm2779, %v2756, %v2240
        %v2790 = vsel %vm2779, %v2757, %v2242
        %v2791 = vsel %vm2779, %v2758, %v2244
        %v2792 = vsel %vm2779, %v2759, %v2246
        %v2793 = vsel %vm2779, %v2760, %v2248
        %v2794 = vsel %vm2779, %v2761, %v2250
        %v2795 = vsel %vm2779, %v2762, %v2252
        %v2796 = vsel %vm2779, %v2763, %v2254
        %v2797 = vsel %vm2779, %v2764, %v2256
        %v2798 = vsel %vm2779, %v2765, %v2258
        %v2799 = vsel %vm2779, %v2766, %v2260
        %v2800 = vsel %vm2779, %v2767, %v2262
        %v2801 = vsel %vm2779, %v2768, %v2264
        %v2802 = vsel %vm2779, %v2769, %v2266
        %v2803 = vsel %vm2779, %v2770, %v2268
        %v2804 = vsel %vm2779, %v2771, %v2270
        %v2805 = vsel %vm2779, %v2772, %v2272
        %v2806 = vsel %vm2779, %v2773, %v2274
        %v2807 = vsel %vm2779, %v2774, %v2276
        %v2808 = vsel %vm2779, %v2775, %v2278
        %v2809 = vsel %vm2779, %v2776, %v2280
        %v2810 = vsel %vm2779, %v2777, %v2282
        %v2811 = vsel %vm2779, %v2778, %v2284
        %2812 = vrot.lane.b32.xlu0 %v364, 4
        %v2813 = vpop.permute.xlu0 %2812
        %2814 = vrot.lane.b32.xlu0 %v369, 4
        %v2815 = vpop.permute.xlu0 %2814
        %2816 = vrot.lane.b32.xlu0 %v374, 4
        %v2817 = vpop.permute.xlu0 %2816
        %2818 = vrot.lane.b32.xlu0 %v379, 4
        %v2819 = vpop.permute.xlu0 %2818
        %2820 = vrot.lane.b32.xlu0 %v384, 4
        %v2821 = vpop.permute.xlu0 %2820
        %2822 = vrot.lane.b32.xlu0 %v389, 4
        %v2823 = vpop.permute.xlu0 %2822
        %2824 = vrot.lane.b32.xlu0 %v394, 4
        %v2825 = vpop.permute.xlu0 %2824
        %2826 = vrot.lane.b32.xlu0 %v399, 4
        %v2827 = vpop.permute.xlu0 %2826
        %2828 = vrot.lane.b32.xlu0 %v404, 4
        %v2829 = vpop.permute.xlu0 %2828
        %2830 = vrot.lane.b32.xlu0 %v409, 4
        %v2831 = vpop.permute.xlu0 %2830
        %2832 = vrot.lane.b32.xlu0 %v414, 4
        %v2833 = vpop.permute.xlu0 %2832
        %2834 = vrot.lane.b32.xlu0 %v419, 4
        %v2835 = vpop.permute.xlu0 %2834
        %2836 = vrot.lane.b32.xlu0 %v424, 4
        %v2837 = vpop.permute.xlu0 %2836
        %2838 = vrot.lane.b32.xlu0 %v429, 4
        %v2839 = vpop.permute.xlu0 %2838
        %2840 = vrot.lane.b32.xlu0 %v1513, 4
        %v2841 = vpop.permute.xlu0 %2840
        %2842 = vrot.lane.b32.xlu0 %v1515, 4
        %v2843 = vpop.permute.xlu0 %2842
        %2844 = vrot.lane.b32.xlu0 %v1514, 4
        %v2845 = vpop.permute.xlu0 %2844
        %2846 = vrot.lane.b32.xlu0 %v2218, 4
        %v2847 = vpop.permute.xlu0 %2846
        %2848 = vrot.lane.b32.xlu0 %v2220, 4
        %v2849 = vpop.permute.xlu0 %2848
        %2850 = vrot.lane.b32.xlu0 %v2219, 4
        %v2851 = vpop.permute.xlu0 %2850
        %v2872 = vrot.slane %v299, 2
        %v2873 = vrot.slane %v300, 2
        %v2874 = vsel %vm527, %v2872, %v2873
        %v2875 = vrot.slane %v301, 2
        %v2876 = vsel %vm527, %v2873, %v2875
        %2877 = vrot.lane.b32.xlu0 %v541, 8
        %v2878 = vpop.permute.xlu0 %2877
        %2879 = vrot.lane.b32.xlu0 %v546, 8
        %v2880 = vpop.permute.xlu0 %2879
        %2881 = vrot.lane.b32.xlu0 %v551, 8
        %v2882 = vpop.permute.xlu0 %2881
        %2883 = vrot.lane.b32.xlu0 %v556, 8
        %v2884 = vpop.permute.xlu0 %2883
        %2885 = vrot.lane.b32.xlu0 %v561, 8
        %v2886 = vpop.permute.xlu0 %2885
        %2887 = vrot.lane.b32.xlu0 %v566, 8
        %v2888 = vpop.permute.xlu0 %2887
        %2889 = vrot.lane.b32.xlu0 %v571, 8
        %v2890 = vpop.permute.xlu0 %2889
        %2891 = vrot.lane.b32.xlu0 %v576, 8
        %v2892 = vpop.permute.xlu0 %2891
        %2893 = vrot.lane.b32.xlu0 %v581, 8
        %v2894 = vpop.permute.xlu0 %2893
        %2895 = vrot.lane.b32.xlu0 %v586, 8
        %v2896 = vpop.permute.xlu0 %2895
        %2897 = vrot.lane.b32.xlu0 %v591, 8
        %v2898 = vpop.permute.xlu0 %2897
        %2899 = vrot.lane.b32.xlu0 %v596, 8
        %v2900 = vpop.permute.xlu0 %2899
        %2901 = vrot.lane.b32.xlu0 %v601, 8
        %v2902 = vpop.permute.xlu0 %2901
        %2903 = vrot.lane.b32.xlu0 %v606, 8
        %v2904 = vpop.permute.xlu0 %2903
        %2905 = vrot.lane.b32.xlu0 %v1614, 8
        %v2906 = vpop.permute.xlu0 %2905
        %2907 = vrot.lane.b32.xlu0 %v1616, 8
        %v2908 = vpop.permute.xlu0 %2907
        %2909 = vrot.lane.b32.xlu0 %v1615, 8
        %v2910 = vpop.permute.xlu0 %2909
        %2911 = vrot.lane.b32.xlu0 %v2874, 8
        %v2912 = vpop.permute.xlu0 %2911
        %2913 = vrot.lane.b32.xlu0 %v2876, 8
        %v2914 = vpop.permute.xlu0 %2913
        %2915 = vrot.lane.b32.xlu0 %v2875, 8
        %v2916 = vpop.permute.xlu0 %2915
        %v2937 = vrot.slane %v299, 3
        %v2938 = vrot.slane %v300, 3
        %v2939 = vsel %vm704, %v2937, %v2938
        %v2940 = vrot.slane %v301, 3
        %v2941 = vsel %vm704, %v2938, %v2940
        %2942 = vrot.lane.b32.xlu0 %v718, 12
        %v2943 = vpop.permute.xlu0 %2942
        %2944 = vrot.lane.b32.xlu0 %v723, 12
        %v2945 = vpop.permute.xlu0 %2944
        %2946 = vrot.lane.b32.xlu0 %v728, 12
        %v2947 = vpop.permute.xlu0 %2946
        %2948 = vrot.lane.b32.xlu0 %v733, 12
        %v2949 = vpop.permute.xlu0 %2948
        %2950 = vrot.lane.b32.xlu0 %v738, 12
        %v2951 = vpop.permute.xlu0 %2950
        %2952 = vrot.lane.b32.xlu0 %v743, 12
        %v2953 = vpop.permute.xlu0 %2952
        %2954 = vrot.lane.b32.xlu0 %v748, 12
        %v2955 = vpop.permute.xlu0 %2954
        %2956 = vrot.lane.b32.xlu0 %v753, 12
        %v2957 = vpop.permute.xlu0 %2956
        %2958 = vrot.lane.b32.xlu0 %v758, 12
        %v2959 = vpop.permute.xlu0 %2958
        %2960 = vrot.lane.b32.xlu0 %v763, 12
        %v2961 = vpop.permute.xlu0 %2960
        %2962 = vrot.lane.b32.xlu0 %v768, 12
        %v2963 = vpop.permute.xlu0 %2962
        %2964 = vrot.lane.b32.xlu0 %v773, 12
        %v2965 = vpop.permute.xlu0 %2964
        %2966 = vrot.lane.b32.xlu0 %v778, 12
        %v2967 = vpop.permute.xlu0 %2966
        %2968 = vrot.lane.b32.xlu0 %v783, 12
        %v2969 = vpop.permute.xlu0 %2968
        %2970 = vrot.lane.b32.xlu0 %v1715, 12
        %v2971 = vpop.permute.xlu0 %2970
        %2972 = vrot.lane.b32.xlu0 %v1717, 12
        %v2973 = vpop.permute.xlu0 %2972
        %2974 = vrot.lane.b32.xlu0 %v1716, 12
        %v2975 = vpop.permute.xlu0 %2974
        %2976 = vrot.lane.b32.xlu0 %v2939, 12
        %v2977 = vpop.permute.xlu0 %2976
        %2978 = vrot.lane.b32.xlu0 %v2941, 12
        %v2979 = vpop.permute.xlu0 %2978
        %2980 = vrot.lane.b32.xlu0 %v2940, 12
        %v2981 = vpop.permute.xlu0 %2980
        %v3002 = vrot.slane %v299, 4
        %v3003 = vrot.slane %v300, 4
        %v3004 = vsel %vm881, %v3002, %v3003
        %v3005 = vrot.slane %v301, 4
        %v3006 = vsel %vm881, %v3003, %v3005
        %3007 = vrot.lane.b32.xlu0 %v895, 16
        %v3008 = vpop.permute.xlu0 %3007
        %3009 = vrot.lane.b32.xlu0 %v900, 16
        %v3010 = vpop.permute.xlu0 %3009
        %3011 = vrot.lane.b32.xlu0 %v905, 16
        %v3012 = vpop.permute.xlu0 %3011
        %3013 = vrot.lane.b32.xlu0 %v910, 16
        %v3014 = vpop.permute.xlu0 %3013
        %3015 = vrot.lane.b32.xlu0 %v915, 16
        %v3016 = vpop.permute.xlu0 %3015
        %3017 = vrot.lane.b32.xlu0 %v920, 16
        %v3018 = vpop.permute.xlu0 %3017
        %3019 = vrot.lane.b32.xlu0 %v925, 16
        %v3020 = vpop.permute.xlu0 %3019
        %3021 = vrot.lane.b32.xlu0 %v930, 16
        %v3022 = vpop.permute.xlu0 %3021
        %3023 = vrot.lane.b32.xlu0 %v935, 16
        %v3024 = vpop.permute.xlu0 %3023
        %3025 = vrot.lane.b32.xlu0 %v940, 16
        %v3026 = vpop.permute.xlu0 %3025
        %3027 = vrot.lane.b32.xlu0 %v945, 16
        %v3028 = vpop.permute.xlu0 %3027
        %3029 = vrot.lane.b32.xlu0 %v950, 16
        %v3030 = vpop.permute.xlu0 %3029
        %3031 = vrot.lane.b32.xlu0 %v955, 16
        %v3032 = vpop.permute.xlu0 %3031
        %3033 = vrot.lane.b32.xlu0 %v960, 16
        %v3034 = vpop.permute.xlu0 %3033
        %3035 = vrot.lane.b32.xlu0 %v1816, 16
        %v3036 = vpop.permute.xlu0 %3035
        %3037 = vrot.lane.b32.xlu0 %v1818, 16
        %v3038 = vpop.permute.xlu0 %3037
        %3039 = vrot.lane.b32.xlu0 %v1817, 16
        %v3040 = vpop.permute.xlu0 %3039
        %3041 = vrot.lane.b32.xlu0 %v3004, 16
        %v3042 = vpop.permute.xlu0 %3041
        %3043 = vrot.lane.b32.xlu0 %v3006, 16
        %v3044 = vpop.permute.xlu0 %3043
        %3045 = vrot.lane.b32.xlu0 %v3005, 16
        %v3046 = vpop.permute.xlu0 %3045
        %v3067 = vsel %vm2317, %v256, %v2813
        %v3068 = vsel %vm2317, %v259, %v2815
        %v3069 = vsel %vm2317, %v262, %v2817
        %v3070 = vsel %vm2317, %v265, %v2819
        %v3071 = vsel %vm2317, %v268, %v2821
        %v3072 = vsel %vm2317, %v271, %v2823
        %v3073 = vsel %vm2317, %v274, %v2825
        %v3074 = vsel %vm2317, %v277, %v2827
        %v3075 = vsel %vm2317, %v280, %v2829
        %v3076 = vsel %vm2317, %v283, %v2831
        %v3077 = vsel %vm2317, %v286, %v2833
        %v3078 = vsel %vm2317, %v289, %v2835
        %v3079 = vsel %vm2317, %v292, %v2837
        %v3080 = vsel %vm2317, %v295, %v2839
        %v3081 = vsel %vm2317, %v296, %v2841
        %v3082 = vsel %vm2317, %v297, %v2843
        %v3083 = vsel %vm2317, %v298, %v2845
        %v3084 = vsel %vm2317, %v299, %v2847
        %v3085 = vsel %vm2317, %v300, %v2849
        %v3086 = vsel %vm2317, %v301, %v2851
        %v3087 = vsel %vm2350, %v3067, %v2878
        %v3088 = vsel %vm2350, %v3068, %v2880
        %v3089 = vsel %vm2350, %v3069, %v2882
        %v3090 = vsel %vm2350, %v3070, %v2884
        %v3091 = vsel %vm2350, %v3071, %v2886
        %v3092 = vsel %vm2350, %v3072, %v2888
        %v3093 = vsel %vm2350, %v3073, %v2890
        %v3094 = vsel %vm2350, %v3074, %v2892
        %v3095 = vsel %vm2350, %v3075, %v2894
        %v3096 = vsel %vm2350, %v3076, %v2896
        %v3097 = vsel %vm2350, %v3077, %v2898
        %v3098 = vsel %vm2350, %v3078, %v2900
        %v3099 = vsel %vm2350, %v3079, %v2902
        %v3100 = vsel %vm2350, %v3080, %v2904
        %v3101 = vsel %vm2350, %v3081, %v2906
        %v3102 = vsel %vm2350, %v3082, %v2908
        %v3103 = vsel %vm2350, %v3083, %v2910
        %v3104 = vsel %vm2350, %v3084, %v2912
        %v3105 = vsel %vm2350, %v3085, %v2914
        %v3106 = vsel %vm2350, %v3086, %v2916
        %v3107 = vsel %vm2383, %v3087, %v2943
        %v3108 = vsel %vm2383, %v3088, %v2945
        %v3109 = vsel %vm2383, %v3089, %v2947
        %v3110 = vsel %vm2383, %v3090, %v2949
        %v3111 = vsel %vm2383, %v3091, %v2951
        %v3112 = vsel %vm2383, %v3092, %v2953
        %v3113 = vsel %vm2383, %v3093, %v2955
        %v3114 = vsel %vm2383, %v3094, %v2957
        %v3115 = vsel %vm2383, %v3095, %v2959
        %v3116 = vsel %vm2383, %v3096, %v2961
        %v3117 = vsel %vm2383, %v3097, %v2963
        %v3118 = vsel %vm2383, %v3098, %v2965
        %v3119 = vsel %vm2383, %v3099, %v2967
        %v3120 = vsel %vm2383, %v3100, %v2969
        %v3121 = vsel %vm2383, %v3101, %v2971
        %v3122 = vsel %vm2383, %v3102, %v2973
        %v3123 = vsel %vm2383, %v3103, %v2975
        %v3124 = vsel %vm2383, %v3104, %v2977
        %v3125 = vsel %vm2383, %v3105, %v2979
        %v3126 = vsel %vm2383, %v3106, %v2981
        %v3127 = vsel %vm2416, %v3107, %v3008
        %v3128 = vsel %vm2416, %v3108, %v3010
        %v3129 = vsel %vm2416, %v3109, %v3012
        %v3130 = vsel %vm2416, %v3110, %v3014
        %v3131 = vsel %vm2416, %v3111, %v3016
        %v3132 = vsel %vm2416, %v3112, %v3018
        %v3133 = vsel %vm2416, %v3113, %v3020
        %v3134 = vsel %vm2416, %v3114, %v3022
        %v3135 = vsel %vm2416, %v3115, %v3024
        %v3136 = vsel %vm2416, %v3116, %v3026
        %v3137 = vsel %vm2416, %v3117, %v3028
        %v3138 = vsel %vm2416, %v3118, %v3030
        %v3139 = vsel %vm2416, %v3119, %v3032
        %v3140 = vsel %vm2416, %v3120, %v3034
        %v3141 = vsel %vm2416, %v3121, %v3036
        %v3142 = vsel %vm2416, %v3122, %v3038
        %v3143 = vsel %vm2416, %v3123, %v3040
        %v3144 = vsel %vm2416, %v3124, %v3042
        %v3145 = vsel %vm2416, %v3125, %v3044
        %v3146 = vsel %vm2416, %v3126, %v3046
        %v3195 = vrot.slane %v2421, 2
        %v3196 = vrot.slane %v2422, 2
        %v3197 = vsel %vm527, %v3195, %v3196
        %v3198 = vrot.slane %v3127, 2
        %v3199 = vsel %vm527, %v3196, %v3198
        %v3200 = vrot.slane %v2423, 2
        %v3201 = vrot.slane %v2424, 2
        %v3202 = vsel %vm527, %v3200, %v3201
        %v3203 = vrot.slane %v3128, 2
        %v3204 = vsel %vm527, %v3201, %v3203
        %v3205 = vrot.slane %v2425, 2
        %v3206 = vrot.slane %v2426, 2
        %v3207 = vsel %vm527, %v3205, %v3206
        %v3208 = vrot.slane %v3129, 2
        %v3209 = vsel %vm527, %v3206, %v3208
        %v3210 = vrot.slane %v2427, 2
        %v3211 = vrot.slane %v2428, 2
        %v3212 = vsel %vm527, %v3210, %v3211
        %v3213 = vrot.slane %v3130, 2
        %v3214 = vsel %vm527, %v3211, %v3213
        %v3215 = vrot.slane %v2429, 2
        %v3216 = vrot.slane %v2430, 2
        %v3217 = vsel %vm527, %v3215, %v3216
        %v3218 = vrot.slane %v3131, 2
        %v3219 = vsel %vm527, %v3216, %v3218
        %v3220 = vrot.slane %v2431, 2
        %v3221 = vrot.slane %v2432, 2
        %v3222 = vsel %vm527, %v3220, %v3221
        %v3223 = vrot.slane %v3132, 2
        %v3224 = vsel %vm527, %v3221, %v3223
        %v3225 = vrot.slane %v2433, 2
        %v3226 = vrot.slane %v2434, 2
        %v3227 = vsel %vm527, %v3225, %v3226
        %v3228 = vrot.slane %v3133, 2
        %v3229 = vsel %vm527, %v3226, %v3228
        %v3230 = vrot.slane %v2435, 2
        %v3231 = vrot.slane %v2436, 2
        %v3232 = vsel %vm527, %v3230, %v3231
        %v3233 = vrot.slane %v3134, 2
        %v3234 = vsel %vm527, %v3231, %v3233
        %v3235 = vrot.slane %v2437, 2
        %v3236 = vrot.slane %v2438, 2
        %v3237 = vsel %vm527, %v3235, %v3236
        %v3238 = vrot.slane %v3135, 2
        %v3239 = vsel %vm527, %v3236, %v3238
        %v3240 = vrot.slane %v2439, 2
        %v3241 = vrot.slane %v2440, 2
        %v3242 = vsel %vm527, %v3240, %v3241
        %v3243 = vrot.slane %v3136, 2
        %v3244 = vsel %vm527, %v3241, %v3243
        %v3245 = vrot.slane %v2441, 2
        %v3246 = vrot.slane %v2442, 2
        %v3247 = vsel %vm527, %v3245, %v3246
        %v3248 = vrot.slane %v3137, 2
        %v3249 = vsel %vm527, %v3246, %v3248
        %v3250 = vrot.slane %v2443, 2
        %v3251 = vrot.slane %v2444, 2
        %v3252 = vsel %vm527, %v3250, %v3251
        %v3253 = vrot.slane %v3138, 2
        %v3254 = vsel %vm527, %v3251, %v3253
        %v3255 = vrot.slane %v2445, 2
        %v3256 = vrot.slane %v2446, 2
        %v3257 = vsel %vm527, %v3255, %v3256
        %v3258 = vrot.slane %v3139, 2
        %v3259 = vsel %vm527, %v3256, %v3258
        %v3260 = vrot.slane %v2447, 2
        %v3261 = vrot.slane %v2448, 2
        %v3262 = vsel %vm527, %v3260, %v3261
        %v3263 = vrot.slane %v3140, 2
        %v3264 = vsel %vm527, %v3261, %v3263
        %v3265 = vrot.slane %v3141, 2
        %v3266 = vrot.slane %v3142, 2
        %v3267 = vsel %vm527, %v3265, %v3266
        %v3268 = vrot.slane %v3143, 2
        %v3269 = vsel %vm527, %v3266, %v3268
        %v3270 = vrot.slane %v3144, 2
        %v3271 = vrot.slane %v3145, 2
        %v3272 = vsel %vm527, %v3270, %v3271
        %v3273 = vrot.slane %v3146, 2
        %v3274 = vsel %vm527, %v3271, %v3273
        %3275 = vrot.lane.b32.xlu0 %v3197, 64
        %v3276 = vpop.permute.xlu0 %3275
        %3277 = vrot.lane.b32.xlu0 %v3199, 64
        %v3278 = vpop.permute.xlu0 %3277
        %3279 = vrot.lane.b32.xlu0 %v3202, 64
        %v3280 = vpop.permute.xlu0 %3279
        %3281 = vrot.lane.b32.xlu0 %v3204, 64
        %v3282 = vpop.permute.xlu0 %3281
        %3283 = vrot.lane.b32.xlu0 %v3207, 64
        %v3284 = vpop.permute.xlu0 %3283
        %3285 = vrot.lane.b32.xlu0 %v3209, 64
        %v3286 = vpop.permute.xlu0 %3285
        %3287 = vrot.lane.b32.xlu0 %v3212, 64
        %v3288 = vpop.permute.xlu0 %3287
        %3289 = vrot.lane.b32.xlu0 %v3214, 64
        %v3290 = vpop.permute.xlu0 %3289
        %3291 = vrot.lane.b32.xlu0 %v3217, 64
        %v3292 = vpop.permute.xlu0 %3291
        %3293 = vrot.lane.b32.xlu0 %v3219, 64
        %v3294 = vpop.permute.xlu0 %3293
        %3295 = vrot.lane.b32.xlu0 %v3222, 64
        %v3296 = vpop.permute.xlu0 %3295
        %3297 = vrot.lane.b32.xlu0 %v3224, 64
        %v3298 = vpop.permute.xlu0 %3297
        %3299 = vrot.lane.b32.xlu0 %v3227, 64
        %v3300 = vpop.permute.xlu0 %3299
        %3301 = vrot.lane.b32.xlu0 %v3229, 64
        %v3302 = vpop.permute.xlu0 %3301
        %3303 = vrot.lane.b32.xlu0 %v3232, 64
        %v3304 = vpop.permute.xlu0 %3303
        %3305 = vrot.lane.b32.xlu0 %v3234, 64
        %v3306 = vpop.permute.xlu0 %3305
        %3307 = vrot.lane.b32.xlu0 %v3237, 64
        %v3308 = vpop.permute.xlu0 %3307
        %3309 = vrot.lane.b32.xlu0 %v3239, 64
        %v3310 = vpop.permute.xlu0 %3309
        %3311 = vrot.lane.b32.xlu0 %v3242, 64
        %v3312 = vpop.permute.xlu0 %3311
        %3313 = vrot.lane.b32.xlu0 %v3244, 64
        %v3314 = vpop.permute.xlu0 %3313
        %3315 = vrot.lane.b32.xlu0 %v3247, 64
        %v3316 = vpop.permute.xlu0 %3315
        %3317 = vrot.lane.b32.xlu0 %v3249, 64
        %v3318 = vpop.permute.xlu0 %3317
        %3319 = vrot.lane.b32.xlu0 %v3252, 64
        %v3320 = vpop.permute.xlu0 %3319
        %3321 = vrot.lane.b32.xlu0 %v3254, 64
        %v3322 = vpop.permute.xlu0 %3321
        %3323 = vrot.lane.b32.xlu0 %v3257, 64
        %v3324 = vpop.permute.xlu0 %3323
        %3325 = vrot.lane.b32.xlu0 %v3259, 64
        %v3326 = vpop.permute.xlu0 %3325
        %3327 = vrot.lane.b32.xlu0 %v3262, 64
        %v3328 = vpop.permute.xlu0 %3327
        %3329 = vrot.lane.b32.xlu0 %v3264, 64
        %v3330 = vpop.permute.xlu0 %3329
        %3331 = vrot.lane.b32.xlu0 %v3267, 64
        %v3332 = vpop.permute.xlu0 %3331
        %3333 = vrot.lane.b32.xlu0 %v3269, 64
        %v3334 = vpop.permute.xlu0 %3333
        %3335 = vrot.lane.b32.xlu0 %v3272, 64
        %v3336 = vpop.permute.xlu0 %3335
        %3337 = vrot.lane.b32.xlu0 %v3274, 64
        %v3338 = vpop.permute.xlu0 %3337
        %vm3371 = vcmask 523264
        %v3372 = vsel %vm3371, %v2780, %v3276
        %v3373 = vsel %vm3371, %v2781, %v3278
        %v3374 = vsel %vm3371, %v2782, %v3280
        %v3375 = vsel %vm3371, %v2783, %v3282
        %v3376 = vsel %vm3371, %v2784, %v3284
        %v3377 = vsel %vm3371, %v2785, %v3286
        %v3378 = vsel %vm3371, %v2786, %v3288
        %v3379 = vsel %vm3371, %v2787, %v3290
        %v3380 = vsel %vm3371, %v2788, %v3292
        %v3381 = vsel %vm3371, %v2789, %v3294
        %v3382 = vsel %vm3371, %v2790, %v3296
        %v3383 = vsel %vm3371, %v2791, %v3298
        %v3384 = vsel %vm3371, %v2792, %v3300
        %v3385 = vsel %vm3371, %v2793, %v3302
        %v3386 = vsel %vm3371, %v2794, %v3304
        %v3387 = vsel %vm3371, %v2795, %v3306
        %v3388 = vsel %vm3371, %v2796, %v3308
        %v3389 = vsel %vm3371, %v2797, %v3310
        %v3390 = vsel %vm3371, %v2798, %v3312
        %v3391 = vsel %vm3371, %v2799, %v3314
        %v3392 = vsel %vm3371, %v2800, %v3316
        %v3393 = vsel %vm3371, %v2801, %v3318
        %v3394 = vsel %vm3371, %v2802, %v3320
        %v3395 = vsel %vm3371, %v2803, %v3322
        %v3396 = vsel %vm3371, %v2804, %v3324
        %v3397 = vsel %vm3371, %v2805, %v3326
        %v3398 = vsel %vm3371, %v2806, %v3328
        %v3399 = vsel %vm3371, %v2807, %v3330
        %v3400 = vsel %vm3371, %v2808, %v3332
        %v3401 = vsel %vm3371, %v2809, %v3334
        %v3402 = vsel %vm3371, %v2810, %v3336
        %v3403 = vsel %vm3371, %v2811, %v3338
        %v3404 = vld [vmem:[%s1] sm:$0xff]
        %v3405 = vld [vmem:[%s1 + $0x8] sm:$0xff]
        %v3406 = vld [vmem:[%s1 + $0x10] sm:$0xff]
        %v3407 = vld [vmem:[%s1 + $0x18] sm:$0xff]
        %v3408 = vld [vmem:[%s1 + $0x20] sm:$0xff]
        %v3409 = vld [vmem:[%s1 + $0x28] sm:$0xff]
        %v3410 = vld [vmem:[%s1 + $0x30] sm:$0xff]
        %v3411 = vld [vmem:[%s1 + $0x38] sm:$0xff]
        %v3412 = vld [vmem:[%s1 + $0x40] sm:$0xff]
        %v3413 = vld [vmem:[%s1 + $0x48] sm:$0xff]
        %v3414 = vld [vmem:[%s1 + $0x50] sm:$0xf]
        %vm3415 = vcmask 687104
        %v3417 = vsel %vm3415, %v3372, 0
        %v3420 = vsel %vm3415, %v3373, 0
        %v3423 = vsel %vm3415, %v3374, 0
        %v3426 = vsel %vm3415, %v3375, 0
        %v3429 = vsel %vm3415, %v3376, 0
        %v3432 = vsel %vm3415, %v3377, 0
        %v3435 = vsel %vm3415, %v3378, 0
        %v3438 = vsel %vm3415, %v3379, 0
        %v3441 = vsel %vm3415, %v3380, 0
        %v3444 = vsel %vm3415, %v3381, 0
        %v3447 = vsel %vm3415, %v3382, 0
        %v3450 = vsel %vm3415, %v3383, 0
        %v3453 = vsel %vm3415, %v3384, 0
        %v3456 = vsel %vm3415, %v3385, 0
        %v3459 = vsel %vm3415, %v3386, 0
        %v3462 = vsel %vm3415, %v3387, 0
        %v3465 = vsel %vm3415, %v3388, 0
        %v3468 = vsel %vm3415, %v3389, 0
        %v3471 = vsel %vm3415, %v3390, 0
        %v3474 = vsel %vm3415, %v3391, 0
        %v3477 = vsel %vm3415, %v3392, 0
        %v3480 = vsel %vm3415, %v3393, 0
        %v3483 = vsel %vm3415, %v3394, 0
        %v3486 = vsel %vm3415, %v3395, 0
        %v3489 = vsel %vm3415, %v3396, 0
        %v3492 = vsel %vm3415, %v3397, 0
        %v3495 = vsel %vm3415, %v3398, 0
        %v3498 = vsel %vm3415, %v3399, 0
        %v3501 = vsel %vm3415, %v3400, 0
        %v3504 = vsel %vm3415, %v3401, 0
        %v3507 = vsel %vm3415, %v3402, 0
        %v3510 = vsel %vm3415, %v3403, 0
        %v3513 = vsel %vm881, %v3414, 0
        %3515 = vmatprep.subr.mxu0 0.0
        %3516 = vmatpush1.msra.mxu0 0.0
        %3517 = vmatprep.subr.mxu0 0.0
        %3518 = vmatpush1.msra.mxu0 0.0
        %3519 = vmatprep.subr.mxu0 0.0
        %3520 = vmatpush1.msra.mxu0 0.0
        %3521 = vmatprep.subr.mxu0 0.0
        %3522 = vmatpush1.msra.mxu0 0.0
        %3523 = vmatprep.subr.mxu0 0.0
        %3524 = vmatpush1.msra.mxu0 0.0
        %3525 = vmatprep.subr.mxu0 0.0
        %3526 = vmatpush1.msra.mxu0 %v3513
        %3527 = vmatprep.subr.mxu0 0.0
        %3528 = vmatpush1.msra.mxu0 %v3413
        %3529 = vmatprep.subr.mxu0 0.0
        %3530 = vmatpush1.msra.mxu0 %v3412
        %3531 = vmatprep.subr.mxu0 0.0
        %3532 = vmatpush1.msra.mxu0 %v3411
        %3533 = vmatprep.subr.mxu0 0.0
        %3534 = vmatpush1.msra.mxu0 %v3410
        %3535 = vmatprep.subr.mxu0 0.0
        %3536 = vmatpush1.msra.mxu0 %v3409
        %3537 = vmatprep.subr.mxu0 0.0
        %3538 = vmatpush1.msra.mxu0 %v3408
        %3539 = vmatprep.subr.mxu0 0.0
        %3540 = vmatpush1.msra.mxu0 %v3407
        %3541 = vmatprep.subr.mxu0 0.0
        %3542 = vmatpush1.msra.mxu0 %v3406
        %3543 = vmatprep.subr.mxu0 0.0
        %3544 = vmatpush1.msra.mxu0 %v3405
        %3545 = vmatprep.subr.mxu0 0.0
        %3546 = vmatpush1.msra.mxu0 %v3404
        %3547 = vmatprep.subr.mxu0 0.0
        %3548 = vmatpush2.msra.mxu0 0.0
        %3549 = vmatprep.subr.mxu0 0.0
        %3550 = vmatpush2.msra.mxu0 0.0
        %3551 = vmatprep.subr.mxu0 0.0
        %3552 = vmatpush2.msra.mxu0 0.0
        %3553 = vmatprep.subr.mxu0 0.0
        %3554 = vmatpush2.msra.mxu0 0.0
        %3555 = vmatprep.subr.mxu0 0.0
        %3556 = vmatpush2.msra.mxu0 0.0
        %3557 = vmatprep.subr.mxu0 0.0
        %3558 = vmatpush2.msra.mxu0 0.0
        %3559 = vmatprep.subr.mxu0 0.0
        %3560 = vmatpush2.msra.mxu0 0.0
        %3561 = vmatprep.subr.mxu0 0.0
        %3562 = vmatpush2.msra.mxu0 0.0
        %3563 = vmatprep.subr.mxu0 0.0
        %3564 = vmatpush2.msra.mxu0 0.0
        %3565 = vmatprep.subr.mxu0 0.0
        %3566 = vmatpush2.msra.mxu0 0.0
        %3567 = vmatprep.subr.mxu0 0.0
        %3568 = vmatpush2.msra.mxu0 0.0
        %3569 = vmatprep.subr.mxu0 0.0
        %3570 = vmatpush2.msra.mxu0 0.0
        %3571 = vmatprep.subr.mxu0 0.0
        %3572 = vmatpush2.msra.mxu0 0.0
        %3573 = vmatprep.subr.mxu0 0.0
        %3574 = vmatpush2.msra.mxu0 0.0
        %3575 = vmatprep.subr.mxu0 0.0
        %3576 = vmatpush2.msra.mxu0 0.0
        %3577 = vmatprep.subr.mxu0 0.0
        %3578 = vmatpush2.msra.mxu0 0.0
        %3579 = vmatprep.mubr.f32.mxu0 0.0
        %3580 = vmatmul.mubr.f32.gmra.mxu0 %v3417
        %v3581 = vpop.f32.mrf.mxu0
        %v3582 = vadd.f32 0.0, %v3581
        %v3583 = vpop.f32.mrf.mxu0
        %3584 = vmatprep.mubr.f32.mxu0 0.0
        %3585 = vmatmul.mubr.f32.gmra.mxu0 %v3420
        %v3586 = vpop.f32.mrf.mxu0
        %v3587 = vadd.f32 0.0, %v3586
        %v3588 = vpop.f32.mrf.mxu0
        %3589 = vmatprep.mubr.f32.mxu0 0.0
        %3590 = vmatmul.mubr.f32.gmra.mxu0 %v3423
        %v3591 = vpop.f32.mrf.mxu0
        %v3592 = vadd.f32 0.0, %v3591
        %v3593 = vpop.f32.mrf.mxu0
        %3594 = vmatprep.mubr.f32.mxu0 0.0
        %3595 = vmatmul.mubr.f32.gmra.mxu0 %v3426
        %v3596 = vpop.f32.mrf.mxu0
        %v3597 = vadd.f32 0.0, %v3596
        %v3598 = vpop.f32.mrf.mxu0
        %3599 = vmatprep.mubr.f32.mxu0 0.0
        %3600 = vmatmul.mubr.f32.gmra.mxu0 %v3429
        %v3601 = vpop.f32.mrf.mxu0
        %v3602 = vadd.f32 0.0, %v3601
        %v3603 = vpop.f32.mrf.mxu0
        %3604 = vmatprep.mubr.f32.mxu0 0.0
        %3605 = vmatmul.mubr.f32.gmra.mxu0 %v3432
        %v3606 = vpop.f32.mrf.mxu0
        %v3607 = vadd.f32 0.0, %v3606
        %v3608 = vpop.f32.mrf.mxu0
        %3609 = vmatprep.mubr.f32.mxu0 0.0
        %3610 = vmatmul.mubr.f32.gmra.mxu0 %v3435
        %v3611 = vpop.f32.mrf.mxu0
        %v3612 = vadd.f32 0.0, %v3611
        %v3613 = vpop.f32.mrf.mxu0
        %3614 = vmatprep.mubr.f32.mxu0 0.0
        %3615 = vmatmul.mubr.f32.gmra.mxu0 %v3438
        %v3616 = vpop.f32.mrf.mxu0
        %v3617 = vadd.f32 0.0, %v3616
        %v3618 = vpop.f32.mrf.mxu0
        %3619 = vmatprep.mubr.f32.mxu0 0.0
        %3620 = vmatmul.mubr.f32.gmra.mxu0 %v3441
        %v3621 = vpop.f32.mrf.mxu0
        %v3622 = vadd.f32 0.0, %v3621
        %v3623 = vpop.f32.mrf.mxu0
        %3624 = vmatprep.mubr.f32.mxu0 0.0
        %3625 = vmatmul.mubr.f32.gmra.mxu0 %v3444
        %v3626 = vpop.f32.mrf.mxu0
        %v3627 = vadd.f32 0.0, %v3626
        %v3628 = vpop.f32.mrf.mxu0
        %3629 = vmatprep.mubr.f32.mxu0 0.0
        %3630 = vmatmul.mubr.f32.gmra.mxu0 %v3447
        %v3631 = vpop.f32.mrf.mxu0
        %v3632 = vadd.f32 0.0, %v3631
        %v3633 = vpop.f32.mrf.mxu0
        %3634 = vmatprep.mubr.f32.mxu0 0.0
        %3635 = vmatmul.mubr.f32.gmra.mxu0 %v3450
        %v3636 = vpop.f32.mrf.mxu0
        %v3637 = vadd.f32 0.0, %v3636
        %v3638 = vpop.f32.mrf.mxu0
        %3639 = vmatprep.mubr.f32.mxu0 0.0
        %3640 = vmatmul.mubr.f32.gmra.mxu0 %v3453
        %v3641 = vpop.f32.mrf.mxu0
        %v3642 = vadd.f32 0.0, %v3641
        %v3643 = vpop.f32.mrf.mxu0
        %3644 = vmatprep.mubr.f32.mxu0 0.0
        %3645 = vmatmul.mubr.f32.gmra.mxu0 %v3456
        %v3646 = vpop.f32.mrf.mxu0
        %v3647 = vadd.f32 0.0, %v3646
        %v3648 = vpop.f32.mrf.mxu0
        %3649 = vmatprep.mubr.f32.mxu0 0.0
        %3650 = vmatmul.mubr.f32.gmra.mxu0 %v3459
        %v3651 = vpop.f32.mrf.mxu0
        %v3652 = vadd.f32 0.0, %v3651
        %v3653 = vpop.f32.mrf.mxu0
        %3654 = vmatprep.mubr.f32.mxu0 0.0
        %3655 = vmatmul.mubr.f32.gmra.mxu0 %v3462
        %v3656 = vpop.f32.mrf.mxu0
        %v3657 = vadd.f32 0.0, %v3656
        %v3658 = vpop.f32.mrf.mxu0
        %3659 = vmatprep.mubr.f32.mxu0 0.0
        %3660 = vmatmul.mubr.f32.gmra.mxu0 %v3465
        %v3661 = vpop.f32.mrf.mxu0
        %v3662 = vadd.f32 0.0, %v3661
        %v3663 = vpop.f32.mrf.mxu0
        %3664 = vmatprep.mubr.f32.mxu0 0.0
        %3665 = vmatmul.mubr.f32.gmra.mxu0 %v3468
        %v3666 = vpop.f32.mrf.mxu0
        %v3667 = vadd.f32 0.0, %v3666
        %v3668 = vpop.f32.mrf.mxu0
        %3669 = vmatprep.mubr.f32.mxu0 0.0
        %3670 = vmatmul.mubr.f32.gmra.mxu0 %v3471
        %v3671 = vpop.f32.mrf.mxu0
        %v3672 = vadd.f32 0.0, %v3671
        %v3673 = vpop.f32.mrf.mxu0
        %3674 = vmatprep.mubr.f32.mxu0 0.0
        %3675 = vmatmul.mubr.f32.gmra.mxu0 %v3474
        %v3676 = vpop.f32.mrf.mxu0
        %v3677 = vadd.f32 0.0, %v3676
        %v3678 = vpop.f32.mrf.mxu0
        %3679 = vmatprep.mubr.f32.mxu0 0.0
        %3680 = vmatmul.mubr.f32.gmra.mxu0 %v3477
        %v3681 = vpop.f32.mrf.mxu0
        %v3682 = vadd.f32 0.0, %v3681
        %v3683 = vpop.f32.mrf.mxu0
        %3684 = vmatprep.mubr.f32.mxu0 0.0
        %3685 = vmatmul.mubr.f32.gmra.mxu0 %v3480
        %v3686 = vpop.f32.mrf.mxu0
        %v3687 = vadd.f32 0.0, %v3686
        %v3688 = vpop.f32.mrf.mxu0
        %3689 = vmatprep.mubr.f32.mxu0 0.0
        %3690 = vmatmul.mubr.f32.gmra.mxu0 %v3483
        %v3691 = vpop.f32.mrf.mxu0
        %v3692 = vadd.f32 0.0, %v3691
        %v3693 = vpop.f32.mrf.mxu0
        %3694 = vmatprep.mubr.f32.mxu0 0.0
        %3695 = vmatmul.mubr.f32.gmra.mxu0 %v3486
        %v3696 = vpop.f32.mrf.mxu0
        %v3697 = vadd.f32 0.0, %v3696
        %v3698 = vpop.f32.mrf.mxu0
        %3699 = vmatprep.mubr.f32.mxu0 0.0
        %3700 = vmatmul.mubr.f32.gmra.mxu0 %v3489
        %v3701 = vpop.f32.mrf.mxu0
        %v3702 = vadd.f32 0.0, %v3701
        %v3703 = vpop.f32.mrf.mxu0
        %3704 = vmatprep.mubr.f32.mxu0 0.0
        %3705 = vmatmul.mubr.f32.gmra.mxu0 %v3492
        %v3706 = vpop.f32.mrf.mxu0
        %v3707 = vadd.f32 0.0, %v3706
        %v3708 = vpop.f32.mrf.mxu0
        %3709 = vmatprep.mubr.f32.mxu0 0.0
        %3710 = vmatmul.mubr.f32.gmra.mxu0 %v3495
        %v3711 = vpop.f32.mrf.mxu0
        %v3712 = vadd.f32 0.0, %v3711
        %v3713 = vpop.f32.mrf.mxu0
        %3714 = vmatprep.mubr.f32.mxu0 0.0
        %3715 = vmatmul.mubr.f32.gmra.mxu0 %v3498
        %v3716 = vpop.f32.mrf.mxu0
        %v3717 = vadd.f32 0.0, %v3716
        %v3718 = vpop.f32.mrf.mxu0
        %3719 = vmatprep.mubr.f32.mxu0 0.0
        %3720 = vmatmul.mubr.f32.gmra.mxu0 %v3501
        %v3721 = vpop.f32.mrf.mxu0
        %v3722 = vadd.f32 0.0, %v3721
        %v3723 = vpop.f32.mrf.mxu0
        %3724 = vmatprep.mubr.f32.mxu0 0.0
        %3725 = vmatmul.mubr.f32.gmra.mxu0 %v3504
        %v3726 = vpop.f32.mrf.mxu0
        %v3727 = vadd.f32 0.0, %v3726
        %v3728 = vpop.f32.mrf.mxu0
        %3729 = vmatprep.mubr.f32.mxu0 0.0
        %3730 = vmatmul.mubr.f32.gmra.mxu0 %v3507
        %v3731 = vpop.f32.mrf.mxu0
        %v3732 = vadd.f32 0.0, %v3731
        %v3733 = vpop.f32.mrf.mxu0
        %3734 = vmatprep.mubr.f32.mxu0 0.0
        %3735 = vmatmul.mubr.f32.gmra.mxu0 %v3510
        %v3736 = vpop.f32.mrf.mxu0
        %v3737 = vadd.f32 0.0, %v3736
        %v3738 = vpop.f32.mrf.mxu0
        %3739 = vdwg.mxu0
        %v3740 = vld [vmem:[%s2] sm:$0x1]
        %v3741 = vld [vmem:[%s2 + $0x1] sm:$0x1]
        %v3742 = vld [vmem:[%s2 + $0x2] sm:$0x1]
        %v3743 = vlaneseq
        %v3744 = vshrl.u32 %v3743, 7
        %v3745 = vsub.s32 0, %v3744
        %v3746 = vrot.slane %v3740, %v3745
        %v3747 = vmul.f32 %v3582, %v3746
        %v3748 = vmul.f32 %v3587, %v3746
        %v3749 = vmul.f32 %v3592, %v3746
        %v3750 = vmul.f32 %v3597, %v3746
        %v3751 = vmul.f32 %v3602, %v3746
        %v3752 = vmul.f32 %v3607, %v3746
        %v3753 = vmul.f32 %v3612, %v3746
        %v3754 = vmul.f32 %v3617, %v3746
        %v3755 = vmul.f32 %v3622, %v3746
        %v3756 = vmul.f32 %v3627, %v3746
        %v3757 = vmul.f32 %v3632, %v3746
        %v3758 = vmul.f32 %v3637, %v3746
        %v3759 = vmul.f32 %v3642, %v3746
        %v3760 = vmul.f32 %v3647, %v3746
        %v3761 = vmul.f32 %v3652, %v3746
        %v3762 = vmul.f32 %v3657, %v3746
        %v3763 = vmul.f32 %v3662, %v3746
        %v3764 = vmul.f32 %v3667, %v3746
        %v3765 = vmul.f32 %v3672, %v3746
        %v3766 = vmul.f32 %v3677, %v3746
        %v3767 = vmul.f32 %v3682, %v3746
        %v3768 = vmul.f32 %v3687, %v3746
        %v3769 = vmul.f32 %v3692, %v3746
        %v3770 = vmul.f32 %v3697, %v3746
        %v3771 = vmul.f32 %v3702, %v3746
        %v3772 = vmul.f32 %v3707, %v3746
        %v3773 = vmul.f32 %v3712, %v3746
        %v3774 = vmul.f32 %v3717, %v3746
        %v3775 = vmul.f32 %v3722, %v3746
        %v3776 = vmul.f32 %v3727, %v3746
        %v3777 = vmul.f32 %v3732, %v3746
        %v3778 = vmul.f32 %v3737, %v3746
        %v3779 = vlaneseq
        %v3780 = vshrl.u32 %v3779, 7
        %v3781 = vsub.s32 0, %v3780
        %v3782 = vrot.slane %v3741, %v3781
        %v3783 = vadd.f32 %v3747, %v3782
        %v3784 = vadd.f32 %v3748, %v3782
        %v3785 = vadd.f32 %v3749, %v3782
        %v3786 = vadd.f32 %v3750, %v3782
        %v3787 = vadd.f32 %v3751, %v3782
        %v3788 = vadd.f32 %v3752, %v3782
        %v3789 = vadd.f32 %v3753, %v3782
        %v3790 = vadd.f32 %v3754, %v3782
        %v3791 = vadd.f32 %v3755, %v3782
        %v3792 = vadd.f32 %v3756, %v3782
        %v3793 = vadd.f32 %v3757, %v3782
        %v3794 = vadd.f32 %v3758, %v3782
        %v3795 = vadd.f32 %v3759, %v3782
        %v3796 = vadd.f32 %v3760, %v3782
        %v3797 = vadd.f32 %v3761, %v3782
        %v3798 = vadd.f32 %v3762, %v3782
        %v3799 = vadd.f32 %v3763, %v3782
        %v3800 = vadd.f32 %v3764, %v3782
        %v3801 = vadd.f32 %v3765, %v3782
        %v3802 = vadd.f32 %v3766, %v3782
        %v3803 = vadd.f32 %v3767, %v3782
        %v3804 = vadd.f32 %v3768, %v3782
        %v3805 = vadd.f32 %v3769, %v3782
        %v3806 = vadd.f32 %v3770, %v3782
        %v3807 = vadd.f32 %v3771, %v3782
        %v3808 = vadd.f32 %v3772, %v3782
        %v3809 = vadd.f32 %v3773, %v3782
        %v3810 = vadd.f32 %v3774, %v3782
        %v3811 = vadd.f32 %v3775, %v3782
        %v3812 = vadd.f32 %v3776, %v3782
        %v3813 = vadd.f32 %v3777, %v3782
        %v3814 = vadd.f32 %v3778, %v3782
        %vm3815 = vcmp.gt.f32.partialorder %v3783, 0.0
        %vm3816 = vcmp.gt.f32.partialorder %v3784, 0.0
        %vm3817 = vcmp.gt.f32.partialorder %v3785, 0.0
        %vm3818 = vcmp.gt.f32.partialorder %v3786, 0.0
        %vm3819 = vcmp.gt.f32.partialorder %v3787, 0.0
        %vm3820 = vcmp.gt.f32.partialorder %v3788, 0.0
        %vm3821 = vcmp.gt.f32.partialorder %v3789, 0.0
        %vm3822 = vcmp.gt.f32.partialorder %v3790, 0.0
        %vm3823 = vcmp.gt.f32.partialorder %v3791, 0.0
        %vm3824 = vcmp.gt.f32.partialorder %v3792, 0.0
        %vm3825 = vcmp.gt.f32.partialorder %v3793, 0.0
        %vm3826 = vcmp.gt.f32.partialorder %v3794, 0.0
        %vm3827 = vcmp.gt.f32.partialorder %v3795, 0.0
        %vm3828 = vcmp.gt.f32.partialorder %v3796, 0.0
        %vm3829 = vcmp.gt.f32.partialorder %v3797, 0.0
        %vm3830 = vcmp.gt.f32.partialorder %v3798, 0.0
        %vm3831 = vcmp.gt.f32.partialorder %v3799, 0.0
        %vm3832 = vcmp.gt.f32.partialorder %v3800, 0.0
        %vm3833 = vcmp.gt.f32.partialorder %v3801, 0.0
        %vm3834 = vcmp.gt.f32.partialorder %v3802, 0.0
        %vm3835 = vcmp.gt.f32.partialorder %v3803, 0.0
        %vm3836 = vcmp.gt.f32.partialorder %v3804, 0.0
        %vm3837 = vcmp.gt.f32.partialorder %v3805, 0.0
        %vm3838 = vcmp.gt.f32.partialorder %v3806, 0.0
        %vm3839 = vcmp.gt.f32.partialorder %v3807, 0.0
        %vm3840 = vcmp.gt.f32.partialorder %v3808, 0.0
        %vm3841 = vcmp.gt.f32.partialorder %v3809, 0.0
        %vm3842 = vcmp.gt.f32.partialorder %v3810, 0.0
        %vm3843 = vcmp.gt.f32.partialorder %v3811, 0.0
        %vm3844 = vcmp.gt.f32.partialorder %v3812, 0.0
        %vm3845 = vcmp.gt.f32.partialorder %v3813, 0.0
        %vm3846 = vcmp.gt.f32.partialorder %v3814, 0.0
        %v3847 = vlaneseq
        %v3848 = vshrl.u32 %v3847, 7
        %v3849 = vsub.s32 0, %v3848
        %v3850 = vrot.slane %v3742, %v3849
        %v3851 = vmul.f32 %v3850, %v3783
        %v3852 = vmul.f32 %v3850, %v3784
        %v3853 = vmul.f32 %v3850, %v3785
        %v3854 = vmul.f32 %v3850, %v3786
        %v3855 = vmul.f32 %v3850, %v3787
        %v3856 = vmul.f32 %v3850, %v3788
        %v3857 = vmul.f32 %v3850, %v3789
        %v3858 = vmul.f32 %v3850, %v3790
        %v3859 = vmul.f32 %v3850, %v3791
        %v3860 = vmul.f32 %v3850, %v3792
        %v3861 = vmul.f32 %v3850, %v3793
        %v3862 = vmul.f32 %v3850, %v3794
        %v3863 = vmul.f32 %v3850, %v3795
        %v3864 = vmul.f32 %v3850, %v3796
        %v3865 = vmul.f32 %v3850, %v3797
        %v3866 = vmul.f32 %v3850, %v3798
        %v3867 = vmul.f32 %v3850, %v3799
        %v3868 = vmul.f32 %v3850, %v3800
        %v3869 = vmul.f32 %v3850, %v3801
        %v3870 = vmul.f32 %v3850, %v3802
        %v3871 = vmul.f32 %v3850, %v3803
        %v3872 = vmul.f32 %v3850, %v3804
        %v3873 = vmul.f32 %v3850, %v3805
        %v3874 = vmul.f32 %v3850, %v3806
        %v3875 = vmul.f32 %v3850, %v3807
        %v3876 = vmul.f32 %v3850, %v3808
        %v3877 = vmul.f32 %v3850, %v3809
        %v3878 = vmul.f32 %v3850, %v3810
        %v3879 = vmul.f32 %v3850, %v3811
        %v3880 = vmul.f32 %v3850, %v3812
        %v3881 = vmul.f32 %v3850, %v3813
        %v3882 = vmul.f32 %v3850, %v3814
        %v3883 = vsel %vm3815, %v3783, %v3851
        %v3884 = vsel %vm3816, %v3784, %v3852
        %v3885 = vsel %vm3817, %v3785, %v3853
        %v3886 = vsel %vm3818, %v3786, %v3854
        %v3887 = vsel %vm3819, %v3787, %v3855
        %v3888 = vsel %vm3820, %v3788, %v3856
        %v3889 = vsel %vm3821, %v3789, %v3857
        %v3890 = vsel %vm3822, %v3790, %v3858
        %v3891 = vsel %vm3823, %v3791, %v3859
        %v3892 = vsel %vm3824, %v3792, %v3860
        %v3893 = vsel %vm3825, %v3793, %v3861
        %v3894 = vsel %vm3826, %v3794, %v3862
        %v3895 = vsel %vm3827, %v3795, %v3863
        %v3896 = vsel %vm3828, %v3796, %v3864
        %v3897 = vsel %vm3829, %v3797, %v3865
        %v3898 = vsel %vm3830, %v3798, %v3866
        %v3899 = vsel %vm3831, %v3799, %v3867
        %v3900 = vsel %vm3832, %v3800, %v3868
        %v3901 = vsel %vm3833, %v3801, %v3869
        %v3902 = vsel %vm3834, %v3802, %v3870
        %v3903 = vsel %vm3835, %v3803, %v3871
        %v3904 = vsel %vm3836, %v3804, %v3872
        %v3905 = vsel %vm3837, %v3805, %v3873
        %v3906 = vsel %vm3838, %v3806, %v3874
        %v3907 = vsel %vm3839, %v3807, %v3875
        %v3908 = vsel %vm3840, %v3808, %v3876
        %v3909 = vsel %vm3841, %v3809, %v3877
        %v3910 = vsel %vm3842, %v3810, %v3878
        %v3911 = vsel %vm3843, %v3811, %v3879
        %v3912 = vsel %vm3844, %v3812, %v3880
        %v3913 = vsel %vm3845, %v3813, %v3881
        %v3914 = vsel %vm3846, %v3814, %v3882
        %3915 = vst.msk [vmem:[%s218] sm:$0xff] %vm3371, %v3883
        %3916 = vst.msk [vmem:[%s218 + $0x8] sm:$0xff] %vm3371, %v3884
        %3917 = vst.msk [vmem:[%s218 + $0x10] sm:$0xff] %vm3371, %v3885
        %3918 = vst.msk [vmem:[%s218 + $0x18] sm:$0xff] %vm3371, %v3886
        %3919 = vst.msk [vmem:[%s218 + $0x20] sm:$0xff] %vm3371, %v3887
        %3920 = vst.msk [vmem:[%s218 + $0x28] sm:$0xff] %vm3371, %v3888
        %3921 = vst.msk [vmem:[%s218 + $0x30] sm:$0xff] %vm3371, %v3889
        %3922 = vst.msk [vmem:[%s218 + $0x38] sm:$0xff] %vm3371, %v3890
        %3923 = vst.msk [vmem:[%s218 + $0x40] sm:$0xff] %vm3371, %v3891
        %3924 = vst.msk [vmem:[%s218 + $0x48] sm:$0xff] %vm3371, %v3892
        %3925 = vst.msk [vmem:[%s218 + $0x50] sm:$0xff] %vm3371, %v3893
        %3926 = vst.msk [vmem:[%s218 + $0x58] sm:$0xff] %vm3371, %v3894
        %3927 = vst.msk [vmem:[%s218 + $0x60] sm:$0xff] %vm3371, %v3895
        %3928 = vst.msk [vmem:[%s218 + $0x68] sm:$0xff] %vm3371, %v3896
        %3929 = vst.msk [vmem:[%s218 + $0x70] sm:$0xff] %vm3371, %v3897
        %3930 = vst.msk [vmem:[%s218 + $0x78] sm:$0xff] %vm3371, %v3898
        %3931 = vst.msk [vmem:[%s218 + $0x80] sm:$0xff] %vm3371, %v3899
        %3932 = vst.msk [vmem:[%s218 + $0x88] sm:$0xff] %vm3371, %v3900
        %3933 = vst.msk [vmem:[%s218 + $0x90] sm:$0xff] %vm3371, %v3901
        %3934 = vst.msk [vmem:[%s218 + $0x98] sm:$0xff] %vm3371, %v3902
        %3935 = vst.msk [vmem:[%s218 + $0xa0] sm:$0xff] %vm3371, %v3903
        %3936 = vst.msk [vmem:[%s218 + $0xa8] sm:$0xff] %vm3371, %v3904
        %3937 = vst.msk [vmem:[%s218 + $0xb0] sm:$0xff] %vm3371, %v3905
        %3938 = vst.msk [vmem:[%s218 + $0xb8] sm:$0xff] %vm3371, %v3906
        %3939 = vst.msk [vmem:[%s218 + $0xc0] sm:$0xff] %vm3371, %v3907
        %3940 = vst.msk [vmem:[%s218 + $0xc8] sm:$0xff] %vm3371, %v3908
        %3941 = vst.msk [vmem:[%s218 + $0xd0] sm:$0xff] %vm3371, %v3909
        %3942 = vst.msk [vmem:[%s218 + $0xd8] sm:$0xff] %vm3371, %v3910
        %3943 = vst.msk [vmem:[%s218 + $0xe0] sm:$0xff] %vm3371, %v3911
        %3944 = vst.msk [vmem:[%s218 + $0xe8] sm:$0xff] %vm3371, %v3912
        %3945 = vst.msk [vmem:[%s218 + $0xf0] sm:$0xff] %vm3371, %v3913
        %3946 = vst.msk [vmem:[%s218 + $0xf8] sm:$0xff] %vm3371, %v3914
        %v3947 = vlaneseq
        %v3948 = vshrl.u32 %v3947, 7
        %v3949 = vadd.s32 %v3948, 8
        %vm3980 = vcmask 1040384
        %v3981 = vrot.slane %v3883, 7
        %v3982 = vrot.slane %v3884, 7
        %v3983 = vsel %vm3980, %v3981, %v3982
        %v3984 = vrot.slane %v3885, 7
        %v3985 = vrot.slane %v3886, 7
        %v3986 = vsel %vm3980, %v3984, %v3985
        %v3987 = vrot.slane %v3887, 7
        %v3988 = vrot.slane %v3888, 7
        %v3989 = vsel %vm3980, %v3987, %v3988
        %v3990 = vrot.slane %v3889, 7
        %v3991 = vrot.slane %v3890, 7
        %v3992 = vsel %vm3980, %v3990, %v3991
        %v3993 = vrot.slane %v3891, 7
        %v3994 = vrot.slane %v3892, 7
        %v3995 = vsel %vm3980, %v3993, %v3994
        %v3996 = vrot.slane %v3893, 7
        %v3997 = vrot.slane %v3894, 7
        %v3998 = vsel %vm3980, %v3996, %v3997
        %v3999 = vrot.slane %v3895, 7
        %v4000 = vrot.slane %v3896, 7
        %v4001 = vsel %vm3980, %v3999, %v4000
        %v4002 = vrot.slane %v3897, 7
        %v4003 = vrot.slane %v3898, 7
        %v4004 = vsel %vm3980, %v4002, %v4003
        %v4005 = vrot.slane %v3899, 7
        %v4006 = vrot.slane %v3900, 7
        %v4007 = vsel %vm3980, %v4005, %v4006
        %v4008 = vrot.slane %v3901, 7
        %v4009 = vrot.slane %v3902, 7
        %v4010 = vsel %vm3980, %v4008, %v4009
        %v4011 = vrot.slane %v3903, 7
        %v4012 = vrot.slane %v3904, 7
        %v4013 = vsel %vm3980, %v4011, %v4012
        %v4014 = vrot.slane %v3905, 7
        %v4015 = vrot.slane %v3906, 7
        %v4016 = vsel %vm3980, %v4014, %v4015
        %v4017 = vrot.slane %v3907, 7
        %v4018 = vrot.slane %v3908, 7
        %v4019 = vsel %vm3980, %v4017, %v4018
        %v4020 = vrot.slane %v3909, 7
        %v4021 = vrot.slane %v3910, 7
        %v4022 = vsel %vm3980, %v4020, %v4021
        %v4023 = vrot.slane %v3911, 7
        %v4024 = vrot.slane %v3912, 7
        %v4025 = vsel %vm3980, %v4023, %v4024
        %vm4056 = vcmp.gt.f32.partialorder %v3883, %v3981
        %vm4057 = vcmp.gt.f32.partialorder %v3884, %v3983
        %vm4058 = vcmp.gt.f32.partialorder %v3885, %v3984
        %vm4059 = vcmp.gt.f32.partialorder %v3886, %v3986
        %vm4060 = vcmp.gt.f32.partialorder %v3887, %v3987
        %vm4061 = vcmp.gt.f32.partialorder %v3888, %v3989
        %vm4062 = vcmp.gt.f32.partialorder %v3889, %v3990
        %vm4063 = vcmp.gt.f32.partialorder %v3890, %v3992
        %vm4064 = vcmp.gt.f32.partialorder %v3891, %v3993
        %vm4065 = vcmp.gt.f32.partialorder %v3892, %v3995
        %vm4066 = vcmp.gt.f32.partialorder %v3893, %v3996
        %vm4067 = vcmp.gt.f32.partialorder %v3894, %v3998
        %vm4068 = vcmp.gt.f32.partialorder %v3895, %v3999
        %vm4069 = vcmp.gt.f32.partialorder %v3896, %v4001
        %vm4070 = vcmp.gt.f32.partialorder %v3897, %v4002
        %vm4071 = vcmp.gt.f32.partialorder %v3898, %v4004
        %vm4072 = vcmp.gt.f32.partialorder %v3899, %v4005
        %vm4073 = vcmp.gt.f32.partialorder %v3900, %v4007
        %vm4074 = vcmp.gt.f32.partialorder %v3901, %v4008
        %vm4075 = vcmp.gt.f32.partialorder %v3902, %v4010
        %vm4076 = vcmp.gt.f32.partialorder %v3903, %v4011
        %vm4077 = vcmp.gt.f32.partialorder %v3904, %v4013
        %vm4078 = vcmp.gt.f32.partialorder %v3905, %v4014
        %vm4079 = vcmp.gt.f32.partialorder %v3906, %v4016
        %vm4080 = vcmp.gt.f32.partialorder %v3907, %v4017
        %vm4081 = vcmp.gt.f32.partialorder %v3908, %v4019
        %vm4082 = vcmp.gt.f32.partialorder %v3909, %v4020
        %vm4083 = vcmp.gt.f32.partialorder %v3910, %v4022
        %vm4084 = vcmp.gt.f32.partialorder %v3911, %v4023
        %vm4085 = vcmp.gt.f32.partialorder %v3912, %v4025
        %v4086 = vsel %vm4056, %v3883, %v3981
        %v4087 = vsel %vm4057, %v3884, %v3983
        %v4088 = vsel %vm4058, %v3885, %v3984
        %v4089 = vsel %vm4059, %v3886, %v3986
        %v4090 = vsel %vm4060, %v3887, %v3987
        %v4091 = vsel %vm4061, %v3888, %v3989
        %v4092 = vsel %vm4062, %v3889, %v3990
        %v4093 = vsel %vm4063, %v3890, %v3992
        %v4094 = vsel %vm4064, %v3891, %v3993
        %v4095 = vsel %vm4065, %v3892, %v3995
        %v4096 = vsel %vm4066, %v3893, %v3996
        %v4097 = vsel %vm4067, %v3894, %v3998
        %v4098 = vsel %vm4068, %v3895, %v3999
        %v4099 = vsel %vm4069, %v3896, %v4001
        %v4100 = vsel %vm4070, %v3897, %v4002
        %v4101 = vsel %vm4071, %v3898, %v4004
        %v4102 = vsel %vm4072, %v3899, %v4005
        %v4103 = vsel %vm4073, %v3900, %v4007
        %v4104 = vsel %vm4074, %v3901, %v4008
        %v4105 = vsel %vm4075, %v3902, %v4010
        %v4106 = vsel %vm4076, %v3903, %v4011
        %v4107 = vsel %vm4077, %v3904, %v4013
        %v4108 = vsel %vm4078, %v3905, %v4014
        %v4109 = vsel %vm4079, %v3906, %v4016
        %v4110 = vsel %vm4080, %v3907, %v4017
        %v4111 = vsel %vm4081, %v3908, %v4019
        %v4112 = vsel %vm4082, %v3909, %v4020
        %v4113 = vsel %vm4083, %v3910, %v4022
        %v4114 = vsel %vm4084, %v3911, %v4023
        %v4115 = vsel %vm4085, %v3912, %v4025
        %v4116 = vadd.s32 %v3948, 1
        %v4117 = vadd.s32 %v3949, 1
        %v4118 = vrot.slane %v4116, 7
        %v4119 = vrot.slane %v4117, 7
        %v4120 = vsel %vm3980, %v4118, %v4119
        %v4121 = vrot.slane %v3948, 7
        %v4122 = vrot.slane %v3949, 7
        %v4123 = vsel %vm3980, %v4121, %v4122
        %v4124 = vsel %vm4056, %v4118, %v4121
        %v4125 = vsel %vm4057, %v4120, %v4123
        %v4126 = vsel %vm4058, %v4118, %v4121
        %v4127 = vsel %vm4059, %v4120, %v4123
        %v4128 = vsel %vm4060, %v4118, %v4121
        %v4129 = vsel %vm4061, %v4120, %v4123
        %v4130 = vsel %vm4062, %v4118, %v4121
        %v4131 = vsel %vm4063, %v4120, %v4123
        %v4132 = vsel %vm4064, %v4118, %v4121
        %v4133 = vsel %vm4065, %v4120, %v4123
        %v4134 = vsel %vm4066, %v4118, %v4121
        %v4135 = vsel %vm4067, %v4120, %v4123
        %v4136 = vsel %vm4068, %v4118, %v4121
        %v4137 = vsel %vm4069, %v4120, %v4123
        %v4138 = vsel %vm4070, %v4118, %v4121
        %v4139 = vsel %vm4071, %v4120, %v4123
        %v4140 = vsel %vm4072, %v4118, %v4121
        %v4141 = vsel %vm4073, %v4120, %v4123
        %v4142 = vsel %vm4074, %v4118, %v4121
        %v4143 = vsel %vm4075, %v4120, %v4123
        %v4144 = vsel %vm4076, %v4118, %v4121
        %v4145 = vsel %vm4077, %v4120, %v4123
        %v4146 = vsel %vm4078, %v4118, %v4121
        %v4147 = vsel %vm4079, %v4120, %v4123
        %v4148 = vsel %vm4080, %v4118, %v4121
        %v4149 = vsel %vm4081, %v4120, %v4123
        %v4150 = vsel %vm4082, %v4118, %v4121
        %v4151 = vsel %vm4083, %v4120, %v4123
        %v4152 = vsel %vm4084, %v4118, %v4121
        %v4153 = vsel %vm4085, %v4120, %v4123
        %v4184 = vrot.slane %v4086, 7
        %v4185 = vrot.slane %v4087, 7
        %v4186 = vsel %vm3980, %v4184, %v4185
        %v4187 = vrot.slane %v4088, 7
        %v4188 = vrot.slane %v4089, 7
        %v4189 = vsel %vm3980, %v4187, %v4188
        %v4190 = vrot.slane %v4090, 7
        %v4191 = vrot.slane %v4091, 7
        %v4192 = vsel %vm3980, %v4190, %v4191
        %v4193 = vrot.slane %v4092, 7
        %v4194 = vrot.slane %v4093, 7
        %v4195 = vsel %vm3980, %v4193, %v4194
        %v4196 = vrot.slane %v4094, 7
        %v4197 = vrot.slane %v4095, 7
        %v4198 = vsel %vm3980, %v4196, %v4197
        %v4199 = vrot.slane %v4096, 7
        %v4200 = vrot.slane %v4097, 7
        %v4201 = vsel %vm3980, %v4199, %v4200
        %v4202 = vrot.slane %v4098, 7
        %v4203 = vrot.slane %v4099, 7
        %v4204 = vsel %vm3980, %v4202, %v4203
        %v4205 = vrot.slane %v4100, 7
        %v4206 = vrot.slane %v4101, 7
        %v4207 = vsel %vm3980, %v4205, %v4206
        %v4208 = vrot.slane %v4102, 7
        %v4209 = vrot.slane %v4103, 7
        %v4210 = vsel %vm3980, %v4208, %v4209
        %v4211 = vrot.slane %v4104, 7
        %v4212 = vrot.slane %v4105, 7
        %v4213 = vsel %vm3980, %v4211, %v4212
        %v4214 = vrot.slane %v4106, 7
        %v4215 = vrot.slane %v4107, 7
        %v4216 = vsel %vm3980, %v4214, %v4215
        %v4217 = vrot.slane %v4108, 7
        %v4218 = vrot.slane %v4109, 7
        %v4219 = vsel %vm3980, %v4217, %v4218
        %v4220 = vrot.slane %v4110, 7
        %v4221 = vrot.slane %v4111, 7
        %v4222 = vsel %vm3980, %v4220, %v4221
        %v4223 = vrot.slane %v4112, 7
        %v4224 = vrot.slane %v4113, 7
        %v4225 = vsel %vm3980, %v4223, %v4224
        %v4226 = vrot.slane %v4114, 7
        %v4227 = vrot.slane %v4115, 7
        %v4228 = vsel %vm3980, %v4226, %v4227
        %vm4259 = vcmp.gt.f32.partialorder %v3883, %v4184
        %vm4260 = vcmp.gt.f32.partialorder %v3884, %v4186
        %vm4261 = vcmp.gt.f32.partialorder %v3885, %v4187
        %vm4262 = vcmp.gt.f32.partialorder %v3886, %v4189
        %vm4263 = vcmp.gt.f32.partialorder %v3887, %v4190
        %vm4264 = vcmp.gt.f32.partialorder %v3888, %v4192
        %vm4265 = vcmp.gt.f32.partialorder %v3889, %v4193
        %vm4266 = vcmp.gt.f32.partialorder %v3890, %v4195
        %vm4267 = vcmp.gt.f32.partialorder %v3891, %v4196
        %vm4268 = vcmp.gt.f32.partialorder %v3892, %v4198
        %vm4269 = vcmp.gt.f32.partialorder %v3893, %v4199
        %vm4270 = vcmp.gt.f32.partialorder %v3894, %v4201
        %vm4271 = vcmp.gt.f32.partialorder %v3895, %v4202
        %vm4272 = vcmp.gt.f32.partialorder %v3896, %v4204
        %vm4273 = vcmp.gt.f32.partialorder %v3897, %v4205
        %vm4274 = vcmp.gt.f32.partialorder %v3898, %v4207
        %vm4275 = vcmp.gt.f32.partialorder %v3899, %v4208
        %vm4276 = vcmp.gt.f32.partialorder %v3900, %v4210
        %vm4277 = vcmp.gt.f32.partialorder %v3901, %v4211
        %vm4278 = vcmp.gt.f32.partialorder %v3902, %v4213
        %vm4279 = vcmp.gt.f32.partialorder %v3903, %v4214
        %vm4280 = vcmp.gt.f32.partialorder %v3904, %v4216
        %vm4281 = vcmp.gt.f32.partialorder %v3905, %v4217
        %vm4282 = vcmp.gt.f32.partialorder %v3906, %v4219
        %vm4283 = vcmp.gt.f32.partialorder %v3907, %v4220
        %vm4284 = vcmp.gt.f32.partialorder %v3908, %v4222
        %vm4285 = vcmp.gt.f32.partialorder %v3909, %v4223
        %vm4286 = vcmp.gt.f32.partialorder %v3910, %v4225
        %vm4287 = vcmp.gt.f32.partialorder %v3911, %v4226
        %vm4288 = vcmp.gt.f32.partialorder %v3912, %v4228
        %v4289 = vsel %vm4259, %v3883, %v4184
        %v4290 = vsel %vm4260, %v3884, %v4186
        %v4291 = vsel %vm4261, %v3885, %v4187
        %v4292 = vsel %vm4262, %v3886, %v4189
        %v4293 = vsel %vm4263, %v3887, %v4190
        %v4294 = vsel %vm4264, %v3888, %v4192
        %v4295 = vsel %vm4265, %v3889, %v4193
        %v4296 = vsel %vm4266, %v3890, %v4195
        %v4297 = vsel %vm4267, %v3891, %v4196
        %v4298 = vsel %vm4268, %v3892, %v4198
        %v4299 = vsel %vm4269, %v3893, %v4199
        %v4300 = vsel %vm4270, %v3894, %v4201
        %v4301 = vsel %vm4271, %v3895, %v4202
        %v4302 = vsel %vm4272, %v3896, %v4204
        %v4303 = vsel %vm4273, %v3897, %v4205
        %v4304 = vsel %vm4274, %v3898, %v4207
        %v4305 = vsel %vm4275, %v3899, %v4208
        %v4306 = vsel %vm4276, %v3900, %v4210
        %v4307 = vsel %vm4277, %v3901, %v4211
        %v4308 = vsel %vm4278, %v3902, %v4213
        %v4309 = vsel %vm4279, %v3903, %v4214
        %v4310 = vsel %vm4280, %v3904, %v4216
        %v4311 = vsel %vm4281, %v3905, %v4217
        %v4312 = vsel %vm4282, %v3906, %v4219
        %v4313 = vsel %vm4283, %v3907, %v4220
        %v4314 = vsel %vm4284, %v3908, %v4222
        %v4315 = vsel %vm4285, %v3909, %v4223
        %v4316 = vsel %vm4286, %v3910, %v4225
        %v4317 = vsel %vm4287, %v3911, %v4226
        %v4318 = vsel %vm4288, %v3912, %v4228
        %v4319 = vadd.s32 %v3948, 2
        %v4320 = vadd.s32 %v3949, 2
        %v4321 = vrot.slane %v4319, 6
        %v4322 = vrot.slane %v4320, 6
        %v4323 = vsel %vm1235, %v4321, %v4322
        %v4324 = vrot.slane %v4124, 7
        %v4325 = vrot.slane %v4125, 7
        %v4326 = vsel %vm3980, %v4324, %v4325
        %v4327 = vrot.slane %v4126, 7
        %v4328 = vrot.slane %v4127, 7
        %v4329 = vsel %vm3980, %v4327, %v4328
        %v4330 = vrot.slane %v4128, 7
        %v4331 = vrot.slane %v4129, 7
        %v4332 = vsel %vm3980, %v4330, %v4331
        %v4333 = vrot.slane %v4130, 7
        %v4334 = vrot.slane %v4131, 7
        %v4335 = vsel %vm3980, %v4333, %v4334
        %v4336 = vrot.slane %v4132, 7
        %v4337 = vrot.slane %v4133, 7
        %v4338 = vsel %vm3980, %v4336, %v4337
        %v4339 = vrot.slane %v4134, 7
        %v4340 = vrot.slane %v4135, 7
        %v4341 = vsel %vm3980, %v4339, %v4340
        %v4342 = vrot.slane %v4136, 7
        %v4343 = vrot.slane %v4137, 7
        %v4344 = vsel %vm3980, %v4342, %v4343
        %v4345 = vrot.slane %v4138, 7
        %v4346 = vrot.slane %v4139, 7
        %v4347 = vsel %vm3980, %v4345, %v4346
        %v4348 = vrot.slane %v4140, 7
        %v4349 = vrot.slane %v4141, 7
        %v4350 = vsel %vm3980, %v4348, %v4349
        %v4351 = vrot.slane %v4142, 7
        %v4352 = vrot.slane %v4143, 7
        %v4353 = vsel %vm3980, %v4351, %v4352
        %v4354 = vrot.slane %v4144, 7
        %v4355 = vrot.slane %v4145, 7
        %v4356 = vsel %vm3980, %v4354, %v4355
        %v4357 = vrot.slane %v4146, 7
        %v4358 = vrot.slane %v4147, 7
        %v4359 = vsel %vm3980, %v4357, %v4358
        %v4360 = vrot.slane %v4148, 7
        %v4361 = vrot.slane %v4149, 7
        %v4362 = vsel %vm3980, %v4360, %v4361
        %v4363 = vrot.slane %v4150, 7
        %v4364 = vrot.slane %v4151, 7
        %v4365 = vsel %vm3980, %v4363, %v4364
        %v4366 = vrot.slane %v4152, 7
        %v4367 = vrot.slane %v4153, 7
        %v4368 = vsel %vm3980, %v4366, %v4367
        %v4369 = vsel %vm4259, %v4321, %v4324
        %v4370 = vsel %vm4260, %v4323, %v4326
        %v4371 = vsel %vm4261, %v4321, %v4327
        %v4372 = vsel %vm4262, %v4323, %v4329
        %v4373 = vsel %vm4263, %v4321, %v4330
        %v4374 = vsel %vm4264, %v4323, %v4332
        %v4375 = vsel %vm4265, %v4321, %v4333
        %v4376 = vsel %vm4266, %v4323, %v4335
        %v4377 = vsel %vm4267, %v4321, %v4336
        %v4378 = vsel %vm4268, %v4323, %v4338
        %v4379 = vsel %vm4269, %v4321, %v4339
        %v4380 = vsel %vm4270, %v4323, %v4341
        %v4381 = vsel %vm4271, %v4321, %v4342
        %v4382 = vsel %vm4272, %v4323, %v4344
        %v4383 = vsel %vm4273, %v4321, %v4345
        %v4384 = vsel %vm4274, %v4323, %v4347
        %v4385 = vsel %vm4275, %v4321, %v4348
        %v4386 = vsel %vm4276, %v4323, %v4350
        %v4387 = vsel %vm4277, %v4321, %v4351
        %v4388 = vsel %vm4278, %v4323, %v4353
        %v4389 = vsel %vm4279, %v4321, %v4354
        %v4390 = vsel %vm4280, %v4323, %v4356
        %v4391 = vsel %vm4281, %v4321, %v4357
        %v4392 = vsel %vm4282, %v4323, %v4359
        %v4393 = vsel %vm4283, %v4321, %v4360
        %v4394 = vsel %vm4284, %v4323, %v4362
        %v4395 = vsel %vm4285, %v4321, %v4363
        %v4396 = vsel %vm4286, %v4323, %v4365
        %v4397 = vsel %vm4287, %v4321, %v4366
        %v4398 = vsel %vm4288, %v4323, %v4368
        %v4429 = vrot.slane %v4289, 7
        %v4430 = vrot.slane %v4290, 7
        %v4431 = vsel %vm3980, %v4429, %v4430
        %v4432 = vrot.slane %v4291, 7
        %v4433 = vrot.slane %v4292, 7
        %v4434 = vsel %vm3980, %v4432, %v4433
        %v4435 = vrot.slane %v4293, 7
        %v4436 = vrot.slane %v4294, 7
        %v4437 = vsel %vm3980, %v4435, %v4436
        %v4438 = vrot.slane %v4295, 7
        %v4439 = vrot.slane %v4296, 7
        %v4440 = vsel %vm3980, %v4438, %v4439
        %v4441 = vrot.slane %v4297, 7
        %v4442 = vrot.slane %v4298, 7
        %v4443 = vsel %vm3980, %v4441, %v4442
        %v4444 = vrot.slane %v4299, 7
        %v4445 = vrot.slane %v4300, 7
        %v4446 = vsel %vm3980, %v4444, %v4445
        %v4447 = vrot.slane %v4301, 7
        %v4448 = vrot.slane %v4302, 7
        %v4449 = vsel %vm3980, %v4447, %v4448
        %v4450 = vrot.slane %v4303, 7
        %v4451 = vrot.slane %v4304, 7
        %v4452 = vsel %vm3980, %v4450, %v4451
        %v4453 = vrot.slane %v4305, 7
        %v4454 = vrot.slane %v4306, 7
        %v4455 = vsel %vm3980, %v4453, %v4454
        %v4456 = vrot.slane %v4307, 7
        %v4457 = vrot.slane %v4308, 7
        %v4458 = vsel %vm3980, %v4456, %v4457
        %v4459 = vrot.slane %v4309, 7
        %v4460 = vrot.slane %v4310, 7
        %v4461 = vsel %vm3980, %v4459, %v4460
        %v4462 = vrot.slane %v4311, 7
        %v4463 = vrot.slane %v4312, 7
        %v4464 = vsel %vm3980, %v4462, %v4463
        %v4465 = vrot.slane %v4313, 7
        %v4466 = vrot.slane %v4314, 7
        %v4467 = vsel %vm3980, %v4465, %v4466
        %v4468 = vrot.slane %v4315, 7
        %v4469 = vrot.slane %v4316, 7
        %v4470 = vsel %vm3980, %v4468, %v4469
        %v4471 = vrot.slane %v4317, 7
        %v4472 = vrot.slane %v4318, 7
        %v4473 = vsel %vm3980, %v4471, %v4472
        %vm4504 = vcmp.gt.f32.partialorder %v3883, %v4429
        %vm4505 = vcmp.gt.f32.partialorder %v3884, %v4431
        %vm4506 = vcmp.gt.f32.partialorder %v3885, %v4432
        %vm4507 = vcmp.gt.f32.partialorder %v3886, %v4434
        %vm4508 = vcmp.gt.f32.partialorder %v3887, %v4435
        %vm4509 = vcmp.gt.f32.partialorder %v3888, %v4437
        %vm4510 = vcmp.gt.f32.partialorder %v3889, %v4438
        %vm4511 = vcmp.gt.f32.partialorder %v3890, %v4440
        %vm4512 = vcmp.gt.f32.partialorder %v3891, %v4441
        %vm4513 = vcmp.gt.f32.partialorder %v3892, %v4443
        %vm4514 = vcmp.gt.f32.partialorder %v3893, %v4444
        %vm4515 = vcmp.gt.f32.partialorder %v3894, %v4446
        %vm4516 = vcmp.gt.f32.partialorder %v3895, %v4447
        %vm4517 = vcmp.gt.f32.partialorder %v3896, %v4449
        %vm4518 = vcmp.gt.f32.partialorder %v3897, %v4450
        %vm4519 = vcmp.gt.f32.partialorder %v3898, %v4452
        %vm4520 = vcmp.gt.f32.partialorder %v3899, %v4453
        %vm4521 = vcmp.gt.f32.partialorder %v3900, %v4455
        %vm4522 = vcmp.gt.f32.partialorder %v3901, %v4456
        %vm4523 = vcmp.gt.f32.partialorder %v3902, %v4458
        %vm4524 = vcmp.gt.f32.partialorder %v3903, %v4459
        %vm4525 = vcmp.gt.f32.partialorder %v3904, %v4461
        %vm4526 = vcmp.gt.f32.partialorder %v3905, %v4462
        %vm4527 = vcmp.gt.f32.partialorder %v3906, %v4464
        %vm4528 = vcmp.gt.f32.partialorder %v3907, %v4465
        %vm4529 = vcmp.gt.f32.partialorder %v3908, %v4467
        %vm4530 = vcmp.gt.f32.partialorder %v3909, %v4468
        %vm4531 = vcmp.gt.f32.partialorder %v3910, %v4470
        %vm4532 = vcmp.gt.f32.partialorder %v3911, %v4471
        %vm4533 = vcmp.gt.f32.partialorder %v3912, %v4473
        %v4534 = vsel %vm4504, %v3883, %v4429
        %v4535 = vsel %vm4505, %v3884, %v4431
        %v4536 = vsel %vm4506, %v3885, %v4432
        %v4537 = vsel %vm4507, %v3886, %v4434
        %v4538 = vsel %vm4508, %v3887, %v4435
        %v4539 = vsel %vm4509, %v3888, %v4437
        %v4540 = vsel %vm4510, %v3889, %v4438
        %v4541 = vsel %vm4511, %v3890, %v4440
        %v4542 = vsel %vm4512, %v3891, %v4441
        %v4543 = vsel %vm4513, %v3892, %v4443
        %v4544 = vsel %vm4514, %v3893, %v4444
        %v4545 = vsel %vm4515, %v3894, %v4446
        %v4546 = vsel %vm4516, %v3895, %v4447
        %v4547 = vsel %vm4517, %v3896, %v4449
        %v4548 = vsel %vm4518, %v3897, %v4450
        %v4549 = vsel %vm4519, %v3898, %v4452
        %v4550 = vsel %vm4520, %v3899, %v4453
        %v4551 = vsel %vm4521, %v3900, %v4455
        %v4552 = vsel %vm4522, %v3901, %v4456
        %v4553 = vsel %vm4523, %v3902, %v4458
        %v4554 = vsel %vm4524, %v3903, %v4459
        %v4555 = vsel %vm4525, %v3904, %v4461
        %v4556 = vsel %vm4526, %v3905, %v4462
        %v4557 = vsel %vm4527, %v3906, %v4464
        %v4558 = vsel %vm4528, %v3907, %v4465
        %v4559 = vsel %vm4529, %v3908, %v4467
        %v4560 = vsel %vm4530, %v3909, %v4468
        %v4561 = vsel %vm4531, %v3910, %v4470
        %v4562 = vsel %vm4532, %v3911, %v4471
        %v4563 = vsel %vm4533, %v3912, %v4473
        %v4564 = vadd.s32 %v3948, 3
        %v4565 = vadd.s32 %v3949, 3
        %v4566 = vrot.slane %v4564, 5
        %v4567 = vrot.slane %v4565, 5
        %v4568 = vsel %vm1058, %v4566, %v4567
        %v4569 = vrot.slane %v4369, 7
        %v4570 = vrot.slane %v4370, 7
        %v4571 = vsel %vm3980, %v4569, %v4570
        %v4572 = vrot.slane %v4371, 7
        %v4573 = vrot.slane %v4372, 7
        %v4574 = vsel %vm3980, %v4572, %v4573
        %v4575 = vrot.slane %v4373, 7
        %v4576 = vrot.slane %v4374, 7
        %v4577 = vsel %vm3980, %v4575, %v4576
        %v4578 = vrot.slane %v4375, 7
        %v4579 = vrot.slane %v4376, 7
        %v4580 = vsel %vm3980, %v4578, %v4579
        %v4581 = vrot.slane %v4377, 7
        %v4582 = vrot.slane %v4378, 7
        %v4583 = vsel %vm3980, %v4581, %v4582
        %v4584 = vrot.slane %v4379, 7
        %v4585 = vrot.slane %v4380, 7
        %v4586 = vsel %vm3980, %v4584, %v4585
        %v4587 = vrot.slane %v4381, 7
        %v4588 = vrot.slane %v4382, 7
        %v4589 = vsel %vm3980, %v4587, %v4588
        %v4590 = vrot.slane %v4383, 7
        %v4591 = vrot.slane %v4384, 7
        %v4592 = vsel %vm3980, %v4590, %v4591
        %v4593 = vrot.slane %v4385, 7
        %v4594 = vrot.slane %v4386, 7
        %v4595 = vsel %vm3980, %v4593, %v4594
        %v4596 = vrot.slane %v4387, 7
        %v4597 = vrot.slane %v4388, 7
        %v4598 = vsel %vm3980, %v4596, %v4597
        %v4599 = vrot.slane %v4389, 7
        %v4600 = vrot.slane %v4390, 7
        %v4601 = vsel %vm3980, %v4599, %v4600
        %v4602 = vrot.slane %v4391, 7
        %v4603 = vrot.slane %v4392, 7
        %v4604 = vsel %vm3980, %v4602, %v4603
        %v4605 = vrot.slane %v4393, 7
        %v4606 = vrot.slane %v4394, 7
        %v4607 = vsel %vm3980, %v4605, %v4606
        %v4608 = vrot.slane %v4395, 7
        %v4609 = vrot.slane %v4396, 7
        %v4610 = vsel %vm3980, %v4608, %v4609
        %v4611 = vrot.slane %v4397, 7
        %v4612 = vrot.slane %v4398, 7
        %v4613 = vsel %vm3980, %v4611, %v4612
        %v4614 = vsel %vm4504, %v4566, %v4569
        %v4615 = vsel %vm4505, %v4568, %v4571
        %v4616 = vsel %vm4506, %v4566, %v4572
        %v4617 = vsel %vm4507, %v4568, %v4574
        %v4618 = vsel %vm4508, %v4566, %v4575
        %v4619 = vsel %vm4509, %v4568, %v4577
        %v4620 = vsel %vm4510, %v4566, %v4578
        %v4621 = vsel %vm4511, %v4568, %v4580
        %v4622 = vsel %vm4512, %v4566, %v4581
        %v4623 = vsel %vm4513, %v4568, %v4583
        %v4624 = vsel %vm4514, %v4566, %v4584
        %v4625 = vsel %vm4515, %v4568, %v4586
        %v4626 = vsel %vm4516, %v4566, %v4587
        %v4627 = vsel %vm4517, %v4568, %v4589
        %v4628 = vsel %vm4518, %v4566, %v4590
        %v4629 = vsel %vm4519, %v4568, %v4592
        %v4630 = vsel %vm4520, %v4566, %v4593
        %v4631 = vsel %vm4521, %v4568, %v4595
        %v4632 = vsel %vm4522, %v4566, %v4596
        %v4633 = vsel %vm4523, %v4568, %v4598
        %v4634 = vsel %vm4524, %v4566, %v4599
        %v4635 = vsel %vm4525, %v4568, %v4601
        %v4636 = vsel %vm4526, %v4566, %v4602
        %v4637 = vsel %vm4527, %v4568, %v4604
        %v4638 = vsel %vm4528, %v4566, %v4605
        %v4639 = vsel %vm4529, %v4568, %v4607
        %v4640 = vsel %vm4530, %v4566, %v4608
        %v4641 = vsel %vm4531, %v4568, %v4610
        %v4642 = vsel %vm4532, %v4566, %v4611
        %v4643 = vsel %vm4533, %v4568, %v4613
        %v4674 = vrot.slane %v4534, 7
        %v4675 = vrot.slane %v4535, 7
        %v4676 = vsel %vm3980, %v4674, %v4675
        %v4677 = vrot.slane %v4536, 7
        %v4678 = vrot.slane %v4537, 7
        %v4679 = vsel %vm3980, %v4677, %v4678
        %v4680 = vrot.slane %v4538, 7
        %v4681 = vrot.slane %v4539, 7
        %v4682 = vsel %vm3980, %v4680, %v4681
        %v4683 = vrot.slane %v4540, 7
        %v4684 = vrot.slane %v4541, 7
        %v4685 = vsel %vm3980, %v4683, %v4684
        %v4686 = vrot.slane %v4542, 7
        %v4687 = vrot.slane %v4543, 7
        %v4688 = vsel %vm3980, %v4686, %v4687
        %v4689 = vrot.slane %v4544, 7
        %v4690 = vrot.slane %v4545, 7
        %v4691 = vsel %vm3980, %v4689, %v4690
        %v4692 = vrot.slane %v4546, 7
        %v4693 = vrot.slane %v4547, 7
        %v4694 = vsel %vm3980, %v4692, %v4693
        %v4695 = vrot.slane %v4548, 7
        %v4696 = vrot.slane %v4549, 7
        %v4697 = vsel %vm3980, %v4695, %v4696
        %v4698 = vrot.slane %v4550, 7
        %v4699 = vrot.slane %v4551, 7
        %v4700 = vsel %vm3980, %v4698, %v4699
        %v4701 = vrot.slane %v4552, 7
        %v4702 = vrot.slane %v4553, 7
        %v4703 = vsel %vm3980, %v4701, %v4702
        %v4704 = vrot.slane %v4554, 7
        %v4705 = vrot.slane %v4555, 7
        %v4706 = vsel %vm3980, %v4704, %v4705
        %v4707 = vrot.slane %v4556, 7
        %v4708 = vrot.slane %v4557, 7
        %v4709 = vsel %vm3980, %v4707, %v4708
        %v4710 = vrot.slane %v4558, 7
        %v4711 = vrot.slane %v4559, 7
        %v4712 = vsel %vm3980, %v4710, %v4711
        %v4713 = vrot.slane %v4560, 7
        %v4714 = vrot.slane %v4561, 7
        %v4715 = vsel %vm3980, %v4713, %v4714
        %v4716 = vrot.slane %v4562, 7
        %v4717 = vrot.slane %v4563, 7
        %v4718 = vsel %vm3980, %v4716, %v4717
        %vm4749 = vcmp.gt.f32.partialorder %v3883, %v4674
        %vm4750 = vcmp.gt.f32.partialorder %v3884, %v4676
        %vm4751 = vcmp.gt.f32.partialorder %v3885, %v4677
        %vm4752 = vcmp.gt.f32.partialorder %v3886, %v4679
        %vm4753 = vcmp.gt.f32.partialorder %v3887, %v4680
        %vm4754 = vcmp.gt.f32.partialorder %v3888, %v4682
        %vm4755 = vcmp.gt.f32.partialorder %v3889, %v4683
        %vm4756 = vcmp.gt.f32.partialorder %v3890, %v4685
        %vm4757 = vcmp.gt.f32.partialorder %v3891, %v4686
        %vm4758 = vcmp.gt.f32.partialorder %v3892, %v4688
        %vm4759 = vcmp.gt.f32.partialorder %v3893, %v4689
        %vm4760 = vcmp.gt.f32.partialorder %v3894, %v4691
        %vm4761 = vcmp.gt.f32.partialorder %v3895, %v4692
        %vm4762 = vcmp.gt.f32.partialorder %v3896, %v4694
        %vm4763 = vcmp.gt.f32.partialorder %v3897, %v4695
        %vm4764 = vcmp.gt.f32.partialorder %v3898, %v4697
        %vm4765 = vcmp.gt.f32.partialorder %v3899, %v4698
        %vm4766 = vcmp.gt.f32.partialorder %v3900, %v4700
        %vm4767 = vcmp.gt.f32.partialorder %v3901, %v4701
        %vm4768 = vcmp.gt.f32.partialorder %v3902, %v4703
        %vm4769 = vcmp.gt.f32.partialorder %v3903, %v4704
        %vm4770 = vcmp.gt.f32.partialorder %v3904, %v4706
        %vm4771 = vcmp.gt.f32.partialorder %v3905, %v4707
        %vm4772 = vcmp.gt.f32.partialorder %v3906, %v4709
        %vm4773 = vcmp.gt.f32.partialorder %v3907, %v4710
        %vm4774 = vcmp.gt.f32.partialorder %v3908, %v4712
        %vm4775 = vcmp.gt.f32.partialorder %v3909, %v4713
        %vm4776 = vcmp.gt.f32.partialorder %v3910, %v4715
        %vm4777 = vcmp.gt.f32.partialorder %v3911, %v4716
        %vm4778 = vcmp.gt.f32.partialorder %v3912, %v4718
        %v4779 = vsel %vm4749, %v3883, %v4674
        %v4780 = vsel %vm4750, %v3884, %v4676
        %v4781 = vsel %vm4751, %v3885, %v4677
        %v4782 = vsel %vm4752, %v3886, %v4679
        %v4783 = vsel %vm4753, %v3887, %v4680
        %v4784 = vsel %vm4754, %v3888, %v4682
        %v4785 = vsel %vm4755, %v3889, %v4683
        %v4786 = vsel %vm4756, %v3890, %v4685
        %v4787 = vsel %vm4757, %v3891, %v4686
        %v4788 = vsel %vm4758, %v3892, %v4688
        %v4789 = vsel %vm4759, %v3893, %v4689
        %v4790 = vsel %vm4760, %v3894, %v4691
        %v4791 = vsel %vm4761, %v3895, %v4692
        %v4792 = vsel %vm4762, %v3896, %v4694
        %v4793 = vsel %vm4763, %v3897, %v4695
        %v4794 = vsel %vm4764, %v3898, %v4697
        %v4795 = vsel %vm4765, %v3899, %v4698
        %v4796 = vsel %vm4766, %v3900, %v4700
        %v4797 = vsel %vm4767, %v3901, %v4701
        %v4798 = vsel %vm4768, %v3902, %v4703
        %v4799 = vsel %vm4769, %v3903, %v4704
        %v4800 = vsel %vm4770, %v3904, %v4706
        %v4801 = vsel %vm4771, %v3905, %v4707
        %v4802 = vsel %vm4772, %v3906, %v4709
        %v4803 = vsel %vm4773, %v3907, %v4710
        %v4804 = vsel %vm4774, %v3908, %v4712
        %v4805 = vsel %vm4775, %v3909, %v4713
        %v4806 = vsel %vm4776, %v3910, %v4715
        %v4807 = vsel %vm4777, %v3911, %v4716
        %v4808 = vsel %vm4778, %v3912, %v4718
        %v4809 = vadd.s32 %v3948, 4
        %v4810 = vadd.s32 %v3949, 4
        %v4811 = vrot.slane %v4809, 4
        %v4812 = vrot.slane %v4810, 4
        %v4813 = vsel %vm881, %v4811, %v4812
        %v4814 = vrot.slane %v4614, 7
        %v4815 = vrot.slane %v4615, 7
        %v4816 = vsel %vm3980, %v4814, %v4815
        %v4817 = vrot.slane %v4616, 7
        %v4818 = vrot.slane %v4617, 7
        %v4819 = vsel %vm3980, %v4817, %v4818
        %v4820 = vrot.slane %v4618, 7
        %v4821 = vrot.slane %v4619, 7
        %v4822 = vsel %vm3980, %v4820, %v4821
        %v4823 = vrot.slane %v4620, 7
        %v4824 = vrot.slane %v4621, 7
        %v4825 = vsel %vm3980, %v4823, %v4824
        %v4826 = vrot.slane %v4622, 7
        %v4827 = vrot.slane %v4623, 7
        %v4828 = vsel %vm3980, %v4826, %v4827
        %v4829 = vrot.slane %v4624, 7
        %v4830 = vrot.slane %v4625, 7
        %v4831 = vsel %vm3980, %v4829, %v4830
        %v4832 = vrot.slane %v4626, 7
        %v4833 = vrot.slane %v4627, 7
        %v4834 = vsel %vm3980, %v4832, %v4833
        %v4835 = vrot.slane %v4628, 7
        %v4836 = vrot.slane %v4629, 7
        %v4837 = vsel %vm3980, %v4835, %v4836
        %v4838 = vrot.slane %v4630, 7
        %v4839 = vrot.slane %v4631, 7
        %v4840 = vsel %vm3980, %v4838, %v4839
        %v4841 = vrot.slane %v4632, 7
        %v4842 = vrot.slane %v4633, 7
        %v4843 = vsel %vm3980, %v4841, %v4842
        %v4844 = vrot.slane %v4634, 7
        %v4845 = vrot.slane %v4635, 7
        %v4846 = vsel %vm3980, %v4844, %v4845
        %v4847 = vrot.slane %v4636, 7
        %v4848 = vrot.slane %v4637, 7
        %v4849 = vsel %vm3980, %v4847, %v4848
        %v4850 = vrot.slane %v4638, 7
        %v4851 = vrot.slane %v4639, 7
        %v4852 = vsel %vm3980, %v4850, %v4851
        %v4853 = vrot.slane %v4640, 7
        %v4854 = vrot.slane %v4641, 7
        %v4855 = vsel %vm3980, %v4853, %v4854
        %v4856 = vrot.slane %v4642, 7
        %v4857 = vrot.slane %v4643, 7
        %v4858 = vsel %vm3980, %v4856, %v4857
        %v4859 = vsel %vm4749, %v4811, %v4814
        %v4860 = vsel %vm4750, %v4813, %v4816
        %v4861 = vsel %vm4751, %v4811, %v4817
        %v4862 = vsel %vm4752, %v4813, %v4819
        %v4863 = vsel %vm4753, %v4811, %v4820
        %v4864 = vsel %vm4754, %v4813, %v4822
        %v4865 = vsel %vm4755, %v4811, %v4823
        %v4866 = vsel %vm4756, %v4813, %v4825
        %v4867 = vsel %vm4757, %v4811, %v4826
        %v4868 = vsel %vm4758, %v4813, %v4828
        %v4869 = vsel %vm4759, %v4811, %v4829
        %v4870 = vsel %vm4760, %v4813, %v4831
        %v4871 = vsel %vm4761, %v4811, %v4832
        %v4872 = vsel %vm4762, %v4813, %v4834
        %v4873 = vsel %vm4763, %v4811, %v4835
        %v4874 = vsel %vm4764, %v4813, %v4837
        %v4875 = vsel %vm4765, %v4811, %v4838
        %v4876 = vsel %vm4766, %v4813, %v4840
        %v4877 = vsel %vm4767, %v4811, %v4841
        %v4878 = vsel %vm4768, %v4813, %v4843
        %v4879 = vsel %vm4769, %v4811, %v4844
        %v4880 = vsel %vm4770, %v4813, %v4846
        %v4881 = vsel %vm4771, %v4811, %v4847
        %v4882 = vsel %vm4772, %v4813, %v4849
        %v4883 = vsel %vm4773, %v4811, %v4850
        %v4884 = vsel %vm4774, %v4813, %v4852
        %v4885 = vsel %vm4775, %v4811, %v4853
        %v4886 = vsel %vm4776, %v4813, %v4855
        %v4887 = vsel %vm4777, %v4811, %v4856
        %v4888 = vsel %vm4778, %v4813, %v4858
        %v4919 = vrot.slane %v4779, 7
        %v4920 = vrot.slane %v4780, 7
        %v4921 = vsel %vm3980, %v4919, %v4920
        %v4922 = vrot.slane %v4781, 7
        %v4923 = vrot.slane %v4782, 7
        %v4924 = vsel %vm3980, %v4922, %v4923
        %v4925 = vrot.slane %v4783, 7
        %v4926 = vrot.slane %v4784, 7
        %v4927 = vsel %vm3980, %v4925, %v4926
        %v4928 = vrot.slane %v4785, 7
        %v4929 = vrot.slane %v4786, 7
        %v4930 = vsel %vm3980, %v4928, %v4929
        %v4931 = vrot.slane %v4787, 7
        %v4932 = vrot.slane %v4788, 7
        %v4933 = vsel %vm3980, %v4931, %v4932
        %v4934 = vrot.slane %v4789, 7
        %v4935 = vrot.slane %v4790, 7
        %v4936 = vsel %vm3980, %v4934, %v4935
        %v4937 = vrot.slane %v4791, 7
        %v4938 = vrot.slane %v4792, 7
        %v4939 = vsel %vm3980, %v4937, %v4938
        %v4940 = vrot.slane %v4793, 7
        %v4941 = vrot.slane %v4794, 7
        %v4942 = vsel %vm3980, %v4940, %v4941
        %v4943 = vrot.slane %v4795, 7
        %v4944 = vrot.slane %v4796, 7
        %v4945 = vsel %vm3980, %v4943, %v4944
        %v4946 = vrot.slane %v4797, 7
        %v4947 = vrot.slane %v4798, 7
        %v4948 = vsel %vm3980, %v4946, %v4947
        %v4949 = vrot.slane %v4799, 7
        %v4950 = vrot.slane %v4800, 7
        %v4951 = vsel %vm3980, %v4949, %v4950
        %v4952 = vrot.slane %v4801, 7
        %v4953 = vrot.slane %v4802, 7
        %v4954 = vsel %vm3980, %v4952, %v4953
        %v4955 = vrot.slane %v4803, 7
        %v4956 = vrot.slane %v4804, 7
        %v4957 = vsel %vm3980, %v4955, %v4956
        %v4958 = vrot.slane %v4805, 7
        %v4959 = vrot.slane %v4806, 7
        %v4960 = vsel %vm3980, %v4958, %v4959
        %v4961 = vrot.slane %v4807, 7
        %v4962 = vrot.slane %v4808, 7
        %v4963 = vsel %vm3980, %v4961, %v4962
        %vm4994 = vcmp.gt.f32.partialorder %v3883, %v4919
        %vm4995 = vcmp.gt.f32.partialorder %v3884, %v4921
        %vm4996 = vcmp.gt.f32.partialorder %v3885, %v4922
        %vm4997 = vcmp.gt.f32.partialorder %v3886, %v4924
        %vm4998 = vcmp.gt.f32.partialorder %v3887, %v4925
        %vm4999 = vcmp.gt.f32.partialorder %v3888, %v4927
        %vm5000 = vcmp.gt.f32.partialorder %v3889, %v4928
        %vm5001 = vcmp.gt.f32.partialorder %v3890, %v4930
        %vm5002 = vcmp.gt.f32.partialorder %v3891, %v4931
        %vm5003 = vcmp.gt.f32.partialorder %v3892, %v4933
        %vm5004 = vcmp.gt.f32.partialorder %v3893, %v4934
        %vm5005 = vcmp.gt.f32.partialorder %v3894, %v4936
        %vm5006 = vcmp.gt.f32.partialorder %v3895, %v4937
        %vm5007 = vcmp.gt.f32.partialorder %v3896, %v4939
        %vm5008 = vcmp.gt.f32.partialorder %v3897, %v4940
        %vm5009 = vcmp.gt.f32.partialorder %v3898, %v4942
        %vm5010 = vcmp.gt.f32.partialorder %v3899, %v4943
        %vm5011 = vcmp.gt.f32.partialorder %v3900, %v4945
        %vm5012 = vcmp.gt.f32.partialorder %v3901, %v4946
        %vm5013 = vcmp.gt.f32.partialorder %v3902, %v4948
        %vm5014 = vcmp.gt.f32.partialorder %v3903, %v4949
        %vm5015 = vcmp.gt.f32.partialorder %v3904, %v4951
        %vm5016 = vcmp.gt.f32.partialorder %v3905, %v4952
        %vm5017 = vcmp.gt.f32.partialorder %v3906, %v4954
        %vm5018 = vcmp.gt.f32.partialorder %v3907, %v4955
        %vm5019 = vcmp.gt.f32.partialorder %v3908, %v4957
        %vm5020 = vcmp.gt.f32.partialorder %v3909, %v4958
        %vm5021 = vcmp.gt.f32.partialorder %v3910, %v4960
        %vm5022 = vcmp.gt.f32.partialorder %v3911, %v4961
        %vm5023 = vcmp.gt.f32.partialorder %v3912, %v4963
        %v5024 = vsel %vm4994, %v3883, %v4919
        %v5025 = vsel %vm4995, %v3884, %v4921
        %v5026 = vsel %vm4996, %v3885, %v4922
        %v5027 = vsel %vm4997, %v3886, %v4924
        %v5028 = vsel %vm4998, %v3887, %v4925
        %v5029 = vsel %vm4999, %v3888, %v4927
        %v5030 = vsel %vm5000, %v3889, %v4928
        %v5031 = vsel %vm5001, %v3890, %v4930
        %v5032 = vsel %vm5002, %v3891, %v4931
        %v5033 = vsel %vm5003, %v3892, %v4933
        %v5034 = vsel %vm5004, %v3893, %v4934
        %v5035 = vsel %vm5005, %v3894, %v4936
        %v5036 = vsel %vm5006, %v3895, %v4937
        %v5037 = vsel %vm5007, %v3896, %v4939
        %v5038 = vsel %vm5008, %v3897, %v4940
        %v5039 = vsel %vm5009, %v3898, %v4942
        %v5040 = vsel %vm5010, %v3899, %v4943
        %v5041 = vsel %vm5011, %v3900, %v4945
        %v5042 = vsel %vm5012, %v3901, %v4946
        %v5043 = vsel %vm5013, %v3902, %v4948
        %v5044 = vsel %vm5014, %v3903, %v4949
        %v5045 = vsel %vm5015, %v3904, %v4951
        %v5046 = vsel %vm5016, %v3905, %v4952
        %v5047 = vsel %vm5017, %v3906, %v4954
        %v5048 = vsel %vm5018, %v3907, %v4955
        %v5049 = vsel %vm5019, %v3908, %v4957
        %v5050 = vsel %vm5020, %v3909, %v4958
        %v5051 = vsel %vm5021, %v3910, %v4960
        %v5052 = vsel %vm5022, %v3911, %v4961
        %v5053 = vsel %vm5023, %v3912, %v4963
        %v5054 = vadd.s32 %v3948, 5
        %v5055 = vadd.s32 %v3949, 5
        %v5056 = vrot.slane %v5054, 3
        %v5057 = vrot.slane %v5055, 3
        %v5058 = vsel %vm704, %v5056, %v5057
        %v5059 = vrot.slane %v4859, 7
        %v5060 = vrot.slane %v4860, 7
        %v5061 = vsel %vm3980, %v5059, %v5060
        %v5062 = vrot.slane %v4861, 7
        %v5063 = vrot.slane %v4862, 7
        %v5064 = vsel %vm3980, %v5062, %v5063
        %v5065 = vrot.slane %v4863, 7
        %v5066 = vrot.slane %v4864, 7
        %v5067 = vsel %vm3980, %v5065, %v5066
        %v5068 = vrot.slane %v4865, 7
        %v5069 = vrot.slane %v4866, 7
        %v5070 = vsel %vm3980, %v5068, %v5069
        %v5071 = vrot.slane %v4867, 7
        %v5072 = vrot.slane %v4868, 7
        %v5073 = vsel %vm3980, %v5071, %v5072
        %v5074 = vrot.slane %v4869, 7
        %v5075 = vrot.slane %v4870, 7
        %v5076 = vsel %vm3980, %v5074, %v5075
        %v5077 = vrot.slane %v4871, 7
        %v5078 = vrot.slane %v4872, 7
        %v5079 = vsel %vm3980, %v5077, %v5078
        %v5080 = vrot.slane %v4873, 7
        %v5081 = vrot.slane %v4874, 7
        %v5082 = vsel %vm3980, %v5080, %v5081
        %v5083 = vrot.slane %v4875, 7
        %v5084 = vrot.slane %v4876, 7
        %v5085 = vsel %vm3980, %v5083, %v5084
        %v5086 = vrot.slane %v4877, 7
        %v5087 = vrot.slane %v4878, 7
        %v5088 = vsel %vm3980, %v5086, %v5087
        %v5089 = vrot.slane %v4879, 7
        %v5090 = vrot.slane %v4880, 7
        %v5091 = vsel %vm3980, %v5089, %v5090
        %v5092 = vrot.slane %v4881, 7
        %v5093 = vrot.slane %v4882, 7
        %v5094 = vsel %vm3980, %v5092, %v5093
        %v5095 = vrot.slane %v4883, 7
        %v5096 = vrot.slane %v4884, 7
        %v5097 = vsel %vm3980, %v5095, %v5096
        %v5098 = vrot.slane %v4885, 7
        %v5099 = vrot.slane %v4886, 7
        %v5100 = vsel %vm3980, %v5098, %v5099
        %v5101 = vrot.slane %v4887, 7
        %v5102 = vrot.slane %v4888, 7
        %v5103 = vsel %vm3980, %v5101, %v5102
        %v5104 = vsel %vm4994, %v5056, %v5059
        %v5105 = vsel %vm4995, %v5058, %v5061
        %v5106 = vsel %vm4996, %v5056, %v5062
        %v5107 = vsel %vm4997, %v5058, %v5064
        %v5108 = vsel %vm4998, %v5056, %v5065
        %v5109 = vsel %vm4999, %v5058, %v5067
        %v5110 = vsel %vm5000, %v5056, %v5068
        %v5111 = vsel %vm5001, %v5058, %v5070
        %v5112 = vsel %vm5002, %v5056, %v5071
        %v5113 = vsel %vm5003, %v5058, %v5073
        %v5114 = vsel %vm5004, %v5056, %v5074
        %v5115 = vsel %vm5005, %v5058, %v5076
        %v5116 = vsel %vm5006, %v5056, %v5077
        %v5117 = vsel %vm5007, %v5058, %v5079
        %v5118 = vsel %vm5008, %v5056, %v5080
        %v5119 = vsel %vm5009, %v5058, %v5082
        %v5120 = vsel %vm5010, %v5056, %v5083
        %v5121 = vsel %vm5011, %v5058, %v5085
        %v5122 = vsel %vm5012, %v5056, %v5086
        %v5123 = vsel %vm5013, %v5058, %v5088
        %v5124 = vsel %vm5014, %v5056, %v5089
        %v5125 = vsel %vm5015, %v5058, %v5091
        %v5126 = vsel %vm5016, %v5056, %v5092
        %v5127 = vsel %vm5017, %v5058, %v5094
        %v5128 = vsel %vm5018, %v5056, %v5095
        %v5129 = vsel %vm5019, %v5058, %v5097
        %v5130 = vsel %vm5020, %v5056, %v5098
        %v5131 = vsel %vm5021, %v5058, %v5100
        %v5132 = vsel %vm5022, %v5056, %v5101
        %v5133 = vsel %vm5023, %v5058, %v5103
        %v5164 = vrot.slane %v5024, 7
        %v5165 = vrot.slane %v5025, 7
        %v5166 = vsel %vm3980, %v5164, %v5165
        %v5167 = vrot.slane %v5026, 7
        %v5168 = vrot.slane %v5027, 7
        %v5169 = vsel %vm3980, %v5167, %v5168
        %v5170 = vrot.slane %v5028, 7
        %v5171 = vrot.slane %v5029, 7
        %v5172 = vsel %vm3980, %v5170, %v5171
        %v5173 = vrot.slane %v5030, 7
        %v5174 = vrot.slane %v5031, 7
        %v5175 = vsel %vm3980, %v5173, %v5174
        %v5176 = vrot.slane %v5032, 7
        %v5177 = vrot.slane %v5033, 7
        %v5178 = vsel %vm3980, %v5176, %v5177
        %v5179 = vrot.slane %v5034, 7
        %v5180 = vrot.slane %v5035, 7
        %v5181 = vsel %vm3980, %v5179, %v5180
        %v5182 = vrot.slane %v5036, 7
        %v5183 = vrot.slane %v5037, 7
        %v5184 = vsel %vm3980, %v5182, %v5183
        %v5185 = vrot.slane %v5038, 7
        %v5186 = vrot.slane %v5039, 7
        %v5187 = vsel %vm3980, %v5185, %v5186
        %v5188 = vrot.slane %v5040, 7
        %v5189 = vrot.slane %v5041, 7
        %v5190 = vsel %vm3980, %v5188, %v5189
        %v5191 = vrot.slane %v5042, 7
        %v5192 = vrot.slane %v5043, 7
        %v5193 = vsel %vm3980, %v5191, %v5192
        %v5194 = vrot.slane %v5044, 7
        %v5195 = vrot.slane %v5045, 7
        %v5196 = vsel %vm3980, %v5194, %v5195
        %v5197 = vrot.slane %v5046, 7
        %v5198 = vrot.slane %v5047, 7
        %v5199 = vsel %vm3980, %v5197, %v5198
        %v5200 = vrot.slane %v5048, 7
        %v5201 = vrot.slane %v5049, 7
        %v5202 = vsel %vm3980, %v5200, %v5201
        %v5203 = vrot.slane %v5050, 7
        %v5204 = vrot.slane %v5051, 7
        %v5205 = vsel %vm3980, %v5203, %v5204
        %v5206 = vrot.slane %v5052, 7
        %v5207 = vrot.slane %v5053, 7
        %v5208 = vsel %vm3980, %v5206, %v5207
        %vm5239 = vcmp.gt.f32.partialorder %v3883, %v5164
        %vm5240 = vcmp.gt.f32.partialorder %v3884, %v5166
        %vm5241 = vcmp.gt.f32.partialorder %v3885, %v5167
        %vm5242 = vcmp.gt.f32.partialorder %v3886, %v5169
        %vm5243 = vcmp.gt.f32.partialorder %v3887, %v5170
        %vm5244 = vcmp.gt.f32.partialorder %v3888, %v5172
        %vm5245 = vcmp.gt.f32.partialorder %v3889, %v5173
        %vm5246 = vcmp.gt.f32.partialorder %v3890, %v5175
        %vm5247 = vcmp.gt.f32.partialorder %v3891, %v5176
        %vm5248 = vcmp.gt.f32.partialorder %v3892, %v5178
        %vm5249 = vcmp.gt.f32.partialorder %v3893, %v5179
        %vm5250 = vcmp.gt.f32.partialorder %v3894, %v5181
        %vm5251 = vcmp.gt.f32.partialorder %v3895, %v5182
        %vm5252 = vcmp.gt.f32.partialorder %v3896, %v5184
        %vm5253 = vcmp.gt.f32.partialorder %v3897, %v5185
        %vm5254 = vcmp.gt.f32.partialorder %v3898, %v5187
        %vm5255 = vcmp.gt.f32.partialorder %v3899, %v5188
        %vm5256 = vcmp.gt.f32.partialorder %v3900, %v5190
        %vm5257 = vcmp.gt.f32.partialorder %v3901, %v5191
        %vm5258 = vcmp.gt.f32.partialorder %v3902, %v5193
        %vm5259 = vcmp.gt.f32.partialorder %v3903, %v5194
        %vm5260 = vcmp.gt.f32.partialorder %v3904, %v5196
        %vm5261 = vcmp.gt.f32.partialorder %v3905, %v5197
        %vm5262 = vcmp.gt.f32.partialorder %v3906, %v5199
        %vm5263 = vcmp.gt.f32.partialorder %v3907, %v5200
        %vm5264 = vcmp.gt.f32.partialorder %v3908, %v5202
        %vm5265 = vcmp.gt.f32.partialorder %v3909, %v5203
        %vm5266 = vcmp.gt.f32.partialorder %v3910, %v5205
        %vm5267 = vcmp.gt.f32.partialorder %v3911, %v5206
        %vm5268 = vcmp.gt.f32.partialorder %v3912, %v5208
        %v5269 = vsel %vm5239, %v3883, %v5164
        %v5270 = vsel %vm5240, %v3884, %v5166
        %v5271 = vsel %vm5241, %v3885, %v5167
        %v5272 = vsel %vm5242, %v3886, %v5169
        %v5273 = vsel %vm5243, %v3887, %v5170
        %v5274 = vsel %vm5244, %v3888, %v5172
        %v5275 = vsel %vm5245, %v3889, %v5173
        %v5276 = vsel %vm5246, %v3890, %v5175
        %v5277 = vsel %vm5247, %v3891, %v5176
        %v5278 = vsel %vm5248, %v3892, %v5178
        %v5279 = vsel %vm5249, %v3893, %v5179
        %v5280 = vsel %vm5250, %v3894, %v5181
        %v5281 = vsel %vm5251, %v3895, %v5182
        %v5282 = vsel %vm5252, %v3896, %v5184
        %v5283 = vsel %vm5253, %v3897, %v5185
        %v5284 = vsel %vm5254, %v3898, %v5187
        %v5285 = vsel %vm5255, %v3899, %v5188
        %v5286 = vsel %vm5256, %v3900, %v5190
        %v5287 = vsel %vm5257, %v3901, %v5191
        %v5288 = vsel %vm5258, %v3902, %v5193
        %v5289 = vsel %vm5259, %v3903, %v5194
        %v5290 = vsel %vm5260, %v3904, %v5196
        %v5291 = vsel %vm5261, %v3905, %v5197
        %v5292 = vsel %vm5262, %v3906, %v5199
        %v5293 = vsel %vm5263, %v3907, %v5200
        %v5294 = vsel %vm5264, %v3908, %v5202
        %v5295 = vsel %vm5265, %v3909, %v5203
        %v5296 = vsel %vm5266, %v3910, %v5205
        %v5297 = vsel %vm5267, %v3911, %v5206
        %v5298 = vsel %vm5268, %v3912, %v5208
        %v5299 = vadd.s32 %v3948, 6
        %v5300 = vadd.s32 %v3949, 6
        %v5301 = vrot.slane %v5299, 2
        %v5302 = vrot.slane %v5300, 2
        %v5303 = vsel %vm527, %v5301, %v5302
        %v5304 = vrot.slane %v5104, 7
        %v5305 = vrot.slane %v5105, 7
        %v5306 = vsel %vm3980, %v5304, %v5305
        %v5307 = vrot.slane %v5106, 7
        %v5308 = vrot.slane %v5107, 7
        %v5309 = vsel %vm3980, %v5307, %v5308
        %v5310 = vrot.slane %v5108, 7
        %v5311 = vrot.slane %v5109, 7
        %v5312 = vsel %vm3980, %v5310, %v5311
        %v5313 = vrot.slane %v5110, 7
        %v5314 = vrot.slane %v5111, 7
        %v5315 = vsel %vm3980, %v5313, %v5314
        %v5316 = vrot.slane %v5112, 7
        %v5317 = vrot.slane %v5113, 7
        %v5318 = vsel %vm3980, %v5316, %v5317
        %v5319 = vrot.slane %v5114, 7
        %v5320 = vrot.slane %v5115, 7
        %v5321 = vsel %vm3980, %v5319, %v5320
        %v5322 = vrot.slane %v5116, 7
        %v5323 = vrot.slane %v5117, 7
        %v5324 = vsel %vm3980, %v5322, %v5323
        %v5325 = vrot.slane %v5118, 7
        %v5326 = vrot.slane %v5119, 7
        %v5327 = vsel %vm3980, %v5325, %v5326
        %v5328 = vrot.slane %v5120, 7
        %v5329 = vrot.slane %v5121, 7
        %v5330 = vsel %vm3980, %v5328, %v5329
        %v5331 = vrot.slane %v5122, 7
        %v5332 = vrot.slane %v5123, 7
        %v5333 = vsel %vm3980, %v5331, %v5332
        %v5334 = vrot.slane %v5124, 7
        %v5335 = vrot.slane %v5125, 7
        %v5336 = vsel %vm3980, %v5334, %v5335
        %v5337 = vrot.slane %v5126, 7
        %v5338 = vrot.slane %v5127, 7
        %v5339 = vsel %vm3980, %v5337, %v5338
        %v5340 = vrot.slane %v5128, 7
        %v5341 = vrot.slane %v5129, 7
        %v5342 = vsel %vm3980, %v5340, %v5341
        %v5343 = vrot.slane %v5130, 7
        %v5344 = vrot.slane %v5131, 7
        %v5345 = vsel %vm3980, %v5343, %v5344
        %v5346 = vrot.slane %v5132, 7
        %v5347 = vrot.slane %v5133, 7
        %v5348 = vsel %vm3980, %v5346, %v5347
        %v5349 = vsel %vm5239, %v5301, %v5304
        %v5350 = vsel %vm5240, %v5303, %v5306
        %v5351 = vsel %vm5241, %v5301, %v5307
        %v5352 = vsel %vm5242, %v5303, %v5309
        %v5353 = vsel %vm5243, %v5301, %v5310
        %v5354 = vsel %vm5244, %v5303, %v5312
        %v5355 = vsel %vm5245, %v5301, %v5313
        %v5356 = vsel %vm5246, %v5303, %v5315
        %v5357 = vsel %vm5247, %v5301, %v5316
        %v5358 = vsel %vm5248, %v5303, %v5318
        %v5359 = vsel %vm5249, %v5301, %v5319
        %v5360 = vsel %vm5250, %v5303, %v5321
        %v5361 = vsel %vm5251, %v5301, %v5322
        %v5362 = vsel %vm5252, %v5303, %v5324
        %v5363 = vsel %vm5253, %v5301, %v5325
        %v5364 = vsel %vm5254, %v5303, %v5327
        %v5365 = vsel %vm5255, %v5301, %v5328
        %v5366 = vsel %vm5256, %v5303, %v5330
        %v5367 = vsel %vm5257, %v5301, %v5331
        %v5368 = vsel %vm5258, %v5303, %v5333
        %v5369 = vsel %vm5259, %v5301, %v5334
        %v5370 = vsel %vm5260, %v5303, %v5336
        %v5371 = vsel %vm5261, %v5301, %v5337
        %v5372 = vsel %vm5262, %v5303, %v5339
        %v5373 = vsel %vm5263, %v5301, %v5340
        %v5374 = vsel %vm5264, %v5303, %v5342
        %v5375 = vsel %vm5265, %v5301, %v5343
        %v5376 = vsel %vm5266, %v5303, %v5345
        %v5377 = vsel %vm5267, %v5301, %v5346
        %v5378 = vsel %vm5268, %v5303, %v5348
        %v5394 = vrot.slane %v5269, 6
        %v5395 = vrot.slane %v5271, 6
        %v5396 = vrot.slane %v5273, 6
        %v5397 = vrot.slane %v5275, 6
        %v5398 = vrot.slane %v5277, 6
        %v5399 = vrot.slane %v5279, 6
        %v5400 = vrot.slane %v5281, 6
        %v5401 = vrot.slane %v5283, 6
        %v5402 = vrot.slane %v5285, 6
        %v5403 = vrot.slane %v5287, 6
        %v5404 = vrot.slane %v5289, 6
        %v5405 = vrot.slane %v5291, 6
        %v5406 = vrot.slane %v5293, 6
        %v5407 = vrot.slane %v5295, 6
        %v5408 = vrot.slane %v5297, 6
        %v5439 = vrot.slane %v5270, 7
        %v5440 = vrot.slane %v5272, 7
        %v5441 = vrot.slane %v5274, 7
        %v5442 = vrot.slane %v5276, 7
        %v5443 = vrot.slane %v5278, 7
        %v5444 = vrot.slane %v5280, 7
        %v5445 = vrot.slane %v5282, 7
        %v5446 = vrot.slane %v5284, 7
        %v5447 = vrot.slane %v5286, 7
        %v5448 = vrot.slane %v5288, 7
        %v5449 = vrot.slane %v5290, 7
        %v5450 = vrot.slane %v5292, 7
        %v5451 = vrot.slane %v5294, 7
        %v5452 = vrot.slane %v5296, 7
        %v5453 = vrot.slane %v5298, 7
        %v5469 = vrot.slane %v5270, 1
        %v5470 = vrot.slane %v5272, 1
        %v5471 = vrot.slane %v5274, 1
        %v5472 = vrot.slane %v5276, 1
        %v5473 = vrot.slane %v5278, 1
        %v5474 = vrot.slane %v5280, 1
        %v5475 = vrot.slane %v5282, 1
        %v5476 = vrot.slane %v5284, 1
        %v5477 = vrot.slane %v5286, 1
        %v5478 = vrot.slane %v5288, 1
        %v5479 = vrot.slane %v5290, 1
        %v5480 = vrot.slane %v5292, 1
        %v5481 = vrot.slane %v5294, 1
        %v5482 = vrot.slane %v5296, 1
        %v5483 = vrot.slane %v5298, 1
        %v5499 = vrot.slane %v5270, 2
        %v5500 = vrot.slane %v5272, 2
        %v5501 = vrot.slane %v5274, 2
        %v5502 = vrot.slane %v5276, 2
        %v5503 = vrot.slane %v5278, 2
        %v5504 = vrot.slane %v5280, 2
        %v5505 = vrot.slane %v5282, 2
        %v5506 = vrot.slane %v5284, 2
        %v5507 = vrot.slane %v5286, 2
        %v5508 = vrot.slane %v5288, 2
        %v5509 = vrot.slane %v5290, 2
        %v5510 = vrot.slane %v5292, 2
        %v5511 = vrot.slane %v5294, 2
        %v5512 = vrot.slane %v5296, 2
        %v5513 = vrot.slane %v5298, 2
        %v5529 = vsel %vm3980, %v5394, %v5439
        %v5530 = vsel %vm3980, %v5395, %v5440
        %v5531 = vsel %vm3980, %v5396, %v5441
        %v5532 = vsel %vm3980, %v5397, %v5442
        %v5533 = vsel %vm3980, %v5398, %v5443
        %v5534 = vsel %vm3980, %v5399, %v5444
        %v5535 = vsel %vm3980, %v5400, %v5445
        %v5536 = vsel %vm3980, %v5401, %v5446
        %v5537 = vsel %vm3980, %v5402, %v5447
        %v5538 = vsel %vm3980, %v5403, %v5448
        %v5539 = vsel %vm3980, %v5404, %v5449
        %v5540 = vsel %vm3980, %v5405, %v5450
        %v5541 = vsel %vm3980, %v5406, %v5451
        %v5542 = vsel %vm3980, %v5407, %v5452
        %v5543 = vsel %vm3980, %v5408, %v5453
        %v5544 = vsel %vm1235, %v5529, %v5270
        %v5545 = vsel %vm1235, %v5530, %v5272
        %v5546 = vsel %vm1235, %v5531, %v5274
        %v5547 = vsel %vm1235, %v5532, %v5276
        %v5548 = vsel %vm1235, %v5533, %v5278
        %v5549 = vsel %vm1235, %v5534, %v5280
        %v5550 = vsel %vm1235, %v5535, %v5282
        %v5551 = vsel %vm1235, %v5536, %v5284
        %v5552 = vsel %vm1235, %v5537, %v5286
        %v5553 = vsel %vm1235, %v5538, %v5288
        %v5554 = vsel %vm1235, %v5539, %v5290
        %v5555 = vsel %vm1235, %v5540, %v5292
        %v5556 = vsel %vm1235, %v5541, %v5294
        %v5557 = vsel %vm1235, %v5542, %v5296
        %v5558 = vsel %vm1235, %v5543, %v5298
        %v5559 = vsel %vm1058, %v5544, %v5469
        %v5560 = vsel %vm1058, %v5545, %v5470
        %v5561 = vsel %vm1058, %v5546, %v5471
        %v5562 = vsel %vm1058, %v5547, %v5472
        %v5563 = vsel %vm1058, %v5548, %v5473
        %v5564 = vsel %vm1058, %v5549, %v5474
        %v5565 = vsel %vm1058, %v5550, %v5475
        %v5566 = vsel %vm1058, %v5551, %v5476
        %v5567 = vsel %vm1058, %v5552, %v5477
        %v5568 = vsel %vm1058, %v5553, %v5478
        %v5569 = vsel %vm1058, %v5554, %v5479
        %v5570 = vsel %vm1058, %v5555, %v5480
        %v5571 = vsel %vm1058, %v5556, %v5481
        %v5572 = vsel %vm1058, %v5557, %v5482
        %v5573 = vsel %vm1058, %v5558, %v5483
        %v5574 = vsel %vm881, %v5559, %v5499
        %v5575 = vsel %vm881, %v5560, %v5500
        %v5576 = vsel %vm881, %v5561, %v5501
        %v5577 = vsel %vm881, %v5562, %v5502
        %v5578 = vsel %vm881, %v5563, %v5503
        %v5579 = vsel %vm881, %v5564, %v5504
        %v5580 = vsel %vm881, %v5565, %v5505
        %v5581 = vsel %vm881, %v5566, %v5506
        %v5582 = vsel %vm881, %v5567, %v5507
        %v5583 = vsel %vm881, %v5568, %v5508
        %v5584 = vsel %vm881, %v5569, %v5509
        %v5585 = vsel %vm881, %v5570, %v5510
        %v5586 = vsel %vm881, %v5571, %v5511
        %v5587 = vsel %vm881, %v5572, %v5512
        %v5588 = vsel %vm881, %v5573, %v5513
        %v5589 = vrot.slane %v5349, 6
        %v5590 = vrot.slane %v5351, 6
        %v5591 = vrot.slane %v5353, 6
        %v5592 = vrot.slane %v5355, 6
        %v5593 = vrot.slane %v5357, 6
        %v5594 = vrot.slane %v5359, 6
        %v5595 = vrot.slane %v5361, 6
        %v5596 = vrot.slane %v5363, 6
        %v5597 = vrot.slane %v5365, 6
        %v5598 = vrot.slane %v5367, 6
        %v5599 = vrot.slane %v5369, 6
        %v5600 = vrot.slane %v5371, 6
        %v5601 = vrot.slane %v5373, 6
        %v5602 = vrot.slane %v5375, 6
        %v5603 = vrot.slane %v5377, 6
        %v5604 = vrot.slane %v5350, 7
        %v5605 = vrot.slane %v5352, 7
        %v5606 = vrot.slane %v5354, 7
        %v5607 = vrot.slane %v5356, 7
        %v5608 = vrot.slane %v5358, 7
        %v5609 = vrot.slane %v5360, 7
        %v5610 = vrot.slane %v5362, 7
        %v5611 = vrot.slane %v5364, 7
        %v5612 = vrot.slane %v5366, 7
        %v5613 = vrot.slane %v5368, 7
        %v5614 = vrot.slane %v5370, 7
        %v5615 = vrot.slane %v5372, 7
        %v5616 = vrot.slane %v5374, 7
        %v5617 = vrot.slane %v5376, 7
        %v5618 = vrot.slane %v5378, 7
        %v5619 = vrot.slane %v5350, 1
        %v5620 = vrot.slane %v5352, 1
        %v5621 = vrot.slane %v5354, 1
        %v5622 = vrot.slane %v5356, 1
        %v5623 = vrot.slane %v5358, 1
        %v5624 = vrot.slane %v5360, 1
        %v5625 = vrot.slane %v5362, 1
        %v5626 = vrot.slane %v5364, 1
        %v5627 = vrot.slane %v5366, 1
        %v5628 = vrot.slane %v5368, 1
        %v5629 = vrot.slane %v5370, 1
        %v5630 = vrot.slane %v5372, 1
        %v5631 = vrot.slane %v5374, 1
        %v5632 = vrot.slane %v5376, 1
        %v5633 = vrot.slane %v5378, 1
        %v5634 = vrot.slane %v5350, 2
        %v5635 = vrot.slane %v5352, 2
        %v5636 = vrot.slane %v5354, 2
        %v5637 = vrot.slane %v5356, 2
        %v5638 = vrot.slane %v5358, 2
        %v5639 = vrot.slane %v5360, 2
        %v5640 = vrot.slane %v5362, 2
        %v5641 = vrot.slane %v5364, 2
        %v5642 = vrot.slane %v5366, 2
        %v5643 = vrot.slane %v5368, 2
        %v5644 = vrot.slane %v5370, 2
        %v5645 = vrot.slane %v5372, 2
        %v5646 = vrot.slane %v5374, 2
        %v5647 = vrot.slane %v5376, 2
        %v5648 = vrot.slane %v5378, 2
        %v5649 = vsel %vm3980, %v5589, %v5604
        %v5650 = vsel %vm3980, %v5590, %v5605
        %v5651 = vsel %vm3980, %v5591, %v5606
        %v5652 = vsel %vm3980, %v5592, %v5607
        %v5653 = vsel %vm3980, %v5593, %v5608
        %v5654 = vsel %vm3980, %v5594, %v5609
        %v5655 = vsel %vm3980, %v5595, %v5610
        %v5656 = vsel %vm3980, %v5596, %v5611
        %v5657 = vsel %vm3980, %v5597, %v5612
        %v5658 = vsel %vm3980, %v5598, %v5613
        %v5659 = vsel %vm3980, %v5599, %v5614
        %v5660 = vsel %vm3980, %v5600, %v5615
        %v5661 = vsel %vm3980, %v5601, %v5616
        %v5662 = vsel %vm3980, %v5602, %v5617
        %v5663 = vsel %vm3980, %v5603, %v5618
        %v5664 = vsel %vm1235, %v5649, %v5350
        %v5665 = vsel %vm1235, %v5650, %v5352
        %v5666 = vsel %vm1235, %v5651, %v5354
        %v5667 = vsel %vm1235, %v5652, %v5356
        %v5668 = vsel %vm1235, %v5653, %v5358
        %v5669 = vsel %vm1235, %v5654, %v5360
        %v5670 = vsel %vm1235, %v5655, %v5362
        %v5671 = vsel %vm1235, %v5656, %v5364
        %v5672 = vsel %vm1235, %v5657, %v5366
        %v5673 = vsel %vm1235, %v5658, %v5368
        %v5674 = vsel %vm1235, %v5659, %v5370
        %v5675 = vsel %vm1235, %v5660, %v5372
        %v5676 = vsel %vm1235, %v5661, %v5374
        %v5677 = vsel %vm1235, %v5662, %v5376
        %v5678 = vsel %vm1235, %v5663, %v5378
        %v5679 = vsel %vm1058, %v5664, %v5619
        %v5680 = vsel %vm1058, %v5665, %v5620
        %v5681 = vsel %vm1058, %v5666, %v5621
        %v5682 = vsel %vm1058, %v5667, %v5622
        %v5683 = vsel %vm1058, %v5668, %v5623
        %v5684 = vsel %vm1058, %v5669, %v5624
        %v5685 = vsel %vm1058, %v5670, %v5625
        %v5686 = vsel %vm1058, %v5671, %v5626
        %v5687 = vsel %vm1058, %v5672, %v5627
        %v5688 = vsel %vm1058, %v5673, %v5628
        %v5689 = vsel %vm1058, %v5674, %v5629
        %v5690 = vsel %vm1058, %v5675, %v5630
        %v5691 = vsel %vm1058, %v5676, %v5631
        %v5692 = vsel %vm1058, %v5677, %v5632
        %v5693 = vsel %vm1058, %v5678, %v5633
        %v5694 = vsel %vm881, %v5679, %v5634
        %v5695 = vsel %vm881, %v5680, %v5635
        %v5696 = vsel %vm881, %v5681, %v5636
        %v5697 = vsel %vm881, %v5682, %v5637
        %v5698 = vsel %vm881, %v5683, %v5638
        %v5699 = vsel %vm881, %v5684, %v5639
        %v5700 = vsel %vm881, %v5685, %v5640
        %v5701 = vsel %vm881, %v5686, %v5641
        %v5702 = vsel %vm881, %v5687, %v5642
        %v5703 = vsel %vm881, %v5688, %v5643
        %v5704 = vsel %vm881, %v5689, %v5644
        %v5705 = vsel %vm881, %v5690, %v5645
        %v5706 = vsel %vm881, %v5691, %v5646
        %v5707 = vsel %vm881, %v5692, %v5647
        %v5708 = vsel %vm881, %v5693, %v5648
        %v5709 = vadd.s32 %v5695, 16
        %vm5710 = vcmp.gt.f32.partialorder %v5575, %v5574
        %v5711 = vsel %vm5710, %v5575, %v5574
        %v5712 = vsel %vm5710, %v5709, %v5694
        %v5713 = vadd.s32 %v5696, 32
        %vm5714 = vcmp.gt.f32.partialorder %v5576, %v5711
        %v5715 = vsel %vm5714, %v5576, %v5711
        %v5716 = vsel %vm5714, %v5713, %v5712
        %v5717 = vadd.s32 %v5697, 48
        %vm5718 = vcmp.gt.f32.partialorder %v5577, %v5576
        %v5719 = vsel %vm5718, %v5577, %v5576
        %v5720 = vsel %vm5718, %v5717, %v5713
        %v5721 = vadd.s32 %v5698, 64
        %vm5722 = vcmp.gt.f32.partialorder %v5578, %v5719
        %v5723 = vsel %vm5722, %v5578, %v5719
        %v5724 = vsel %vm5722, %v5721, %v5720
        %v5725 = vadd.s32 %v5699, 80
        %vm5726 = vcmp.gt.f32.partialorder %v5579, %v5578
        %v5727 = vsel %vm5726, %v5579, %v5578
        %v5728 = vsel %vm5726, %v5725, %v5721
        %v5729 = vadd.s32 %v5700, 96
        %vm5730 = vcmp.gt.f32.partialorder %v5580, %v5727
        %v5731 = vsel %vm5730, %v5580, %v5727
        %v5732 = vsel %vm5730, %v5729, %v5728
        %v5733 = vadd.s32 %v5701, 112
        %vm5734 = vcmp.gt.f32.partialorder %v5581, %v5580
        %v5735 = vsel %vm5734, %v5581, %v5580
        %v5736 = vsel %vm5734, %v5733, %v5729
        %v5737 = vadd.s32 %v5702, 128
        %vm5738 = vcmp.gt.f32.partialorder %v5582, %v5735
        %v5739 = vsel %vm5738, %v5582, %v5735
        %v5740 = vsel %vm5738, %v5737, %v5736
        %v5741 = vadd.s32 %v5703, 144
        %vm5742 = vcmp.gt.f32.partialorder %v5583, %v5582
        %v5743 = vsel %vm5742, %v5583, %v5582
        %v5744 = vsel %vm5742, %v5741, %v5737
        %v5745 = vadd.s32 %v5704, 160
        %vm5746 = vcmp.gt.f32.partialorder %v5584, %v5743
        %v5747 = vsel %vm5746, %v5584, %v5743
        %v5748 = vsel %vm5746, %v5745, %v5744
        %v5749 = vadd.s32 %v5705, 176
        %vm5750 = vcmp.gt.f32.partialorder %v5585, %v5584
        %v5751 = vsel %vm5750, %v5585, %v5584
        %v5752 = vsel %vm5750, %v5749, %v5745
        %v5753 = vadd.s32 %v5706, 192
        %vm5754 = vcmp.gt.f32.partialorder %v5586, %v5751
        %v5755 = vsel %vm5754, %v5586, %v5751
        %v5756 = vsel %vm5754, %v5753, %v5752
        %v5757 = vadd.s32 %v5707, 208
        %vm5758 = vcmp.gt.f32.partialorder %v5587, %v5586
        %v5759 = vsel %vm5758, %v5587, %v5586
        %v5760 = vsel %vm5758, %v5757, %v5753
        %v5761 = vadd.s32 %v5708, 224
        %vm5762 = vcmp.gt.f32.partialorder %v5588, %v5759
        %v5763 = vsel %vm5762, %v5588, %v5759
        %v5764 = vsel %vm5762, %v5761, %v5760
        %vm5765 = vcmask 520192
        %5766 = vst.msk [vmem:[%s242] sm:$0x1f] %vm5765, %v5715
        %5767 = vst.msk [vmem:[%s242 + $0x8] sm:$0x1f] %vm5765, %v5723
        %5768 = vst.msk [vmem:[%s242 + $0x10] sm:$0x1f] %vm5765, %v5731
        %5769 = vst.msk [vmem:[%s242 + $0x18] sm:$0x1f] %vm5765, %v5739
        %5770 = vst.msk [vmem:[%s242 + $0x20] sm:$0x1f] %vm5765, %v5747
        %5771 = vst.msk [vmem:[%s242 + $0x28] sm:$0x1f] %vm5765, %v5755
        %5772 = vst.msk [vmem:[%s242 + $0x30] sm:$0x1f] %vm5765, %v5763
        %5773 = vst.msk [vmem:[%s247] sm:$0x1f] %vm5765, %v5716
        %5774 = vst.msk [vmem:[%s247 + $0x8] sm:$0x1f] %vm5765, %v5724
        %5775 = vst.msk [vmem:[%s247 + $0x10] sm:$0x1f] %vm5765, %v5732
        %5776 = vst.msk [vmem:[%s247 + $0x18] sm:$0x1f] %vm5765, %v5740
        %5777 = vst.msk [vmem:[%s247 + $0x20] sm:$0x1f] %vm5765, %v5748
        %5778 = vst.msk [vmem:[%s247 + $0x28] sm:$0x1f] %vm5765, %v5756
        %5779 = vst.msk [vmem:[%s247 + $0x30] sm:$0x1f] %vm5765, %v5764
        %s5780 = sand.u32 %s96, 1
        %s5781 = scalar_lea.sflag [#allocation3], %s5780
        %s5782 = sand.u32 %s96, 1
        %s5783 = smul.addr %s5782, 256
        %s5784 = scalar_lea.vmem [#allocation2], %s5783
        %p5785 = scmp.lt.s32.totalorder %s20, 1
        %s5786 = scalar_select %p5785, %s20, 1
        %s5787 = smul.addr %s5786, 7
        %s5788 = smul.addr %s5787, 8
        %s5789 = scalar_lea.vmem %s4, %s5788
        %p5790 = scmp.lt.s32.totalorder %s20, 1
        %s5791 = scalar_select %p5790, %s20, 1
        %s5792 = smul.addr %s5791, 7
        %s5793 = smul.addr %s5792, 8
        %s5794 = scalar_lea.vmem %s5, %s5793
        // Predicated region
        $region33: #{encoder_block_forward.1} parent=31 // pred_check
          %p5795 = pneg %p106
        $region34: #{encoder_block_forward.1} parent=31 // pred_check_branch
          %5797 = sbr.rel (%p5795) target = $region36
        $region35: #{encoder_block_forward.1} parent=31 // pred_region
          %s5799 = ssub.s32 4096, 4096
          %5800 = vsyncadd %s5781, %s5799
          %s5801 = smul.addr %s20, 32
          %s5802 = smul.addr %s5801, 128
          %s5803 = scalar_lea.hbm %s3, %s5802
          %s5804 = sshll.u32 %s5784, 4
          %s5805 = int_to_ptr.vmem [resolvable:$true] %s5804
          %5810 = dma.vmem_to_hbm [thread:$0]  %s5805, 4096, %s5803, %s5781, 128, 128, 8
        $region36: #{encoder_block_forward.1} parent=31 // pred_fallthru
          _
        // Predicated region
        $region37: #{encoder_block_forward.1} parent=31 // pred_check
          %p5811 = pneg %p132
        $region38: #{encoder_block_forward.1} parent=31 // pred_check_branch
          %5813 = sbr.rel (%p5811) target = $region40
        $region39: #{encoder_block_forward.1} parent=31 // pred_region
          _
        $region40: #{encoder_block_forward.1} parent=31 // pred_fallthru
          _
        // Predicated region
        $region41: #{encoder_block_forward.1} parent=31 // pred_check
          %p5814 = pneg %p158
        $region42: #{encoder_block_forward.1} parent=31 // pred_check_branch
          %5816 = sbr.rel (%p5814) target = $region44
        $region43: #{encoder_block_forward.1} parent=31 // pred_region
          _
        $region44: #{encoder_block_forward.1} parent=31 // pred_fallthru
          _
      $region32: #{encoder_block_forward.1} parent=5 // pred_fallthru
        _
      %p5817 = scmp.le.s32.totalorder 2, %s15
      // Predicated region
      $region45: #{encoder_block_forward.1} parent=5 // pred_check
        %p5818 = pneg %p5817
      $region46: #{encoder_block_forward.1} parent=5 // pred_check_branch
        %5820 = sbr.rel (%p5818) target = $region48
      $region47: #{encoder_block_forward.1} parent=5 // pred_region
        %s5821 = ssub.s32 %s15, 2
        // Predicated region
        $region49: #{encoder_block_forward.1} parent=47 // pred_check
          %p5822 = pneg %p112
        $region50: #{encoder_block_forward.1} parent=47 // pred_check_branch
          %5824 = sbr.rel (%p5822) target = $region52
        $region51: #{encoder_block_forward.1} parent=47 // pred_region
          %s5825 = sand.u32 %s97, 1
          %s5826 = scalar_lea.sflag [#allocation3], %s5825
          %s5827 = sand.u32 %s97, 1
          %s5828 = smul.addr %s5827, 256
          %s5829 = scalar_lea.vmem [#allocation2], %s5828
          %5830 = dma.done %s5826, 4096
        $region52: #{encoder_block_forward.1} parent=47 // pred_fallthru
          _
        // Predicated region
        $region53: #{encoder_block_forward.1} parent=47 // pred_check
          %p5831 = pneg %p138
        $region54: #{encoder_block_forward.1} parent=47 // pred_check_branch
          %5833 = sbr.rel (%p5831) target = $region56
        $region55: #{encoder_block_forward.1} parent=47 // pred_region
          %p5834 = scmp.lt.s32.totalorder %s21, 1
          %s5835 = scalar_select %p5834, %s21, 1
          %s5836 = smul.addr %s5835, 7
          %s5837 = smul.addr %s5836, 8
          %s5838 = scalar_lea.vmem %s4, %s5837
        $region56: #{encoder_block_forward.1} parent=47 // pred_fallthru
          _
        // Predicated region
        $region57: #{encoder_block_forward.1} parent=47 // pred_check
          %p5839 = pneg %p164
        $region58: #{encoder_block_forward.1} parent=47 // pred_check_branch
          %5841 = sbr.rel (%p5839) target = $region60
        $region59: #{encoder_block_forward.1} parent=47 // pred_region
          %p5842 = scmp.lt.s32.totalorder %s21, 1
          %s5843 = scalar_select %p5842, %s21, 1
          %s5844 = smul.addr %s5843, 7
          %s5845 = smul.addr %s5844, 8
          %s5846 = scalar_lea.vmem %s5, %s5845
        $region60: #{encoder_block_forward.1} parent=47 // pred_fallthru
          _
      $region48: #{encoder_block_forward.1} parent=5 // pred_fallthru
        _
    $region6: #{encoder_block_forward.1} parent=1 // loop_footer
      %s19 = sadd.s32 1, %s15
    $region7: #{encoder_block_forward.1} parent=1 // loop_footer_branch
      %14 = sbr.rel target = $region3
    $region8: #{encoder_block_forward.1} parent=1 // loop_exit
      _
    %5847 = vsyncpa [#allocation3], 1
    %s5848 = scalar_lea.sflag [#allocation3], 1
    %5849 = vsyncpa %s5848, 1

</llo_original>
